<compile_context>
chip_gen: v5e
topology: v5e:2x2
jax: 0.10.0
libtpu: 0.0.40
codegen_flags: <defaults>
</compile_context>

<pallas_src>
import math
from functools import partial

import jax
import jax.numpy as jnp
from jax.experimental import pallas as pl
from jax.experimental.pallas import tpu as pltpu


# ----------------------------- small helpers ---------------------------------
def _layer_norm(v, w, b, eps):
    """Two-pass LayerNorm (same numerics as torch.nn.LayerNorm)."""
    mu = jnp.mean(v, axis=-1, keepdims=True)
    vc = v - mu
    var = jnp.mean(vc * vc, axis=-1, keepdims=True)
    return vc * jax.lax.rsqrt(var + eps) * w + b


def _vmem_capacity_bytes():
    try:
        return int(pltpu.get_tpu_info().vmem_capacity_bytes)
    except Exception:
        return 128 * 2 ** 20                       # v5e / v6e default


def _pick_heads_per_step(num_heads, head_dim, override):
    if override is not None:
        hps = int(override)
        assert num_heads % hps == 0, "heads_per_step must divide num_heads"
        return hps
    if _vmem_capacity_bytes() >= 96 * 2 ** 20:
        # v5e / v6e (128 MiB VMEM): keep ALL attention weights resident -> single
        # head group, full-width projections, no per-(b, q-tile) weight re-DMA.
        return num_heads
    # v7x (64 MiB VMEM): stream head groups; target ~256-288-wide projections.
    hps = 1
    for cand in range(1, num_heads + 1):
        if num_heads % cand == 0 and cand * head_dim <= 384:
            hps = cand
    return hps


def _pick_q_block(S, B, override):
    if override is not None:
        tq = int(override)
        assert S % tq == 0, "q_block must divide the sequence length"
        assert tq == S or tq % 8 == 0, "q_block must be a multiple of 8"
        return tq
    cands = [t for t in range(8, min(S, 256) + 1, 8) if S % t == 0]
    if not cands:
        return S                                   # e.g. S = 729: no 8-divisible tile
    if B == 1:                                     # make sure both v7x TCs get work
        strict = [t for t in cands if t < S]
        if strict:
            return max(strict)
    return max(cands)


def _pick_mlp_chunks(I, mlp_chunk):
    if mlp_chunk is None or mlp_chunk >= I:
        return 1
    for n in range(1, I + 1):
        if I % n == 0 and I // n <= mlp_chunk:
            return n
    return 1


def _spec(shape, index_map, constant, single_buffer):
    """BlockSpec; constant-index blocks are single-buffered when requested."""
    if constant and single_buffer:
        try:
            return pl.BlockSpec(shape, index_map, pipeline_mode=pl.Buffered(1))
        except Exception:                          # pipeline_mode/Buffered unsupported
            pass
    return pl.BlockSpec(shape, index_map)


# ----------------------------- Pallas kernel ----------------------------------
def _encoder_layer_kernel(*refs, eps, has_mask, hps, n_mlp_chunks):
    if has_mask:
        mask_ref, refs = refs[0], refs[1:]
    else:
        mask_ref = None
    (x_ref, xn1_ref,
     qw_ref, qb_ref, kw_ref, kb_ref, vw_ref, vb_ref,
     ow_ref, ob_ref, ln2w_ref, ln2b_ref,
     f1w_ref, f1b_ref, f2w_ref, f2b_ref,
     out_ref, acc_sc) = refs

    g = pl.program_id(2)
    tq, D = out_ref.shape[1], out_ref.shape[2]
    S = xn1_ref.shape[1]
    gdh = qw_ref.shape[2]
    dh = gdh // hps
    scale = dh ** -0.5

    @pl.when(g == 0)
    def _init():
        acc_sc[...] = jnp.zeros_like(acc_sc)

    # ---- grouped q/k/v projections: one wide MXU matmul per group (N = hps*dh) ----
    xn_full = xn1_ref[0]                                            # (S, D)  bf16
    if tq == S:
        xn_q = xn_full
    else:
        q_start = pl.multiple_of(pl.program_id(1) * tq, tq)
        xn_q = xn1_ref[0, pl.ds(q_start, tq), :]                    # (tq, D) bf16

    q = jnp.dot(xn_q, qw_ref[0], preferred_element_type=jnp.float32)
    q = (q + qb_ref[0]) * scale                                     # (tq, gdh)
    k = jnp.dot(xn_full, kw_ref[0], preferred_element_type=jnp.float32) + kb_ref[0]
    v = jnp.dot(xn_full, vw_ref[0], preferred_element_type=jnp.float32) + vb_ref[0]
    qh, kh, vh = (t.astype(jnp.bfloat16) for t in (q, k, v))
    mask = mask_ref[0].astype(jnp.float32) if has_mask else None    # (tq, S)

    # ---- per-head attention (score contraction is dh by construction) ----
    dims_t = (((1,), (1,)), ((), ()))            # A @ B^T: contract last dims of both
    outs = []
    for hh in range(hps):                        # static unroll over heads in the group
        lo = hh * dh
        s = jax.lax.dot_general(qh[:, lo:lo + dh], kh[:, lo:lo + dh],
                                dims_t, preferred_element_type=jnp.float32)   # (tq, S)
        if has_mask:
            s = s + mask
        s = s - jnp.max(s, axis=-1, keepdims=True)                  # stable softmax
        p = jnp.exp(s)
        l = jnp.sum(p, axis=-1, keepdims=True)
        o = jnp.dot(p.astype(jnp.bfloat16), vh[:, lo:lo + dh],
                    preferred_element_type=jnp.float32)             # (tq, dh)
        # EUP reciprocal (~1e-3 rel err, fine for inference; use approx=False for parity)
        o = o * pl.reciprocal(l, approx=True)
        outs.append(o.astype(jnp.bfloat16))
    og = outs[0] if hps == 1 else jnp.concatenate(outs, axis=-1)    # (tq, gdh)
    # group out-projection: K = hps*dh (MXU-efficient)
    acc_sc[...] += jnp.dot(og, ow_ref[0], preferred_element_type=jnp.float32)

    # ---- epilogue on the last head group: residual, LN2, MLP, residual ----
    @pl.when(g == pl.num_programs(2) - 1)
    def _finish():
        resid = x_ref[0].astype(jnp.float32)                        # (tq, D)
        h1 = resid + acc_sc[...] + ob_ref[...]
        xn2 = _layer_norm(h1, ln2w_ref[...], ln2b_ref[...], eps).astype(jnp.bfloat16)
        I = f1w_ref.shape[1]
        ck = I // n_mlp_chunks
        c_gelu = math.sqrt(2.0 / math.pi)
        mlp = jnp.zeros((tq, D), jnp.float32)
        for c in range(n_mlp_chunks):            # bounds the (tq, I) f32 intermediate
            lo = c * ck
            m = jnp.dot(xn2, f1w_ref[:, lo:lo + ck],
                        preferred_element_type=jnp.float32) + f1b_ref[:, lo:lo + ck]
            gm = 0.5 * m * (1.0 + jnp.tanh(c_gelu * (m + 0.044715 * m * m * m)))
            mlp = mlp + jnp.dot(gm.astype(jnp.bfloat16), f2w_ref[lo:lo + ck, :],
                                preferred_element_type=jnp.float32)
        out_ref[0] = (h1 + mlp + f2b_ref[...]).astype(out_ref.dtype)


# ----------------------------- host-side param prep ---------------------------
def _prep_attention_params(params, num_heads, hps):
    """Group per-head weight columns/rows so head-group slicing is pure BlockSpec DMA."""
    D = params["q_w"].shape[0]
    dh = D // num_heads
    G = num_heads // hps
    gdh = hps * dh

    def col_groups(w):      # (D, D) -> (G, D, gdh): per-group output columns
        return jnp.transpose(w.reshape(D, G, gdh), (1, 0, 2)).astype(jnp.bfloat16)

    def col_bias(b):        # (1, D) -> (G, 1, gdh)
        return b.reshape(G, 1, gdh).astype(jnp.float32)

    def row_groups(w):      # (D, D) -> (G, gdh, D): per-group input rows
        return w.reshape(G, gdh, D).astype(jnp.bfloat16)

    return dict(
        qw=col_groups(params["q_w"]), qb=col_bias(params["q_b"]),
        kw=col_groups(params["k_w"]), kb=col_bias(params["k_b"]),
        vw=col_groups(params["v_w"]), vb=col_bias(params["v_b"]),
        ow=row_groups(params["o_w"]),
    )


# ----------------------------- per-layer wrapper -------------------------------
def siglip_encoder_layer(hidden_states, mask3d, params, *, num_heads, eps=1e-6,
                         q_block=None, heads_per_step=None, mlp_chunk=1024,
                         single_buffer_consts=True):
    B, S, D = hidden_states.shape
    I = params["fc1_w"].shape[1]
    assert D % num_heads == 0
    dh = D // num_heads
    hps = _pick_heads_per_step(num_heads, dh, heads_per_step)
    G = num_heads // hps
    gdh = hps * dh
    tq = _pick_q_block(S, B, q_block)
    n_q = S // tq
    n_mlp_chunks = _pick_mlp_chunks(I, mlp_chunk)
    has_mask = mask3d is not None

    # LayerNorm1 hoisted out of the kernel: computed once per layer (plain XLA,
    # two-pass formula), fed in as bf16.
    xn1 = _layer_norm(hidden_states.astype(jnp.float32),
                      params["ln1_w"], params["ln1_b"], eps).astype(jnp.bfloat16)

    ap = _prep_attention_params(params, num_heads, hps)
    f1w = params["fc1_w"].astype(jnp.bfloat16)
    f2w = params["fc2_w"].astype(jnp.bfloat16)

    kernel = partial(_encoder_layer_kernel, eps=eps, has_mask=has_mask,
                     hps=hps, n_mlp_chunks=n_mlp_chunks)

    const2 = lambda b, q, g: (0, 0)
    groupmap = lambda b, q, g: (g, 0, 0)
    sb = single_buffer_consts
    attn_const = (G == 1)                          # resident attention weights

    in_specs = []
    args = []
    if has_mask:
        in_specs.append(pl.BlockSpec((1, tq, S), lambda b, q, g: (b, q, 0)))
        args.append(mask3d)
    in_specs += [
        pl.BlockSpec((1, tq, D), lambda b, q, g: (b, q, 0)),        # residual x (q tile)
        pl.BlockSpec((1, S, D), lambda b, q, g: (b, 0, 0)),         # LN1(x), bf16, full seq
        _spec((1, D, gdh), groupmap, attn_const, sb),               # q_proj W group
        _spec((1, 1, gdh), groupmap, attn_const, sb),               # q_proj b
        _spec((1, D, gdh), groupmap, attn_const, sb),               # k_proj W
        _spec((1, 1, gdh), groupmap, attn_const, sb),               # k_proj b
        _spec((1, D, gdh), groupmap, attn_const, sb),               # v_proj W
        _spec((1, 1, gdh), groupmap, attn_const, sb),               # v_proj b
        _spec((1, gdh, D), groupmap, attn_const, sb),               # out_proj W group
        _spec((1, D), const2, True, sb),                            # out_proj b
        _spec((1, D), const2, True, sb), _spec((1, D), const2, True, sb),   # layer_norm2
        _spec((D, I), const2, True, sb), _spec((1, I), const2, True, sb),   # fc1
        _spec((I, D), const2, True, sb), _spec((1, D), const2, True, sb),   # fc2
    ]
    args += [hidden_states, xn1,
             ap["qw"], ap["qb"], ap["kw"], ap["kb"], ap["vw"], ap["vb"],
             ap["ow"], params["o_b"],
             params["ln2_w"], params["ln2_b"],
             f1w, params["fc1_b"], f2w, params["fc2_b"]]

    out_spec = pl.BlockSpec((1, tq, D), lambda b, q, g: (b, q, 0))
    scratch = [pltpu.VMEM((tq, D), jnp.float32)]   # attention out-proj accumulator

    # VMEM footprint estimate -> scoped limit, capped at 90% of the chip's capacity.
    vmem_cap = _vmem_capacity_bytes()
    attn_bufs = 1 if (attn_const and sb) else 2
    mlp_bufs = 1 if sb else 2
    ck = I // n_mlp_chunks
    est = (2 * tq * D * 4                          # residual tile (f32, dbl-buffered)
           + 2 * S * D * 2                         # LN1(x) block (bf16, dbl-buffered)
           + (2 * tq * S * 2 if has_mask else 0)   # mask tile (bf16)
           + attn_bufs * 4 * D * gdh * 2           # q/k/v/o weight group blocks (bf16)
           + mlp_bufs * 2 * D * I * 2              # fc1/fc2 weights (bf16)
           + 2 * tq * D * 4 + tq * D * 4           # out tile + accumulator
           + 3 * S * gdh * 6                       # q/k/v group activations (f32 + bf16)
           + 2 * tq * S * 4                        # scores / probs (f32)
           + 2 * tq * ck * 4                       # MLP chunk intermediates (f32)
           + (4 << 20))                            # biases / misc headroom
    vmem_limit = int(min(max(est, 32 * 2 ** 20), int(0.9 * vmem_cap)))

    grid_spec = pltpu.PrefetchScalarGridSpec(
        num_scalar_prefetch=0,
        grid=(B, n_q, G),
        in_specs=in_specs,
        out_specs=out_spec,
        scratch_shapes=scratch,
    )
    return pl.pallas_call(
        kernel,
        out_shape=jax.ShapeDtypeStruct((B, S, D), hidden_states.dtype),
        grid_spec=grid_spec,
        compiler_params=pltpu.CompilerParams(
            dimension_semantics=("parallel", "parallel", "arbitrary"),
            vmem_limit_bytes=vmem_limit),
    )(*args)


# ----------------------------- encoder wrapper ---------------------------------
def siglip_encoder(inputs_embeds, attention_mask, layer_params, *, num_heads,
                   eps=1e-6, q_block=None, heads_per_step=None, mlp_chunk=1024):
    """SiglipEncoder.forward (return_dict=False; only last_hidden_state is returned)."""
    B, S, D = inputs_embeds.shape
    if attention_mask is None:
        mask3d = None                              # compile the no-mask fast path
    else:
        if attention_mask.ndim == 4:
            assert attention_mask.shape[1] == 1, "per-head attention masks unsupported"
            mask3d = attention_mask[:, 0]
        else:
            mask3d = attention_mask.reshape(B, S, S)
        mask3d = mask3d.astype(jnp.bfloat16)       # halves mask HBM/VMEM traffic

    h = inputs_embeds
    single_buffer = True
    for params in layer_params:
        try:
            h = siglip_encoder_layer(
                h, mask3d, params, num_heads=num_heads, eps=eps, q_block=q_block,
                heads_per_step=heads_per_step, mlp_chunk=mlp_chunk,
                single_buffer_consts=single_buffer)
        except Exception:
            if not single_buffer:
                raise
            single_buffer = False                  # Buffered(1) unsupported -> retry
            h = siglip_encoder_layer(
                h, mask3d, params, num_heads=num_heads, eps=eps, q_block=q_block,
                heads_per_step=heads_per_step, mlp_chunk=mlp_chunk,
                single_buffer_consts=False)
    return h


# ----------------------------- pure-JAX reference ------------------------------
def _ref_siglip_encoder(x, mask4d, layer_params, *, num_heads, eps):
    def ln(v, w, b):
        mu = jnp.mean(v, axis=-1, keepdims=True)
        vc = v - mu
        var = jnp.mean(vc * vc, axis=-1, keepdims=True)
        return vc * jax.lax.rsqrt(var + eps) * w + b

    def bf(w):   # emulate bf16 weight storage
        return w.astype(jnp.bfloat16).astype(jnp.float32)

    B, S, D = x.shape
    H = num_heads
    dh = D // H
    for p in layer_params:
        xn = ln(x, p["ln1_w"], p["ln1_b"])
        q = (xn @ bf(p["q_w"]) + p["q_b"]) * (dh ** -0.5)
        k = xn @ bf(p["k_w"]) + p["k_b"]
        v = xn @ bf(p["v_w"]) + p["v_b"]
        q = q.reshape(B, S, H, dh).transpose(0, 2, 1, 3)
        k = k.reshape(B, S, H, dh).transpose(0, 2, 1, 3)
        v = v.reshape(B, S, H, dh).transpose(0, 2, 1, 3)
        s = jnp.einsum("bhqd,bhkd->bhqk", q, k)
        if mask4d is not None:
            s = s + mask4d
        pr = jax.nn.softmax(s, axis=-1)
        o = jnp.einsum("bhqk,bhkd->bhqd", pr, v)
        o = o.transpose(0, 2, 1, 3).reshape(B, S, D)
        x = x + (o @ bf(p["o_w"]) + p["o_b"])
        xn2 = ln(x, p["ln2_w"], p["ln2_b"])
        h1 = xn2 @ bf(p["fc1_w"]) + p["fc1_b"]
        c = math.sqrt(2.0 / math.pi)
        g = 0.5 * h1 * (1.0 + jnp.tanh(c * (h1 + 0.044715 * h1 ** 3)))
        x = x + (g @ bf(p["fc2_w"]) + p["fc2_b"])
    return x


# ----------------------------- param init --------------------------------------
def init_layer_params(key, D, I):
    ks = jax.random.split(key, 16)
    w = lambda k, shape, s=0.05: s * jax.random.normal(k, shape, dtype=jnp.float32)
    return {
        "ln1_w": 1.0 + w(ks[0], (1, D), 0.1), "ln1_b": w(ks[1], (1, D), 0.1),
        "q_w": w(ks[2], (D, D)), "q_b": w(ks[3], (1, D)),
        "k_w": w(ks[4], (D, D)), "k_b": w(ks[5], (1, D)),
        "v_w": w(ks[6], (D, D)), "v_b": w(ks[7], (1, D)),
        "o_w": w(ks[8], (D, D)), "o_b": w(ks[9], (1, D)),
        "ln2_w": 1.0 + w(ks[10], (1, D), 0.1), "ln2_b": w(ks[11], (1, D), 0.1),
        "fc1_w": w(ks[12], (D, I)), "fc1_b": w(ks[13], (1, I)),
        "fc2_w": w(ks[14], (I, D)), "fc2_b": w(ks[15], (1, D)),
    }


# ----------------------------- main ---------------------------------------------
if __name__ == "__main__":
    # Small synthetic SiglipConfig:
    B, S, D = 2, 16, 32         # batch, seq_len, hidden_size
    num_heads, I = 4, 64        # num_attention_heads, intermediate_size
    num_layers = 2              # num_hidden_layers
    eps = 1e-6                  # layer_norm_eps

    key = jax.random.PRNGKey(0)
    k_x, k_p = jax.random.split(key)

    inputs_embeds = jax.random.normal(k_x, (B, S, D), dtype=jnp.float32)
    layer_keys = jax.random.split(k_p, num_layers)
    layer_params = [init_layer_params(lk, D, I) for lk in layer_keys]

    # 1) default inference path: no attention mask (mask input compiled out),
    #    auto heads-per-step / q-tile (resident-weight configuration).
    out = jax.block_until_ready(
        siglip_encoder(inputs_embeds, None, layer_params, num_heads=num_heads, eps=eps))
    assert out.shape == (B, S, D) and out.dtype == jnp.float32
    ref = _ref_siglip_encoder(inputs_embeds, None, layer_params,
                              num_heads=num_heads, eps=eps)
    assert float(jnp.max(jnp.abs(out - ref))) < 5e-2

    # 2) masked path: additive (B, 1, S, S) mask that blocks the last two keys.
    mask4d = jnp.zeros((B, 1, S, S), dtype=jnp.float32).at[:, :, :, -2:].set(-1e9)
    out_m = jax.block_until_ready(
        siglip_encoder(inputs_embeds, mask4d, layer_params, num_heads=num_heads, eps=eps))
    ref_m = _ref_siglip_encoder(inputs_embeds, mask4d, layer_params,
                                num_heads=num_heads, eps=eps)
    assert float(jnp.max(jnp.abs(out_m - ref_m))) < 5e-2

    # 3) streamed head-group / q-tiled / chunked-MLP path (the v7x configuration).
    out_s = jax.block_until_ready(
        siglip_encoder(inputs_embeds, mask4d, layer_params, num_heads=num_heads, eps=eps,
                       q_block=8, heads_per_step=2, mlp_chunk=32))
    assert float(jnp.max(jnp.abs(out_s - ref_m))) < 5e-2

    print("KERNEL_OK")
</pallas_src>

<mosaic_0001>
module attributes {stable_mosaic.version = 11 : i64} {
  func.func @_encoder_layer_kernel(%arg0: i32, %arg1: i32, %arg2: i32, %arg3: memref<1x16x32xf32, #tpu.memory_space<vmem>>, %arg4: memref<1x16x32xbf16, #tpu.memory_space<vmem>>, %arg5: memref<1x32x32xbf16, #tpu.memory_space<vmem>>, %arg6: memref<1x1x32xf32, #tpu.memory_space<vmem>>, %arg7: memref<1x32x32xbf16, #tpu.memory_space<vmem>>, %arg8: memref<1x1x32xf32, #tpu.memory_space<vmem>>, %arg9: memref<1x32x32xbf16, #tpu.memory_space<vmem>>, %arg10: memref<1x1x32xf32, #tpu.memory_space<vmem>>, %arg11: memref<1x32x32xbf16, #tpu.memory_space<vmem>>, %arg12: memref<1x32xf32, #tpu.memory_space<vmem>>, %arg13: memref<1x32xf32, #tpu.memory_space<vmem>>, %arg14: memref<1x32xf32, #tpu.memory_space<vmem>>, %arg15: memref<32x64xbf16, #tpu.memory_space<vmem>>, %arg16: memref<1x64xf32, #tpu.memory_space<vmem>>, %arg17: memref<64x32xbf16, #tpu.memory_space<vmem>>, %arg18: memref<1x32xf32, #tpu.memory_space<vmem>>, %arg19: memref<1x16x32xf32, #tpu.memory_space<vmem>>, %arg20: memref<16x32xf32, #tpu.memory_space<vmem>>) attributes {dimension_semantics = [#tpu.dimension_semantics<parallel>, #tpu.dimension_semantics<parallel>, #tpu.dimension_semantics<arbitrary>], iteration_bounds = array<i64: 2, 1, 1>, scalar_prefetch = 0 : i64, scratch_operands = 1 : i64, tpu.core_type = #tpu.core_type<tc>, window_params = [{transform_indices = @transform_0, window_bounds = array<i64: 1, 16, 32>}, {transform_indices = @transform_1, window_bounds = array<i64: 1, 16, 32>}, {pipeline_mode = #tpu.pipeline_mode<synchronous>, transform_indices = @transform_2, window_bounds = array<i64: 1, 32, 32>}, {pipeline_mode = #tpu.pipeline_mode<synchronous>, transform_indices = @transform_3, window_bounds = array<i64: 1, 1, 32>}, {pipeline_mode = #tpu.pipeline_mode<synchronous>, transform_indices = @transform_4, window_bounds = array<i64: 1, 32, 32>}, {pipeline_mode = #tpu.pipeline_mode<synchronous>, transform_indices = @transform_5, window_bounds = array<i64: 1, 1, 32>}, {pipeline_mode = #tpu.pipeline_mode<synchronous>, transform_indices = @transform_6, window_bounds = array<i64: 1, 32, 32>}, {pipeline_mode = #tpu.pipeline_mode<synchronous>, transform_indices = @transform_7, window_bounds = array<i64: 1, 1, 32>}, {pipeline_mode = #tpu.pipeline_mode<synchronous>, transform_indices = @transform_8, window_bounds = array<i64: 1, 32, 32>}, {pipeline_mode = #tpu.pipeline_mode<synchronous>, transform_indices = @transform_9, window_bounds = array<i64: 1, 32>}, {pipeline_mode = #tpu.pipeline_mode<synchronous>, transform_indices = @transform_10, window_bounds = array<i64: 1, 32>}, {pipeline_mode = #tpu.pipeline_mode<synchronous>, transform_indices = @transform_11, window_bounds = array<i64: 1, 32>}, {pipeline_mode = #tpu.pipeline_mode<synchronous>, transform_indices = @transform_12, window_bounds = array<i64: 32, 64>}, {pipeline_mode = #tpu.pipeline_mode<synchronous>, transform_indices = @transform_13, window_bounds = array<i64: 1, 64>}, {pipeline_mode = #tpu.pipeline_mode<synchronous>, transform_indices = @transform_14, window_bounds = array<i64: 64, 32>}, {pipeline_mode = #tpu.pipeline_mode<synchronous>, transform_indices = @transform_15, window_bounds = array<i64: 1, 32>}, {transform_indices = @transform_16, window_bounds = array<i64: 1, 16, 32>}]} {
    %c0_i32 = arith.constant 0 : i32
    %0 = arith.cmpi eq, %arg2, %c0_i32 : i32
    %1 = arith.extui %0 : i1 to i32
    %c0_i32_0 = arith.constant 0 : i32
    %2 = arith.cmpi ne, %1, %c0_i32_0 : i32
    scf.if %2 {
      %cst_50 = arith.constant 0.000000e+00 : f32
      %109 = vector.broadcast %cst_50 : f32 to vector<16x32xf32>
      %c0_51 = arith.constant 0 : index
      %c0_52 = arith.constant 0 : index
      %110 = vector.load %arg20[%c0_51, %c0_52] : memref<16x32xf32, #tpu.memory_space<vmem>>, vector<16x32xf32>
      tpu.vector_store %arg20[%c0_51, %c0_52], %109 {strides = array<i32>} : memref<16x32xf32, #tpu.memory_space<vmem>>, vector<16x32xf32>,
    } else {
    }
    %c0 = arith.constant 0 : index
    %c0_1 = arith.constant 0 : index
    %c0_2 = arith.constant 0 : index
    %3 = vector.load %arg4[%c0, %c0_1, %c0_2] : memref<1x16x32xbf16, #tpu.memory_space<vmem>>, vector<1x16x32xbf16>
    %4 = vector.shape_cast %3 : vector<1x16x32xbf16> to vector<16x32xbf16>
    %c0_3 = arith.constant 0 : index
    %c0_4 = arith.constant 0 : index
    %c0_5 = arith.constant 0 : index
    %5 = vector.load %arg5[%c0_3, %c0_4, %c0_5] : memref<1x32x32xbf16, #tpu.memory_space<vmem>>, vector<1x32x32xbf16>
    %6 = vector.shape_cast %5 : vector<1x32x32xbf16> to vector<32x32xbf16>
    %cst = arith.constant dense<0.000000e+00> : vector<16x32xf32>
    %7 = tpu.matmul %4, %6, %cst {dimension_numbers = #tpu.dot_dimension_numbers<[1], [0], [0], [1], [0, 0, 1, 1], [], []>} : vector<16x32xbf16>, vector<32x32xbf16>, vector<16x32xf32> -> vector<16x32xf32>
    %c0_6 = arith.constant 0 : index
    %c0_7 = arith.constant 0 : index
    %c0_8 = arith.constant 0 : index
    %8 = vector.load %arg6[%c0_6, %c0_7, %c0_8] : memref<1x1x32xf32, #tpu.memory_space<vmem>>, vector<1x1x32xf32>
    %9 = vector.shape_cast %8 : vector<1x1x32xf32> to vector<1x32xf32>
    %10 = vector.broadcast %9 : vector<1x32xf32> to vector<16x32xf32>
    %11 = arith.addf %7, %10 : vector<16x32xf32>
    %cst_9 = arith.constant 0.353553385 : f32
    %12 = vector.broadcast %cst_9 : f32 to vector<16x32xf32>
    %13 = arith.mulf %11, %12 : vector<16x32xf32>
    %c0_10 = arith.constant 0 : index
    %c0_11 = arith.constant 0 : index
    %c0_12 = arith.constant 0 : index
    %14 = vector.load %arg7[%c0_10, %c0_11, %c0_12] : memref<1x32x32xbf16, #tpu.memory_space<vmem>>, vector<1x32x32xbf16>
    %15 = vector.shape_cast %14 : vector<1x32x32xbf16> to vector<32x32xbf16>
    %cst_13 = arith.constant dense<0.000000e+00> : vector<16x32xf32>
    %16 = tpu.matmul %4, %15, %cst_13 {dimension_numbers = #tpu.dot_dimension_numbers<[1], [0], [0], [1], [0, 0, 1, 1], [], []>} : vector<16x32xbf16>, vector<32x32xbf16>, vector<16x32xf32> -> vector<16x32xf32>
    %c0_14 = arith.constant 0 : index
    %c0_15 = arith.constant 0 : index
    %c0_16 = arith.constant 0 : index
    %17 = vector.load %arg8[%c0_14, %c0_15, %c0_16] : memref<1x1x32xf32, #tpu.memory_space<vmem>>, vector<1x1x32xf32>
    %18 = vector.shape_cast %17 : vector<1x1x32xf32> to vector<1x32xf32>
    %19 = vector.broadcast %18 : vector<1x32xf32> to vector<16x32xf32>
    %20 = arith.addf %16, %19 : vector<16x32xf32>
    %c0_17 = arith.constant 0 : index
    %c0_18 = arith.constant 0 : index
    %c0_19 = arith.constant 0 : index
    %21 = vector.load %arg9[%c0_17, %c0_18, %c0_19] : memref<1x32x32xbf16, #tpu.memory_space<vmem>>, vector<1x32x32xbf16>
    %22 = vector.shape_cast %21 : vector<1x32x32xbf16> to vector<32x32xbf16>
    %cst_20 = arith.constant dense<0.000000e+00> : vector<16x32xf32>
    %23 = tpu.matmul %4, %22, %cst_20 {dimension_numbers = #tpu.dot_dimension_numbers<[1], [0], [0], [1], [0, 0, 1, 1], [], []>} : vector<16x32xbf16>, vector<32x32xbf16>, vector<16x32xf32> -> vector<16x32xf32>
    %c0_21 = arith.constant 0 : index
    %c0_22 = arith.constant 0 : index
    %c0_23 = arith.constant 0 : index
    %24 = vector.load %arg10[%c0_21, %c0_22, %c0_23] : memref<1x1x32xf32, #tpu.memory_space<vmem>>, vector<1x1x32xf32>
    %25 = vector.shape_cast %24 : vector<1x1x32xf32> to vector<1x32xf32>
    %26 = vector.broadcast %25 : vector<1x32xf32> to vector<16x32xf32>
    %27 = arith.addf %23, %26 : vector<16x32xf32>
    %28 = arith.truncf %13 : vector<16x32xf32> to vector<16x32xbf16>
    %29 = arith.truncf %20 : vector<16x32xf32> to vector<16x32xbf16>
    %30 = arith.truncf %27 : vector<16x32xf32> to vector<16x32xbf16>
    %31 = vector.extract_strided_slice %28 {offsets = [0, 0], sizes = [16, 8], strides = [1, 1]} : vector<16x32xbf16> to vector<16x8xbf16>
    %32 = vector.extract_strided_slice %29 {offsets = [0, 0], sizes = [16, 8], strides = [1, 1]} : vector<16x32xbf16> to vector<16x8xbf16>
    %cst_24 = arith.constant dense<0.000000e+00> : vector<16x16xf32>
    %33 = tpu.matmul %31, %32, %cst_24 {dimension_numbers = #tpu.dot_dimension_numbers<[1], [1], [0], [0], [0, 0, 1, 0], [], []>} : vector<16x8xbf16>, vector<16x8xbf16>, vector<16x16xf32> -> vector<16x16xf32>
    %cst_25 = arith.constant dense<0xFF800000> : vector<16xf32>
    %34 = vector.multi_reduction <maximumf>, %33, %cst_25 [1] : vector<16x16xf32> to vector<16xf32>
    %35 = vector.shape_cast %34 : vector<16xf32> to vector<16x1xf32>
    %36 = vector.broadcast %35 : vector<16x1xf32> to vector<16x16xf32>
    %37 = arith.subf %33, %36 : vector<16x16xf32>
    %38 = math.exp %37 : vector<16x16xf32>
    %cst_26 = arith.constant dense<0.000000e+00> : vector<16xf32>
    %39 = vector.multi_reduction <add>, %38, %cst_26 [1] : vector<16x16xf32> to vector<16xf32>
    %40 = vector.shape_cast %39 : vector<16xf32> to vector<16x1xf32>
    %41 = arith.truncf %38 : vector<16x16xf32> to vector<16x16xbf16>
    %42 = vector.extract_strided_slice %30 {offsets = [0, 0], sizes = [16, 8], strides = [1, 1]} : vector<16x32xbf16> to vector<16x8xbf16>
    %cst_27 = arith.constant dense<0.000000e+00> : vector<16x8xf32>
    %43 = tpu.matmul %41, %42, %cst_27 {dimension_numbers = #tpu.dot_dimension_numbers<[1], [0], [0], [1], [0, 0, 1, 1], [], []>} : vector<16x16xbf16>, vector<16x8xbf16>, vector<16x8xf32> -> vector<16x8xf32>
    %44 = tpu.reciprocal %40 {approx = true} : vector<16x1xf32> -> vector<16x1xf32>
    %45 = vector.broadcast %44 : vector<16x1xf32> to vector<16x8xf32>
    %46 = arith.mulf %43, %45 : vector<16x8xf32>
    %47 = arith.truncf %46 : vector<16x8xf32> to vector<16x8xbf16>
    %48 = vector.extract_strided_slice %28 {offsets = [0, 8], sizes = [16, 8], strides = [1, 1]} : vector<16x32xbf16> to vector<16x8xbf16>
    %49 = vector.extract_strided_slice %29 {offsets = [0, 8], sizes = [16, 8], strides = [1, 1]} : vector<16x32xbf16> to vector<16x8xbf16>
    %cst_28 = arith.constant dense<0.000000e+00> : vector<16x16xf32>
    %50 = tpu.matmul %48, %49, %cst_28 {dimension_numbers = #tpu.dot_dimension_numbers<[1], [1], [0], [0], [0, 0, 1, 0], [], []>} : vector<16x8xbf16>, vector<16x8xbf16>, vector<16x16xf32> -> vector<16x16xf32>
    %cst_29 = arith.constant dense<0xFF800000> : vector<16xf32>
    %51 = vector.multi_reduction <maximumf>, %50, %cst_29 [1] : vector<16x16xf32> to vector<16xf32>
    %52 = vector.shape_cast %51 : vector<16xf32> to vector<16x1xf32>
    %53 = vector.broadcast %52 : vector<16x1xf32> to vector<16x16xf32>
    %54 = arith.subf %50, %53 : vector<16x16xf32>
    %55 = math.exp %54 : vector<16x16xf32>
    %cst_30 = arith.constant dense<0.000000e+00> : vector<16xf32>
    %56 = vector.multi_reduction <add>, %55, %cst_30 [1] : vector<16x16xf32> to vector<16xf32>
    %57 = vector.shape_cast %56 : vector<16xf32> to vector<16x1xf32>
    %58 = arith.truncf %55 : vector<16x16xf32> to vector<16x16xbf16>
    %59 = vector.extract_strided_slice %30 {offsets = [0, 8], sizes = [16, 8], strides = [1, 1]} : vector<16x32xbf16> to vector<16x8xbf16>
    %cst_31 = arith.constant dense<0.000000e+00> : vector<16x8xf32>
    %60 = tpu.matmul %58, %59, %cst_31 {dimension_numbers = #tpu.dot_dimension_numbers<[1], [0], [0], [1], [0, 0, 1, 1], [], []>} : vector<16x16xbf16>, vector<16x8xbf16>, vector<16x8xf32> -> vector<16x8xf32>
    %61 = tpu.reciprocal %57 {approx = true} : vector<16x1xf32> -> vector<16x1xf32>
    %62 = vector.broadcast %61 : vector<16x1xf32> to vector<16x8xf32>
    %63 = arith.mulf %60, %62 : vector<16x8xf32>
    %64 = arith.truncf %63 : vector<16x8xf32> to vector<16x8xbf16>
    %65 = vector.extract_strided_slice %28 {offsets = [0, 16], sizes = [16, 8], strides = [1, 1]} : vector<16x32xbf16> to vector<16x8xbf16>
    %66 = vector.extract_strided_slice %29 {offsets = [0, 16], sizes = [16, 8], strides = [1, 1]} : vector<16x32xbf16> to vector<16x8xbf16>
    %cst_32 = arith.constant dense<0.000000e+00> : vector<16x16xf32>
    %67 = tpu.matmul %65, %66, %cst_32 {dimension_numbers = #tpu.dot_dimension_numbers<[1], [1], [0], [0], [0, 0, 1, 0], [], []>} : vector<16x8xbf16>, vector<16x8xbf16>, vector<16x16xf32> -> vector<16x16xf32>
    %cst_33 = arith.constant dense<0xFF800000> : vector<16xf32>
    %68 = vector.multi_reduction <maximumf>, %67, %cst_33 [1] : vector<16x16xf32> to vector<16xf32>
    %69 = vector.shape_cast %68 : vector<16xf32> to vector<16x1xf32>
    %70 = vector.broadcast %69 : vector<16x1xf32> to vector<16x16xf32>
    %71 = arith.subf %67, %70 : vector<16x16xf32>
    %72 = math.exp %71 : vector<16x16xf32>
    %cst_34 = arith.constant dense<0.000000e+00> : vector<16xf32>
    %73 = vector.multi_reduction <add>, %72, %cst_34 [1] : vector<16x16xf32> to vector<16xf32>
    %74 = vector.shape_cast %73 : vector<16xf32> to vector<16x1xf32>
    %75 = arith.truncf %72 : vector<16x16xf32> to vector<16x16xbf16>
    %76 = vector.extract_strided_slice %30 {offsets = [0, 16], sizes = [16, 8], strides = [1, 1]} : vector<16x32xbf16> to vector<16x8xbf16>
    %cst_35 = arith.constant dense<0.000000e+00> : vector<16x8xf32>
    %77 = tpu.matmul %75, %76, %cst_35 {dimension_numbers = #tpu.dot_dimension_numbers<[1], [0], [0], [1], [0, 0, 1, 1], [], []>} : vector<16x16xbf16>, vector<16x8xbf16>, vector<16x8xf32> -> vector<16x8xf32>
    %78 = tpu.reciprocal %74 {approx = true} : vector<16x1xf32> -> vector<16x1xf32>
    %79 = vector.broadcast %78 : vector<16x1xf32> to vector<16x8xf32>
    %80 = arith.mulf %77, %79 : vector<16x8xf32>
    %81 = arith.truncf %80 : vector<16x8xf32> to vector<16x8xbf16>
    %82 = vector.extract_strided_slice %28 {offsets = [0, 24], sizes = [16, 8], strides = [1, 1]} : vector<16x32xbf16> to vector<16x8xbf16>
    %83 = vector.extract_strided_slice %29 {offsets = [0, 24], sizes = [16, 8], strides = [1, 1]} : vector<16x32xbf16> to vector<16x8xbf16>
    %cst_36 = arith.constant dense<0.000000e+00> : vector<16x16xf32>
    %84 = tpu.matmul %82, %83, %cst_36 {dimension_numbers = #tpu.dot_dimension_numbers<[1], [1], [0], [0], [0, 0, 1, 0], [], []>} : vector<16x8xbf16>, vector<16x8xbf16>, vector<16x16xf32> -> vector<16x16xf32>
    %cst_37 = arith.constant dense<0xFF800000> : vector<16xf32>
    %85 = vector.multi_reduction <maximumf>, %84, %cst_37 [1] : vector<16x16xf32> to vector<16xf32>
    %86 = vector.shape_cast %85 : vector<16xf32> to vector<16x1xf32>
    %87 = vector.broadcast %86 : vector<16x1xf32> to vector<16x16xf32>
    %88 = arith.subf %84, %87 : vector<16x16xf32>
    %89 = math.exp %88 : vector<16x16xf32>
    %cst_38 = arith.constant dense<0.000000e+00> : vector<16xf32>
    %90 = vector.multi_reduction <add>, %89, %cst_38 [1] : vector<16x16xf32> to vector<16xf32>
    %91 = vector.shape_cast %90 : vector<16xf32> to vector<16x1xf32>
    %92 = arith.truncf %89 : vector<16x16xf32> to vector<16x16xbf16>
    %93 = vector.extract_strided_slice %30 {offsets = [0, 24], sizes = [16, 8], strides = [1, 1]} : vector<16x32xbf16> to vector<16x8xbf16>
    %cst_39 = arith.constant dense<0.000000e+00> : vector<16x8xf32>
    %94 = tpu.matmul %92, %93, %cst_39 {dimension_numbers = #tpu.dot_dimension_numbers<[1], [0], [0], [1], [0, 0, 1, 1], [], []>} : vector<16x16xbf16>, vector<16x8xbf16>, vector<16x8xf32> -> vector<16x8xf32>
    %95 = tpu.reciprocal %91 {approx = true} : vector<16x1xf32> -> vector<16x1xf32>
    %96 = vector.broadcast %95 : vector<16x1xf32> to vector<16x8xf32>
    %97 = arith.mulf %94, %96 : vector<16x8xf32>
    %98 = arith.truncf %97 : vector<16x8xf32> to vector<16x8xbf16>
    %99 = tpu.concatenate %47, %64, %81, %98 in 1 : vector<16x8xbf16>, vector<16x8xbf16>, vector<16x8xbf16>, vector<16x8xbf16> -> vector<16x32xbf16>
    %c0_40 = arith.constant 0 : index
    %c0_41 = arith.constant 0 : index
    %100 = vector.load %arg20[%c0_40, %c0_41] : memref<16x32xf32, #tpu.memory_space<vmem>>, vector<16x32xf32>
    %c0_42 = arith.constant 0 : index
    %c0_43 = arith.constant 0 : index
    %c0_44 = arith.constant 0 : index
    %101 = vector.load %arg11[%c0_42, %c0_43, %c0_44] : memref<1x32x32xbf16, #tpu.memory_space<vmem>>, vector<1x32x32xbf16>
    %102 = vector.shape_cast %101 : vector<1x32x32xbf16> to vector<32x32xbf16>
    %cst_45 = arith.constant dense<0.000000e+00> : vector<16x32xf32>
    %103 = tpu.matmul %99, %102, %cst_45 {dimension_numbers = #tpu.dot_dimension_numbers<[1], [0], [0], [1], [0, 0, 1, 1], [], []>} : vector<16x32xbf16>, vector<32x32xbf16>, vector<16x32xf32> -> vector<16x32xf32>
    %104 = arith.addf %100, %103 : vector<16x32xf32>
    %c0_46 = arith.constant 0 : index
    %c0_47 = arith.constant 0 : index
    %105 = vector.load %arg20[%c0_46, %c0_47] : memref<16x32xf32, #tpu.memory_space<vmem>>, vector<16x32xf32>
    tpu.vector_store %arg20[%c0_46, %c0_47], %104 {strides = array<i32>} : memref<16x32xf32, #tpu.memory_space<vmem>>, vector<16x32xf32>,
    %c0_i32_48 = arith.constant 0 : i32
    %106 = arith.cmpi eq, %arg2, %c0_i32_48 : i32
    %107 = arith.extui %106 : i1 to i32
    %c0_i32_49 = arith.constant 0 : i32
    %108 = arith.cmpi ne, %107, %c0_i32_49 : i32
    scf.if %108 {
      %c0_50 = arith.constant 0 : index
      %c0_51 = arith.constant 0 : index
      %c0_52 = arith.constant 0 : index
      %109 = vector.load %arg3[%c0_50, %c0_51, %c0_52] : memref<1x16x32xf32, #tpu.memory_space<vmem>>, vector<1x16x32xf32>
      %110 = vector.shape_cast %109 : vector<1x16x32xf32> to vector<16x32xf32>
      %c0_53 = arith.constant 0 : index
      %c0_54 = arith.constant 0 : index
      %111 = vector.load %arg20[%c0_53, %c0_54] : memref<16x32xf32, #tpu.memory_space<vmem>>, vector<16x32xf32>
      %112 = arith.addf %110, %111 : vector<16x32xf32>
      %c0_55 = arith.constant 0 : index
      %c0_56 = arith.constant 0 : index
      %113 = vector.load %arg12[%c0_55, %c0_56] : memref<1x32xf32, #tpu.memory_space<vmem>>, vector<1x32xf32>
      %114 = vector.broadcast %113 : vector<1x32xf32> to vector<16x32xf32>
      %115 = arith.addf %112, %114 : vector<16x32xf32>
      %c0_57 = arith.constant 0 : index
      %c0_58 = arith.constant 0 : index
      %116 = vector.load %arg13[%c0_57, %c0_58] : memref<1x32xf32, #tpu.memory_space<vmem>>, vector<1x32xf32>
      %c0_59 = arith.constant 0 : index
      %c0_60 = arith.constant 0 : index
      %117 = vector.load %arg14[%c0_59, %c0_60] : memref<1x32xf32, #tpu.memory_space<vmem>>, vector<1x32xf32>
      %cst_61 = arith.constant dense<0.000000e+00> : vector<16xf32>
      %118 = vector.multi_reduction <add>, %115, %cst_61 [1] : vector<16x32xf32> to vector<16xf32>
      %119 = vector.shape_cast %118 : vector<16xf32> to vector<16x1xf32>
      %cst_62 = arith.constant 3.200000e+01 : f32
      %120 = vector.broadcast %cst_62 : f32 to vector<16x1xf32>
      %121 = arith.divf %119, %120 : vector<16x1xf32>
      %122 = vector.broadcast %121 : vector<16x1xf32> to vector<16x32xf32>
      %123 = arith.subf %115, %122 : vector<16x32xf32>
      %124 = arith.mulf %123, %123 : vector<16x32xf32>
      %cst_63 = arith.constant dense<0.000000e+00> : vector<16xf32>
      %125 = vector.multi_reduction <add>, %124, %cst_63 [1] : vector<16x32xf32> to vector<16xf32>
      %126 = vector.shape_cast %125 : vector<16xf32> to vector<16x1xf32>
      %cst_64 = arith.constant 3.200000e+01 : f32
      %127 = vector.broadcast %cst_64 : f32 to vector<16x1xf32>
      %128 = arith.divf %126, %127 : vector<16x1xf32>
      %cst_65 = arith.constant 9.99999997E-7 : f32
      %129 = vector.broadcast %cst_65 : f32 to vector<16x1xf32>
      %130 = arith.addf %128, %129 : vector<16x1xf32>
      %131 = math.rsqrt %130 : vector<16x1xf32>
      %132 = vector.broadcast %131 : vector<16x1xf32> to vector<16x32xf32>
      %133 = arith.mulf %123, %132 : vector<16x32xf32>
      %134 = vector.broadcast %116 : vector<1x32xf32> to vector<16x32xf32>
      %135 = arith.mulf %133, %134 : vector<16x32xf32>
      %136 = vector.broadcast %117 : vector<1x32xf32> to vector<16x32xf32>
      %137 = arith.addf %135, %136 : vector<16x32xf32>
      %138 = arith.truncf %137 : vector<16x32xf32> to vector<16x32xbf16>
      %cst_66 = arith.constant 0.000000e+00 : f32
      %139 = vector.broadcast %cst_66 : f32 to vector<16x32xf32>
      %c0_67 = arith.constant 0 : index
      %c0_68 = arith.constant 0 : index
      %140 = vector.load %arg15[%c0_67, %c0_68] : memref<32x64xbf16, #tpu.memory_space<vmem>>, vector<32x64xbf16>
      %cst_69 = arith.constant dense<0.000000e+00> : vector<16x64xf32>
      %141 = tpu.matmul %138, %140, %cst_69 {dimension_numbers = #tpu.dot_dimension_numbers<[1], [0], [0], [1], [0, 0, 1, 1], [], []>} : vector<16x32xbf16>, vector<32x64xbf16>, vector<16x64xf32> -> vector<16x64xf32>
      %c0_70 = arith.constant 0 : index
      %c0_71 = arith.constant 0 : index
      %142 = vector.load %arg16[%c0_70, %c0_71] : memref<1x64xf32, #tpu.memory_space<vmem>>, vector<1x64xf32>
      %143 = vector.broadcast %142 : vector<1x64xf32> to vector<16x64xf32>
      %144 = arith.addf %141, %143 : vector<16x64xf32>
      %cst_72 = arith.constant 5.000000e-01 : f32
      %145 = vector.broadcast %cst_72 : f32 to vector<16x64xf32>
      %146 = arith.mulf %145, %144 : vector<16x64xf32>
      %cst_73 = arith.constant 4.471500e-02 : f32
      %147 = vector.broadcast %cst_73 : f32 to vector<16x64xf32>
      %148 = arith.mulf %147, %144 : vector<16x64xf32>
      %149 = arith.mulf %148, %144 : vector<16x64xf32>
      %150 = arith.mulf %149, %144 : vector<16x64xf32>
      %151 = arith.addf %144, %150 : vector<16x64xf32>
      %cst_74 = arith.constant 0.797884583 : f32
      %152 = vector.broadcast %cst_74 : f32 to vector<16x64xf32>
      %153 = arith.mulf %152, %151 : vector<16x64xf32>
      %154 = math.tanh %153 : vector<16x64xf32>
      %cst_75 = arith.constant 1.000000e+00 : f32
      %155 = vector.broadcast %cst_75 : f32 to vector<16x64xf32>
      %156 = arith.addf %155, %154 : vector<16x64xf32>
      %157 = arith.mulf %146, %156 : vector<16x64xf32>
      %158 = arith.truncf %157 : vector<16x64xf32> to vector<16x64xbf16>
      %c0_76 = arith.constant 0 : index
      %c0_77 = arith.constant 0 : index
      %159 = vector.load %arg17[%c0_76, %c0_77] : memref<64x32xbf16, #tpu.memory_space<vmem>>, vector<64x32xbf16>
      %cst_78 = arith.constant dense<0.000000e+00> : vector<16x32xf32>
      %160 = tpu.matmul %158, %159, %cst_78 {dimension_numbers = #tpu.dot_dimension_numbers<[1], [0], [0], [1], [0, 0, 1, 1], [], []>} : vector<16x64xbf16>, vector<64x32xbf16>, vector<16x32xf32> -> vector<16x32xf32>
      %161 = arith.addf %139, %160 : vector<16x32xf32>
      %162 = arith.addf %115, %161 : vector<16x32xf32>
      %c0_79 = arith.constant 0 : index
      %c0_80 = arith.constant 0 : index
      %163 = vector.load %arg18[%c0_79, %c0_80] : memref<1x32xf32, #tpu.memory_space<vmem>>, vector<1x32xf32>
      %164 = vector.broadcast %163 : vector<1x32xf32> to vector<16x32xf32>
      %165 = arith.addf %162, %164 : vector<16x32xf32>
      %c0_81 = arith.constant 0 : index
      %c0_82 = arith.constant 0 : index
      %c0_83 = arith.constant 0 : index
      %166 = vector.load %arg19[%c0_81, %c0_82, %c0_83] : memref<1x16x32xf32, #tpu.memory_space<vmem>>, vector<1x16x32xf32>
      %167 = vector.shape_cast %166 : vector<1x16x32xf32> to vector<16x32xf32>
      %168 = vector.shape_cast %165 : vector<16x32xf32> to vector<1x16x32xf32>
      tpu.vector_store %arg19[%c0_81, %c0_82, %c0_83], %168 {strides = array<i32>} : memref<1x16x32xf32, #tpu.memory_space<vmem>>, vector<1x16x32xf32>,
    } else {
    }
    return
  }
  func.func @transform_0(%arg0: i32, %arg1: i32, %arg2: i32) -> (i32, i32, i32) {
    %c0_i32 = arith.constant 0 : i32
    %c0_i32_0 = arith.constant 0 : i32
    return %arg0, %arg1, %c0_i32 : i32, i32, i32
  }
  func.func @transform_1(%arg0: i32, %arg1: i32, %arg2: i32) -> (i32, i32, i32) {
    %c0_i32 = arith.constant 0 : i32
    %c0_i32_0 = arith.constant 0 : i32
    %c0_i32_1 = arith.constant 0 : i32
    return %arg0, %c0_i32, %c0_i32_0 : i32, i32, i32
  }
  func.func @transform_2(%arg0: i32, %arg1: i32, %arg2: i32) -> (i32, i32, i32) {
    %c0_i32 = arith.constant 0 : i32
    %c0_i32_0 = arith.constant 0 : i32
    %c0_i32_1 = arith.constant 0 : i32
    return %arg2, %c0_i32, %c0_i32_0 : i32, i32, i32
  }
  func.func @transform_3(%arg0: i32, %arg1: i32, %arg2: i32) -> (i32, i32, i32) {
    %c0_i32 = arith.constant 0 : i32
    %c0_i32_0 = arith.constant 0 : i32
    %c0_i32_1 = arith.constant 0 : i32
    return %arg2, %c0_i32, %c0_i32_0 : i32, i32, i32
  }
  func.func @transform_4(%arg0: i32, %arg1: i32, %arg2: i32) -> (i32, i32, i32) {
    %c0_i32 = arith.constant 0 : i32
    %c0_i32_0 = arith.constant 0 : i32
    %c0_i32_1 = arith.constant 0 : i32
    return %arg2, %c0_i32, %c0_i32_0 : i32, i32, i32
  }
  func.func @transform_5(%arg0: i32, %arg1: i32, %arg2: i32) -> (i32, i32, i32) {
    %c0_i32 = arith.constant 0 : i32
    %c0_i32_0 = arith.constant 0 : i32
    %c0_i32_1 = arith.constant 0 : i32
    return %arg2, %c0_i32, %c0_i32_0 : i32, i32, i32
  }
  func.func @transform_6(%arg0: i32, %arg1: i32, %arg2: i32) -> (i32, i32, i32) {
    %c0_i32 = arith.constant 0 : i32
    %c0_i32_0 = arith.constant 0 : i32
    %c0_i32_1 = arith.constant 0 : i32
    return %arg2, %c0_i32, %c0_i32_0 : i32, i32, i32
  }
  func.func @transform_7(%arg0: i32, %arg1: i32, %arg2: i32) -> (i32, i32, i32) {
    %c0_i32 = arith.constant 0 : i32
    %c0_i32_0 = arith.constant 0 : i32
    %c0_i32_1 = arith.constant 0 : i32
    return %arg2, %c0_i32, %c0_i32_0 : i32, i32, i32
  }
  func.func @transform_8(%arg0: i32, %arg1: i32, %arg2: i32) -> (i32, i32, i32) {
    %c0_i32 = arith.constant 0 : i32
    %c0_i32_0 = arith.constant 0 : i32
    %c0_i32_1 = arith.constant 0 : i32
    return %arg2, %c0_i32, %c0_i32_0 : i32, i32, i32
  }
  func.func @transform_9(%arg0: i32, %arg1: i32, %arg2: i32) -> (i32, i32) {
    %c0_i32 = arith.constant 0 : i32
    %c0_i32_0 = arith.constant 0 : i32
    %c0_i32_1 = arith.constant 0 : i32
    return %c0_i32, %c0_i32_0 : i32, i32
  }
  func.func @transform_10(%arg0: i32, %arg1: i32, %arg2: i32) -> (i32, i32) {
    %c0_i32 = arith.constant 0 : i32
    %c0_i32_0 = arith.constant 0 : i32
    %c0_i32_1 = arith.constant 0 : i32
    return %c0_i32, %c0_i32_0 : i32, i32
  }
  func.func @transform_11(%arg0: i32, %arg1: i32, %arg2: i32) -> (i32, i32) {
    %c0_i32 = arith.constant 0 : i32
    %c0_i32_0 = arith.constant 0 : i32
    %c0_i32_1 = arith.constant 0 : i32
    return %c0_i32, %c0_i32_0 : i32, i32
  }
  func.func @transform_12(%arg0: i32, %arg1: i32, %arg2: i32) -> (i32, i32) {
    %c0_i32 = arith.constant 0 : i32
    %c0_i32_0 = arith.constant 0 : i32
    %c0_i32_1 = arith.constant 0 : i32
    return %c0_i32, %c0_i32_0 : i32, i32
  }
  func.func @transform_13(%arg0: i32, %arg1: i32, %arg2: i32) -> (i32, i32) {
    %c0_i32 = arith.constant 0 : i32
    %c0_i32_0 = arith.constant 0 : i32
    %c0_i32_1 = arith.constant 0 : i32
    return %c0_i32, %c0_i32_0 : i32, i32
  }
  func.func @transform_14(%arg0: i32, %arg1: i32, %arg2: i32) -> (i32, i32) {
    %c0_i32 = arith.constant 0 : i32
    %c0_i32_0 = arith.constant 0 : i32
    %c0_i32_1 = arith.constant 0 : i32
    return %c0_i32, %c0_i32_0 : i32, i32
  }
  func.func @transform_15(%arg0: i32, %arg1: i32, %arg2: i32) -> (i32, i32) {
    %c0_i32 = arith.constant 0 : i32
    %c0_i32_0 = arith.constant 0 : i32
    %c0_i32_1 = arith.constant 0 : i32
    return %c0_i32, %c0_i32_0 : i32, i32
  }
  func.func @transform_16(%arg0: i32, %arg1: i32, %arg2: i32) -> (i32, i32, i32) {
    %c0_i32 = arith.constant 0 : i32
    %c0_i32_0 = arith.constant 0 : i32
    return %arg0, %arg1, %c0_i32 : i32, i32, i32
  }
}

module attributes {stable_mosaic.version = 11 : i64} {
  func.func @_encoder_layer_kernel(%arg0: i32, %arg1: i32, %arg2: i32, %arg3: memref<1x16x32xf32, #tpu.memory_space<vmem>>, %arg4: memref<1x16x32xbf16, #tpu.memory_space<vmem>>, %arg5: memref<1x32x32xbf16, #tpu.memory_space<vmem>>, %arg6: memref<1x1x32xf32, #tpu.memory_space<vmem>>, %arg7: memref<1x32x32xbf16, #tpu.memory_space<vmem>>, %arg8: memref<1x1x32xf32, #tpu.memory_space<vmem>>, %arg9: memref<1x32x32xbf16, #tpu.memory_space<vmem>>, %arg10: memref<1x1x32xf32, #tpu.memory_space<vmem>>, %arg11: memref<1x32x32xbf16, #tpu.memory_space<vmem>>, %arg12: memref<1x32xf32, #tpu.memory_space<vmem>>, %arg13: memref<1x32xf32, #tpu.memory_space<vmem>>, %arg14: memref<1x32xf32, #tpu.memory_space<vmem>>, %arg15: memref<32x64xbf16, #tpu.memory_space<vmem>>, %arg16: memref<1x64xf32, #tpu.memory_space<vmem>>, %arg17: memref<64x32xbf16, #tpu.memory_space<vmem>>, %arg18: memref<1x32xf32, #tpu.memory_space<vmem>>, %arg19: memref<1x16x32xf32, #tpu.memory_space<vmem>>, %arg20: memref<16x32xf32, #tpu.memory_space<vmem>>) attributes {dimension_semantics = [#tpu.dimension_semantics<parallel>, #tpu.dimension_semantics<parallel>, #tpu.dimension_semantics<arbitrary>], iteration_bounds = array<i64: 2, 1, 1>, scalar_prefetch = 0 : i64, scratch_operands = 1 : i64, tpu.core_type = #tpu.core_type<tc>, window_params = [{transform_indices = @transform_0, window_bounds = array<i64: 1, 16, 32>}, {transform_indices = @transform_1, window_bounds = array<i64: 1, 16, 32>}, {transform_indices = @transform_2, window_bounds = array<i64: 1, 32, 32>}, {transform_indices = @transform_3, window_bounds = array<i64: 1, 1, 32>}, {transform_indices = @transform_4, window_bounds = array<i64: 1, 32, 32>}, {transform_indices = @transform_5, window_bounds = array<i64: 1, 1, 32>}, {transform_indices = @transform_6, window_bounds = array<i64: 1, 32, 32>}, {transform_indices = @transform_7, window_bounds = array<i64: 1, 1, 32>}, {transform_indices = @transform_8, window_bounds = array<i64: 1, 32, 32>}, {pipeline_mode = #tpu.pipeline_mode<synchronous>, transform_indices = @transform_9, window_bounds = array<i64: 1, 32>}, {pipeline_mode = #tpu.pipeline_mode<synchronous>, transform_indices = @transform_10, window_bounds = array<i64: 1, 32>}, {pipeline_mode = #tpu.pipeline_mode<synchronous>, transform_indices = @transform_11, window_bounds = array<i64: 1, 32>}, {pipeline_mode = #tpu.pipeline_mode<synchronous>, transform_indices = @transform_12, window_bounds = array<i64: 32, 64>}, {pipeline_mode = #tpu.pipeline_mode<synchronous>, transform_indices = @transform_13, window_bounds = array<i64: 1, 64>}, {pipeline_mode = #tpu.pipeline_mode<synchronous>, transform_indices = @transform_14, window_bounds = array<i64: 64, 32>}, {pipeline_mode = #tpu.pipeline_mode<synchronous>, transform_indices = @transform_15, window_bounds = array<i64: 1, 32>}, {transform_indices = @transform_16, window_bounds = array<i64: 1, 16, 32>}]} {
    %c0_i32 = arith.constant 0 : i32
    %0 = arith.cmpi eq, %arg2, %c0_i32 : i32
    %1 = arith.extui %0 : i1 to i32
    %c0_i32_0 = arith.constant 0 : i32
    %2 = arith.cmpi ne, %1, %c0_i32_0 : i32
    scf.if %2 {
      %cst_50 = arith.constant 0.000000e+00 : f32
      %109 = vector.broadcast %cst_50 : f32 to vector<16x32xf32>
      %c0_51 = arith.constant 0 : index
      %c0_52 = arith.constant 0 : index
      %110 = vector.load %arg20[%c0_51, %c0_52] : memref<16x32xf32, #tpu.memory_space<vmem>>, vector<16x32xf32>
      tpu.vector_store %arg20[%c0_51, %c0_52], %109 {strides = array<i32>} : memref<16x32xf32, #tpu.memory_space<vmem>>, vector<16x32xf32>,
    } else {
    }
    %c0 = arith.constant 0 : index
    %c0_1 = arith.constant 0 : index
    %c0_2 = arith.constant 0 : index
    %3 = vector.load %arg4[%c0, %c0_1, %c0_2] : memref<1x16x32xbf16, #tpu.memory_space<vmem>>, vector<1x16x32xbf16>
    %4 = vector.shape_cast %3 : vector<1x16x32xbf16> to vector<16x32xbf16>
    %c0_3 = arith.constant 0 : index
    %c0_4 = arith.constant 0 : index
    %c0_5 = arith.constant 0 : index
    %5 = vector.load %arg5[%c0_3, %c0_4, %c0_5] : memref<1x32x32xbf16, #tpu.memory_space<vmem>>, vector<1x32x32xbf16>
    %6 = vector.shape_cast %5 : vector<1x32x32xbf16> to vector<32x32xbf16>
    %cst = arith.constant dense<0.000000e+00> : vector<16x32xf32>
    %7 = tpu.matmul %4, %6, %cst {dimension_numbers = #tpu.dot_dimension_numbers<[1], [0], [0], [1], [0, 0, 1, 1], [], []>} : vector<16x32xbf16>, vector<32x32xbf16>, vector<16x32xf32> -> vector<16x32xf32>
    %c0_6 = arith.constant 0 : index
    %c0_7 = arith.constant 0 : index
    %c0_8 = arith.constant 0 : index
    %8 = vector.load %arg6[%c0_6, %c0_7, %c0_8] : memref<1x1x32xf32, #tpu.memory_space<vmem>>, vector<1x1x32xf32>
    %9 = vector.shape_cast %8 : vector<1x1x32xf32> to vector<1x32xf32>
    %10 = vector.broadcast %9 : vector<1x32xf32> to vector<16x32xf32>
    %11 = arith.addf %7, %10 : vector<16x32xf32>
    %cst_9 = arith.constant 0.353553385 : f32
    %12 = vector.broadcast %cst_9 : f32 to vector<16x32xf32>
    %13 = arith.mulf %11, %12 : vector<16x32xf32>
    %c0_10 = arith.constant 0 : index
    %c0_11 = arith.constant 0 : index
    %c0_12 = arith.constant 0 : index
    %14 = vector.load %arg7[%c0_10, %c0_11, %c0_12] : memref<1x32x32xbf16, #tpu.memory_space<vmem>>, vector<1x32x32xbf16>
    %15 = vector.shape_cast %14 : vector<1x32x32xbf16> to vector<32x32xbf16>
    %cst_13 = arith.constant dense<0.000000e+00> : vector<16x32xf32>
    %16 = tpu.matmul %4, %15, %cst_13 {dimension_numbers = #tpu.dot_dimension_numbers<[1], [0], [0], [1], [0, 0, 1, 1], [], []>} : vector<16x32xbf16>, vector<32x32xbf16>, vector<16x32xf32> -> vector<16x32xf32>
    %c0_14 = arith.constant 0 : index
    %c0_15 = arith.constant 0 : index
    %c0_16 = arith.constant 0 : index
    %17 = vector.load %arg8[%c0_14, %c0_15, %c0_16] : memref<1x1x32xf32, #tpu.memory_space<vmem>>, vector<1x1x32xf32>
    %18 = vector.shape_cast %17 : vector<1x1x32xf32> to vector<1x32xf32>
    %19 = vector.broadcast %18 : vector<1x32xf32> to vector<16x32xf32>
    %20 = arith.addf %16, %19 : vector<16x32xf32>
    %c0_17 = arith.constant 0 : index
    %c0_18 = arith.constant 0 : index
    %c0_19 = arith.constant 0 : index
    %21 = vector.load %arg9[%c0_17, %c0_18, %c0_19] : memref<1x32x32xbf16, #tpu.memory_space<vmem>>, vector<1x32x32xbf16>
    %22 = vector.shape_cast %21 : vector<1x32x32xbf16> to vector<32x32xbf16>
    %cst_20 = arith.constant dense<0.000000e+00> : vector<16x32xf32>
    %23 = tpu.matmul %4, %22, %cst_20 {dimension_numbers = #tpu.dot_dimension_numbers<[1], [0], [0], [1], [0, 0, 1, 1], [], []>} : vector<16x32xbf16>, vector<32x32xbf16>, vector<16x32xf32> -> vector<16x32xf32>
    %c0_21 = arith.constant 0 : index
    %c0_22 = arith.constant 0 : index
    %c0_23 = arith.constant 0 : index
    %24 = vector.load %arg10[%c0_21, %c0_22, %c0_23] : memref<1x1x32xf32, #tpu.memory_space<vmem>>, vector<1x1x32xf32>
    %25 = vector.shape_cast %24 : vector<1x1x32xf32> to vector<1x32xf32>
    %26 = vector.broadcast %25 : vector<1x32xf32> to vector<16x32xf32>
    %27 = arith.addf %23, %26 : vector<16x32xf32>
    %28 = arith.truncf %13 : vector<16x32xf32> to vector<16x32xbf16>
    %29 = arith.truncf %20 : vector<16x32xf32> to vector<16x32xbf16>
    %30 = arith.truncf %27 : vector<16x32xf32> to vector<16x32xbf16>
    %31 = vector.extract_strided_slice %28 {offsets = [0, 0], sizes = [16, 8], strides = [1, 1]} : vector<16x32xbf16> to vector<16x8xbf16>
    %32 = vector.extract_strided_slice %29 {offsets = [0, 0], sizes = [16, 8], strides = [1, 1]} : vector<16x32xbf16> to vector<16x8xbf16>
    %cst_24 = arith.constant dense<0.000000e+00> : vector<16x16xf32>
    %33 = tpu.matmul %31, %32, %cst_24 {dimension_numbers = #tpu.dot_dimension_numbers<[1], [1], [0], [0], [0, 0, 1, 0], [], []>} : vector<16x8xbf16>, vector<16x8xbf16>, vector<16x16xf32> -> vector<16x16xf32>
    %cst_25 = arith.constant dense<0xFF800000> : vector<16xf32>
    %34 = vector.multi_reduction <maximumf>, %33, %cst_25 [1] : vector<16x16xf32> to vector<16xf32>
    %35 = vector.shape_cast %34 : vector<16xf32> to vector<16x1xf32>
    %36 = vector.broadcast %35 : vector<16x1xf32> to vector<16x16xf32>
    %37 = arith.subf %33, %36 : vector<16x16xf32>
    %38 = math.exp %37 : vector<16x16xf32>
    %cst_26 = arith.constant dense<0.000000e+00> : vector<16xf32>
    %39 = vector.multi_reduction <add>, %38, %cst_26 [1] : vector<16x16xf32> to vector<16xf32>
    %40 = vector.shape_cast %39 : vector<16xf32> to vector<16x1xf32>
    %41 = arith.truncf %38 : vector<16x16xf32> to vector<16x16xbf16>
    %42 = vector.extract_strided_slice %30 {offsets = [0, 0], sizes = [16, 8], strides = [1, 1]} : vector<16x32xbf16> to vector<16x8xbf16>
    %cst_27 = arith.constant dense<0.000000e+00> : vector<16x8xf32>
    %43 = tpu.matmul %41, %42, %cst_27 {dimension_numbers = #tpu.dot_dimension_numbers<[1], [0], [0], [1], [0, 0, 1, 1], [], []>} : vector<16x16xbf16>, vector<16x8xbf16>, vector<16x8xf32> -> vector<16x8xf32>
    %44 = tpu.reciprocal %40 {approx = true} : vector<16x1xf32> -> vector<16x1xf32>
    %45 = vector.broadcast %44 : vector<16x1xf32> to vector<16x8xf32>
    %46 = arith.mulf %43, %45 : vector<16x8xf32>
    %47 = arith.truncf %46 : vector<16x8xf32> to vector<16x8xbf16>
    %48 = vector.extract_strided_slice %28 {offsets = [0, 8], sizes = [16, 8], strides = [1, 1]} : vector<16x32xbf16> to vector<16x8xbf16>
    %49 = vector.extract_strided_slice %29 {offsets = [0, 8], sizes = [16, 8], strides = [1, 1]} : vector<16x32xbf16> to vector<16x8xbf16>
    %cst_28 = arith.constant dense<0.000000e+00> : vector<16x16xf32>
    %50 = tpu.matmul %48, %49, %cst_28 {dimension_numbers = #tpu.dot_dimension_numbers<[1], [1], [0], [0], [0, 0, 1, 0], [], []>} : vector<16x8xbf16>, vector<16x8xbf16>, vector<16x16xf32> -> vector<16x16xf32>
    %cst_29 = arith.constant dense<0xFF800000> : vector<16xf32>
    %51 = vector.multi_reduction <maximumf>, %50, %cst_29 [1] : vector<16x16xf32> to vector<16xf32>
    %52 = vector.shape_cast %51 : vector<16xf32> to vector<16x1xf32>
    %53 = vector.broadcast %52 : vector<16x1xf32> to vector<16x16xf32>
    %54 = arith.subf %50, %53 : vector<16x16xf32>
    %55 = math.exp %54 : vector<16x16xf32>
    %cst_30 = arith.constant dense<0.000000e+00> : vector<16xf32>
    %56 = vector.multi_reduction <add>, %55, %cst_30 [1] : vector<16x16xf32> to vector<16xf32>
    %57 = vector.shape_cast %56 : vector<16xf32> to vector<16x1xf32>
    %58 = arith.truncf %55 : vector<16x16xf32> to vector<16x16xbf16>
    %59 = vector.extract_strided_slice %30 {offsets = [0, 8], sizes = [16, 8], strides = [1, 1]} : vector<16x32xbf16> to vector<16x8xbf16>
    %cst_31 = arith.constant dense<0.000000e+00> : vector<16x8xf32>
    %60 = tpu.matmul %58, %59, %cst_31 {dimension_numbers = #tpu.dot_dimension_numbers<[1], [0], [0], [1], [0, 0, 1, 1], [], []>} : vector<16x16xbf16>, vector<16x8xbf16>, vector<16x8xf32> -> vector<16x8xf32>
    %61 = tpu.reciprocal %57 {approx = true} : vector<16x1xf32> -> vector<16x1xf32>
    %62 = vector.broadcast %61 : vector<16x1xf32> to vector<16x8xf32>
    %63 = arith.mulf %60, %62 : vector<16x8xf32>
    %64 = arith.truncf %63 : vector<16x8xf32> to vector<16x8xbf16>
    %65 = vector.extract_strided_slice %28 {offsets = [0, 16], sizes = [16, 8], strides = [1, 1]} : vector<16x32xbf16> to vector<16x8xbf16>
    %66 = vector.extract_strided_slice %29 {offsets = [0, 16], sizes = [16, 8], strides = [1, 1]} : vector<16x32xbf16> to vector<16x8xbf16>
    %cst_32 = arith.constant dense<0.000000e+00> : vector<16x16xf32>
    %67 = tpu.matmul %65, %66, %cst_32 {dimension_numbers = #tpu.dot_dimension_numbers<[1], [1], [0], [0], [0, 0, 1, 0], [], []>} : vector<16x8xbf16>, vector<16x8xbf16>, vector<16x16xf32> -> vector<16x16xf32>
    %cst_33 = arith.constant dense<0xFF800000> : vector<16xf32>
    %68 = vector.multi_reduction <maximumf>, %67, %cst_33 [1] : vector<16x16xf32> to vector<16xf32>
    %69 = vector.shape_cast %68 : vector<16xf32> to vector<16x1xf32>
    %70 = vector.broadcast %69 : vector<16x1xf32> to vector<16x16xf32>
    %71 = arith.subf %67, %70 : vector<16x16xf32>
    %72 = math.exp %71 : vector<16x16xf32>
    %cst_34 = arith.constant dense<0.000000e+00> : vector<16xf32>
    %73 = vector.multi_reduction <add>, %72, %cst_34 [1] : vector<16x16xf32> to vector<16xf32>
    %74 = vector.shape_cast %73 : vector<16xf32> to vector<16x1xf32>
    %75 = arith.truncf %72 : vector<16x16xf32> to vector<16x16xbf16>
    %76 = vector.extract_strided_slice %30 {offsets = [0, 16], sizes = [16, 8], strides = [1, 1]} : vector<16x32xbf16> to vector<16x8xbf16>
    %cst_35 = arith.constant dense<0.000000e+00> : vector<16x8xf32>
    %77 = tpu.matmul %75, %76, %cst_35 {dimension_numbers = #tpu.dot_dimension_numbers<[1], [0], [0], [1], [0, 0, 1, 1], [], []>} : vector<16x16xbf16>, vector<16x8xbf16>, vector<16x8xf32> -> vector<16x8xf32>
    %78 = tpu.reciprocal %74 {approx = true} : vector<16x1xf32> -> vector<16x1xf32>
    %79 = vector.broadcast %78 : vector<16x1xf32> to vector<16x8xf32>
    %80 = arith.mulf %77, %79 : vector<16x8xf32>
    %81 = arith.truncf %80 : vector<16x8xf32> to vector<16x8xbf16>
    %82 = vector.extract_strided_slice %28 {offsets = [0, 24], sizes = [16, 8], strides = [1, 1]} : vector<16x32xbf16> to vector<16x8xbf16>
    %83 = vector.extract_strided_slice %29 {offsets = [0, 24], sizes = [16, 8], strides = [1, 1]} : vector<16x32xbf16> to vector<16x8xbf16>
    %cst_36 = arith.constant dense<0.000000e+00> : vector<16x16xf32>
    %84 = tpu.matmul %82, %83, %cst_36 {dimension_numbers = #tpu.dot_dimension_numbers<[1], [1], [0], [0], [0, 0, 1, 0], [], []>} : vector<16x8xbf16>, vector<16x8xbf16>, vector<16x16xf32> -> vector<16x16xf32>
    %cst_37 = arith.constant dense<0xFF800000> : vector<16xf32>
    %85 = vector.multi_reduction <maximumf>, %84, %cst_37 [1] : vector<16x16xf32> to vector<16xf32>
    %86 = vector.shape_cast %85 : vector<16xf32> to vector<16x1xf32>
    %87 = vector.broadcast %86 : vector<16x1xf32> to vector<16x16xf32>
    %88 = arith.subf %84, %87 : vector<16x16xf32>
    %89 = math.exp %88 : vector<16x16xf32>
    %cst_38 = arith.constant dense<0.000000e+00> : vector<16xf32>
    %90 = vector.multi_reduction <add>, %89, %cst_38 [1] : vector<16x16xf32> to vector<16xf32>
    %91 = vector.shape_cast %90 : vector<16xf32> to vector<16x1xf32>
    %92 = arith.truncf %89 : vector<16x16xf32> to vector<16x16xbf16>
    %93 = vector.extract_strided_slice %30 {offsets = [0, 24], sizes = [16, 8], strides = [1, 1]} : vector<16x32xbf16> to vector<16x8xbf16>
    %cst_39 = arith.constant dense<0.000000e+00> : vector<16x8xf32>
    %94 = tpu.matmul %92, %93, %cst_39 {dimension_numbers = #tpu.dot_dimension_numbers<[1], [0], [0], [1], [0, 0, 1, 1], [], []>} : vector<16x16xbf16>, vector<16x8xbf16>, vector<16x8xf32> -> vector<16x8xf32>
    %95 = tpu.reciprocal %91 {approx = true} : vector<16x1xf32> -> vector<16x1xf32>
    %96 = vector.broadcast %95 : vector<16x1xf32> to vector<16x8xf32>
    %97 = arith.mulf %94, %96 : vector<16x8xf32>
    %98 = arith.truncf %97 : vector<16x8xf32> to vector<16x8xbf16>
    %99 = tpu.concatenate %47, %64, %81, %98 in 1 : vector<16x8xbf16>, vector<16x8xbf16>, vector<16x8xbf16>, vector<16x8xbf16> -> vector<16x32xbf16>
    %c0_40 = arith.constant 0 : index
    %c0_41 = arith.constant 0 : index
    %100 = vector.load %arg20[%c0_40, %c0_41] : memref<16x32xf32, #tpu.memory_space<vmem>>, vector<16x32xf32>
    %c0_42 = arith.constant 0 : index
    %c0_43 = arith.constant 0 : index
    %c0_44 = arith.constant 0 : index
    %101 = vector.load %arg11[%c0_42, %c0_43, %c0_44] : memref<1x32x32xbf16, #tpu.memory_space<vmem>>, vector<1x32x32xbf16>
    %102 = vector.shape_cast %101 : vector<1x32x32xbf16> to vector<32x32xbf16>
    %cst_45 = arith.constant dense<0.000000e+00> : vector<16x32xf32>
    %103 = tpu.matmul %99, %102, %cst_45 {dimension_numbers = #tpu.dot_dimension_numbers<[1], [0], [0], [1], [0, 0, 1, 1], [], []>} : vector<16x32xbf16>, vector<32x32xbf16>, vector<16x32xf32> -> vector<16x32xf32>
    %104 = arith.addf %100, %103 : vector<16x32xf32>
    %c0_46 = arith.constant 0 : index
    %c0_47 = arith.constant 0 : index
    %105 = vector.load %arg20[%c0_46, %c0_47] : memref<16x32xf32, #tpu.memory_space<vmem>>, vector<16x32xf32>
    tpu.vector_store %arg20[%c0_46, %c0_47], %104 {strides = array<i32>} : memref<16x32xf32, #tpu.memory_space<vmem>>, vector<16x32xf32>,
    %c0_i32_48 = arith.constant 0 : i32
    %106 = arith.cmpi eq, %arg2, %c0_i32_48 : i32
    %107 = arith.extui %106 : i1 to i32
    %c0_i32_49 = arith.constant 0 : i32
    %108 = arith.cmpi ne, %107, %c0_i32_49 : i32
    scf.if %108 {
      %c0_50 = arith.constant 0 : index
      %c0_51 = arith.constant 0 : index
      %c0_52 = arith.constant 0 : index
      %109 = vector.load %arg3[%c0_50, %c0_51, %c0_52] : memref<1x16x32xf32, #tpu.memory_space<vmem>>, vector<1x16x32xf32>
      %110 = vector.shape_cast %109 : vector<1x16x32xf32> to vector<16x32xf32>
      %c0_53 = arith.constant 0 : index
      %c0_54 = arith.constant 0 : index
      %111 = vector.load %arg20[%c0_53, %c0_54] : memref<16x32xf32, #tpu.memory_space<vmem>>, vector<16x32xf32>
      %112 = arith.addf %110, %111 : vector<16x32xf32>
      %c0_55 = arith.constant 0 : index
      %c0_56 = arith.constant 0 : index
      %113 = vector.load %arg12[%c0_55, %c0_56] : memref<1x32xf32, #tpu.memory_space<vmem>>, vector<1x32xf32>
      %114 = vector.broadcast %113 : vector<1x32xf32> to vector<16x32xf32>
      %115 = arith.addf %112, %114 : vector<16x32xf32>
      %c0_57 = arith.constant 0 : index
      %c0_58 = arith.constant 0 : index
      %116 = vector.load %arg13[%c0_57, %c0_58] : memref<1x32xf32, #tpu.memory_space<vmem>>, vector<1x32xf32>
      %c0_59 = arith.constant 0 : index
      %c0_60 = arith.constant 0 : index
      %117 = vector.load %arg14[%c0_59, %c0_60] : memref<1x32xf32, #tpu.memory_space<vmem>>, vector<1x32xf32>
      %cst_61 = arith.constant dense<0.000000e+00> : vector<16xf32>
      %118 = vector.multi_reduction <add>, %115, %cst_61 [1] : vector<16x32xf32> to vector<16xf32>
      %119 = vector.shape_cast %118 : vector<16xf32> to vector<16x1xf32>
      %cst_62 = arith.constant 3.200000e+01 : f32
      %120 = vector.broadcast %cst_62 : f32 to vector<16x1xf32>
      %121 = arith.divf %119, %120 : vector<16x1xf32>
      %122 = vector.broadcast %121 : vector<16x1xf32> to vector<16x32xf32>
      %123 = arith.subf %115, %122 : vector<16x32xf32>
      %124 = arith.mulf %123, %123 : vector<16x32xf32>
      %cst_63 = arith.constant dense<0.000000e+00> : vector<16xf32>
      %125 = vector.multi_reduction <add>, %124, %cst_63 [1] : vector<16x32xf32> to vector<16xf32>
      %126 = vector.shape_cast %125 : vector<16xf32> to vector<16x1xf32>
      %cst_64 = arith.constant 3.200000e+01 : f32
      %127 = vector.broadcast %cst_64 : f32 to vector<16x1xf32>
      %128 = arith.divf %126, %127 : vector<16x1xf32>
      %cst_65 = arith.constant 9.99999997E-7 : f32
      %129 = vector.broadcast %cst_65 : f32 to vector<16x1xf32>
      %130 = arith.addf %128, %129 : vector<16x1xf32>
      %131 = math.rsqrt %130 : vector<16x1xf32>
      %132 = vector.broadcast %131 : vector<16x1xf32> to vector<16x32xf32>
      %133 = arith.mulf %123, %132 : vector<16x32xf32>
      %134 = vector.broadcast %116 : vector<1x32xf32> to vector<16x32xf32>
      %135 = arith.mulf %133, %134 : vector<16x32xf32>
      %136 = vector.broadcast %117 : vector<1x32xf32> to vector<16x32xf32>
      %137 = arith.addf %135, %136 : vector<16x32xf32>
      %138 = arith.truncf %137 : vector<16x32xf32> to vector<16x32xbf16>
      %cst_66 = arith.constant 0.000000e+00 : f32
      %139 = vector.broadcast %cst_66 : f32 to vector<16x32xf32>
      %c0_67 = arith.constant 0 : index
      %c0_68 = arith.constant 0 : index
      %140 = vector.load %arg15[%c0_67, %c0_68] : memref<32x64xbf16, #tpu.memory_space<vmem>>, vector<32x64xbf16>
      %cst_69 = arith.constant dense<0.000000e+00> : vector<16x64xf32>
      %141 = tpu.matmul %138, %140, %cst_69 {dimension_numbers = #tpu.dot_dimension_numbers<[1], [0], [0], [1], [0, 0, 1, 1], [], []>} : vector<16x32xbf16>, vector<32x64xbf16>, vector<16x64xf32> -> vector<16x64xf32>
      %c0_70 = arith.constant 0 : index
      %c0_71 = arith.constant 0 : index
      %142 = vector.load %arg16[%c0_70, %c0_71] : memref<1x64xf32, #tpu.memory_space<vmem>>, vector<1x64xf32>
      %143 = vector.broadcast %142 : vector<1x64xf32> to vector<16x64xf32>
      %144 = arith.addf %141, %143 : vector<16x64xf32>
      %cst_72 = arith.constant 5.000000e-01 : f32
      %145 = vector.broadcast %cst_72 : f32 to vector<16x64xf32>
      %146 = arith.mulf %145, %144 : vector<16x64xf32>
      %cst_73 = arith.constant 4.471500e-02 : f32
      %147 = vector.broadcast %cst_73 : f32 to vector<16x64xf32>
      %148 = arith.mulf %147, %144 : vector<16x64xf32>
      %149 = arith.mulf %148, %144 : vector<16x64xf32>
      %150 = arith.mulf %149, %144 : vector<16x64xf32>
      %151 = arith.addf %144, %150 : vector<16x64xf32>
      %cst_74 = arith.constant 0.797884583 : f32
      %152 = vector.broadcast %cst_74 : f32 to vector<16x64xf32>
      %153 = arith.mulf %152, %151 : vector<16x64xf32>
      %154 = math.tanh %153 : vector<16x64xf32>
      %cst_75 = arith.constant 1.000000e+00 : f32
      %155 = vector.broadcast %cst_75 : f32 to vector<16x64xf32>
      %156 = arith.addf %155, %154 : vector<16x64xf32>
      %157 = arith.mulf %146, %156 : vector<16x64xf32>
      %158 = arith.truncf %157 : vector<16x64xf32> to vector<16x64xbf16>
      %c0_76 = arith.constant 0 : index
      %c0_77 = arith.constant 0 : index
      %159 = vector.load %arg17[%c0_76, %c0_77] : memref<64x32xbf16, #tpu.memory_space<vmem>>, vector<64x32xbf16>
      %cst_78 = arith.constant dense<0.000000e+00> : vector<16x32xf32>
      %160 = tpu.matmul %158, %159, %cst_78 {dimension_numbers = #tpu.dot_dimension_numbers<[1], [0], [0], [1], [0, 0, 1, 1], [], []>} : vector<16x64xbf16>, vector<64x32xbf16>, vector<16x32xf32> -> vector<16x32xf32>
      %161 = arith.addf %139, %160 : vector<16x32xf32>
      %162 = arith.addf %115, %161 : vector<16x32xf32>
      %c0_79 = arith.constant 0 : index
      %c0_80 = arith.constant 0 : index
      %163 = vector.load %arg18[%c0_79, %c0_80] : memref<1x32xf32, #tpu.memory_space<vmem>>, vector<1x32xf32>
      %164 = vector.broadcast %163 : vector<1x32xf32> to vector<16x32xf32>
      %165 = arith.addf %162, %164 : vector<16x32xf32>
      %c0_81 = arith.constant 0 : index
      %c0_82 = arith.constant 0 : index
      %c0_83 = arith.constant 0 : index
      %166 = vector.load %arg19[%c0_81, %c0_82, %c0_83] : memref<1x16x32xf32, #tpu.memory_space<vmem>>, vector<1x16x32xf32>
      %167 = vector.shape_cast %166 : vector<1x16x32xf32> to vector<16x32xf32>
      %168 = vector.shape_cast %165 : vector<16x32xf32> to vector<1x16x32xf32>
      tpu.vector_store %arg19[%c0_81, %c0_82, %c0_83], %168 {strides = array<i32>} : memref<1x16x32xf32, #tpu.memory_space<vmem>>, vector<1x16x32xf32>,
    } else {
    }
    return
  }
  func.func @transform_0(%arg0: i32, %arg1: i32, %arg2: i32) -> (i32, i32, i32) {
    %c0_i32 = arith.constant 0 : i32
    %c0_i32_0 = arith.constant 0 : i32
    return %arg0, %arg1, %c0_i32 : i32, i32, i32
  }
  func.func @transform_1(%arg0: i32, %arg1: i32, %arg2: i32) -> (i32, i32, i32) {
    %c0_i32 = arith.constant 0 : i32
    %c0_i32_0 = arith.constant 0 : i32
    %c0_i32_1 = arith.constant 0 : i32
    return %arg0, %c0_i32, %c0_i32_0 : i32, i32, i32
  }
  func.func @transform_2(%arg0: i32, %arg1: i32, %arg2: i32) -> (i32, i32, i32) {
    %c0_i32 = arith.constant 0 : i32
    %c0_i32_0 = arith.constant 0 : i32
    %c0_i32_1 = arith.constant 0 : i32
    return %arg2, %c0_i32, %c0_i32_0 : i32, i32, i32
  }
  func.func @transform_3(%arg0: i32, %arg1: i32, %arg2: i32) -> (i32, i32, i32) {
    %c0_i32 = arith.constant 0 : i32
    %c0_i32_0 = arith.constant 0 : i32
    %c0_i32_1 = arith.constant 0 : i32
    return %arg2, %c0_i32, %c0_i32_0 : i32, i32, i32
  }
  func.func @transform_4(%arg0: i32, %arg1: i32, %arg2: i32) -> (i32, i32, i32) {
    %c0_i32 = arith.constant 0 : i32
    %c0_i32_0 = arith.constant 0 : i32
    %c0_i32_1 = arith.constant 0 : i32
    return %arg2, %c0_i32, %c0_i32_0 : i32, i32, i32
  }
  func.func @transform_5(%arg0: i32, %arg1: i32, %arg2: i32) -> (i32, i32, i32) {
    %c0_i32 = arith.constant 0 : i32
    %c0_i32_0 = arith.constant 0 : i32
    %c0_i32_1 = arith.constant 0 : i32
    return %arg2, %c0_i32, %c0_i32_0 : i32, i32, i32
  }
  func.func @transform_6(%arg0: i32, %arg1: i32, %arg2: i32) -> (i32, i32, i32) {
    %c0_i32 = arith.constant 0 : i32
    %c0_i32_0 = arith.constant 0 : i32
    %c0_i32_1 = arith.constant 0 : i32
    return %arg2, %c0_i32, %c0_i32_0 : i32, i32, i32
  }
  func.func @transform_7(%arg0: i32, %arg1: i32, %arg2: i32) -> (i32, i32, i32) {
    %c0_i32 = arith.constant 0 : i32
    %c0_i32_0 = arith.constant 0 : i32
    %c0_i32_1 = arith.constant 0 : i32
    return %arg2, %c0_i32, %c0_i32_0 : i32, i32, i32
  }
  func.func @transform_8(%arg0: i32, %arg1: i32, %arg2: i32) -> (i32, i32, i32) {
    %c0_i32 = arith.constant 0 : i32
    %c0_i32_0 = arith.constant 0 : i32
    %c0_i32_1 = arith.constant 0 : i32
    return %arg2, %c0_i32, %c0_i32_0 : i32, i32, i32
  }
  func.func @transform_9(%arg0: i32, %arg1: i32, %arg2: i32) -> (i32, i32) {
    %c0_i32 = arith.constant 0 : i32
    %c0_i32_0 = arith.constant 0 : i32
    %c0_i32_1 = arith.constant 0 : i32
    return %c0_i32, %c0_i32_0 : i32, i32
  }
  func.func @transform_10(%arg0: i32, %arg1: i32, %arg2: i32) -> (i32, i32) {
    %c0_i32 = arith.constant 0 : i32
    %c0_i32_0 = arith.constant 0 : i32
    %c0_i32_1 = arith.constant 0 : i32
    return %c0_i32, %c0_i32_0 : i32, i32
  }
  func.func @transform_11(%arg0: i32, %arg1: i32, %arg2: i32) -> (i32, i32) {
    %c0_i32 = arith.constant 0 : i32
    %c0_i32_0 = arith.constant 0 : i32
    %c0_i32_1 = arith.constant 0 : i32
    return %c0_i32, %c0_i32_0 : i32, i32
  }
  func.func @transform_12(%arg0: i32, %arg1: i32, %arg2: i32) -> (i32, i32) {
    %c0_i32 = arith.constant 0 : i32
    %c0_i32_0 = arith.constant 0 : i32
    %c0_i32_1 = arith.constant 0 : i32
    return %c0_i32, %c0_i32_0 : i32, i32
  }
  func.func @transform_13(%arg0: i32, %arg1: i32, %arg2: i32) -> (i32, i32) {
    %c0_i32 = arith.constant 0 : i32
    %c0_i32_0 = arith.constant 0 : i32
    %c0_i32_1 = arith.constant 0 : i32
    return %c0_i32, %c0_i32_0 : i32, i32
  }
  func.func @transform_14(%arg0: i32, %arg1: i32, %arg2: i32) -> (i32, i32) {
    %c0_i32 = arith.constant 0 : i32
    %c0_i32_0 = arith.constant 0 : i32
    %c0_i32_1 = arith.constant 0 : i32
    return %c0_i32, %c0_i32_0 : i32, i32
  }
  func.func @transform_15(%arg0: i32, %arg1: i32, %arg2: i32) -> (i32, i32) {
    %c0_i32 = arith.constant 0 : i32
    %c0_i32_0 = arith.constant 0 : i32
    %c0_i32_1 = arith.constant 0 : i32
    return %c0_i32, %c0_i32_0 : i32, i32
  }
  func.func @transform_16(%arg0: i32, %arg1: i32, %arg2: i32) -> (i32, i32, i32) {
    %c0_i32 = arith.constant 0 : i32
    %c0_i32_0 = arith.constant 0 : i32
    return %arg0, %arg1, %c0_i32 : i32, i32, i32
  }
}

</mosaic_0001>

<llo_original>
// kernel: tpu_custom_call.1
$region0: #{tpu_custom_call.1}
  #allocation0 [shape = 'u32[]', space=smem, size = 0x4, offset = 0x4, fixed_abs, tag = 'smem constant byte address 0x4 - core index']
  #allocation1 [shape = 'u32[72,128]{1,0:T(1,128)}', space=vmem, size = 0x9000, scoped, tag = 'internal scratch']
  #allocation2 [shape = 'f32[16,32]{1,0:T(8,128)}', space=vmem, size = 0x2000, scoped, tag = 'scratch operand']
  %s0 = inlined_call_operand.vmem [shape: f32[2,16,32], index: 0, kind: input, shape index: {}]
  %s1 = inlined_call_operand.vmem [shape: bf16[2,16,32], index: 1, kind: input, shape index: {}]
  %s2 = inlined_call_operand.hbm [shape: bf16[1,32,32], index: 2, kind: input, shape index: {}]
  %s3 = inlined_call_operand.vmem [shape: f32[1,1,32], index: 3, kind: input, shape index: {}]
  %s4 = inlined_call_operand.hbm [shape: bf16[1,32,32], index: 4, kind: input, shape index: {}]
  %s5 = inlined_call_operand.vmem [shape: f32[1,1,32], index: 5, kind: input, shape index: {}]
  %s6 = inlined_call_operand.hbm [shape: bf16[1,32,32], index: 6, kind: input, shape index: {}]
  %s7 = inlined_call_operand.vmem [shape: f32[1,1,32], index: 7, kind: input, shape index: {}]
  %s8 = inlined_call_operand.hbm [shape: bf16[1,32,32], index: 8, kind: input, shape index: {}]
  %s9 = inlined_call_operand.vmem [shape: f32[1,32], index: 9, kind: input, shape index: {}]
  %s10 = inlined_call_operand.vmem [shape: f32[1,32], index: 10, kind: input, shape index: {}]
  %s11 = inlined_call_operand.vmem [shape: f32[1,32], index: 11, kind: input, shape index: {}]
  %s12 = inlined_call_operand.hbm [shape: bf16[32,64], index: 12, kind: input, shape index: {}]
  %s13 = inlined_call_operand.vmem [shape: f32[1,64], index: 13, kind: input, shape index: {}]
  %s14 = inlined_call_operand.vmem [shape: bf16[64,32], index: 14, kind: input, shape index: {}]
  %s15 = inlined_call_operand.vmem [shape: f32[1,32], index: 15, kind: input, shape index: {}]
  %s16 = inlined_call_operand.hbm [shape: f32[2,16,32], index: 16, kind: output, shape index: {}]
  %s17 = sld [smem:[#allocation0]]
  $region125: #{tpu_custom_call.1} parent=0
    _
  %s19 = ssub.s32 1, %s17
  %s20 = scalar_select 0, %s19, %s17
  $region1: #{tpu_custom_call.1} parent=0
    #allocation3 [shape = 'u8[8192]{0}', space=vmem, size = 0x2000, scoped, tag = 'input window, operand 2, single buffered']
    #allocation4 [shape = 's32[2]{0}', space=sflag, size = 0x8, scoped, tag = 'scoped memory for tpu_custom_call.1']
    #allocation5 [shape = 's32[2]{0}', space=sflag, size = 0x8, scoped, tag = 'scoped memory for tpu_custom_call.1']
    #allocation6 [shape = 'u8[8192]{0}', space=vmem, size = 0x2000, scoped, tag = 'input window, operand 4, single buffered']
    #allocation7 [shape = 's32[1]{0}', space=sflag, size = 0x4, scoped, tag = 'scoped memory for tpu_custom_call.1']
    #allocation8 [shape = 'u8[8192]{0}', space=vmem, size = 0x2000, scoped, tag = 'input window, operand 6, single buffered']
    #allocation9 [shape = 'u8[8192]{0}', space=vmem, size = 0x2000, scoped, tag = 'input window, operand 8, single buffered']
    #allocation10 [shape = 's32[1]{0}', space=sflag, size = 0x4, scoped, tag = 'scoped memory for tpu_custom_call.1']
    #allocation11 [shape = 'u8[8192]{0}', space=vmem, size = 0x2000, scoped, tag = 'input window, operand 12, single buffered']
    #allocation12 [shape = 'u8[16384]{0}', space=vmem, size = 0x4000, scoped, tag = 'output window, operand 0']
    %21 = vsyncpa [#allocation4], 0
    %22 = vsyncpa [#allocation7], 0
    %23 = vsyncpa [#allocation10], 0
    %24 = vsyncpa [#allocation5], 0
    %s25 = scalar_lea.sflag [#allocation5], 1
    %26 = vsyncpa %s25, 0
    loop: start=0, step=1, limit=4
    $region2: #{tpu_custom_call.1} parent=1 // loop_pre_header
      _
    $region3: #{tpu_custom_call.1} parent=1 // loop_header
      %s28 = sphi 0, %s32
      %p29 = scmp.ge.s32.totalorder %s28, 4
      %s35 = sphi 0, %s54
      %s36 = sphi 0, %s50
      %s37 = sphi 0, %s46
      %s38 = sphi 0, %s35
      %s39 = sphi 0, %s36
      %s40 = sphi 0, %s37
      %s41 = sphi 0, %s38
      %s42 = sphi 0, %s39
      %s43 = sphi 0, %s40
      %s59 = sphi 0, %s61
      %s62 = sphi 0, %s59
      %s63 = sphi 0, %s62
      %s79 = sphi 0, %s63
      %s85 = sphi 0, %s87
      %s88 = sphi 0, %s85
      %s89 = sphi 0, %s88
      %s105 = sphi 0, %s89
      %s111 = sphi 0, %s113
      %s114 = sphi 0, %s111
      %s115 = sphi 0, %s114
      %s131 = sphi 0, %s115
      %s137 = sphi 0, %s139
      %s140 = sphi 0, %s137
      %s141 = sphi 0, %s140
      %s157 = sphi 0, %s141
      %s163 = sphi 0, %s165
      %s166 = sphi 0, %s163
      %s167 = sphi 0, %s166
      %s183 = sphi 0, %s167
      %s189 = sphi 0, %s191
      %s192 = sphi 0, %s189
      %s193 = sphi 0, %s192
      %s209 = sphi 0, %s193
      %s215 = sphi 0, %s217
      %s218 = sphi 0, %s215
      %s219 = sphi 0, %s218
      %s235 = sphi 0, %s219
      %s241 = sphi 0, %s243
      %s244 = sphi 0, %s241
      %s245 = sphi 0, %s244
      %s261 = sphi 0, %s245
      %s267 = sphi 0, %s269
      %s270 = sphi 0, %s267
      %s271 = sphi 0, %s270
      %s287 = sphi 0, %s271
      %s291 = sphi 0, %s291
      %s293 = sphi 0, %s291
      %s294 = sphi 0, %s293
      %s308 = sphi 0, %s294
      %s312 = sphi 0, %s312
      %s314 = sphi 0, %s312
      %s315 = sphi 0, %s314
      %s329 = sphi 0, %s315
      %s333 = sphi 0, %s333
      %s335 = sphi 0, %s333
      %s336 = sphi 0, %s335
      %s350 = sphi 0, %s336
      %s354 = sphi 0, %s354
      %s356 = sphi 0, %s354
      %s357 = sphi 0, %s356
      %s371 = sphi 0, %s357
      %s375 = sphi 0, %s375
      %s377 = sphi 0, %s375
      %s378 = sphi 0, %s377
      %s392 = sphi 0, %s378
      %s396 = sphi 0, %s396
      %s398 = sphi 0, %s396
      %s399 = sphi 0, %s398
      %s413 = sphi 0, %s399
      %s417 = sphi 0, %s417
      %s419 = sphi 0, %s417
      %s420 = sphi 0, %s419
      %s434 = sphi 0, %s420
      %s442 = sphi 0, %s444
      %s445 = sphi 0, %s442
      %s446 = sphi 0, %s445
      %s462 = sphi 0, %s446
    $region4: #{tpu_custom_call.1} parent=1 // loop_header_branch
      %31 = sbr.rel (%p29) target = $region8
    $region5: #{tpu_custom_call.1} parent=1 // loop_body
      %s33 = ssub.s32 %s28, 1
      %s34 = ssub.s32 %s28, 2
      %s44 = sadd.s32 1, %s37
      %p45 = scmp.ge.s32.totalorder %s44, 1
      %s46 = scalar_select %p45, 0, %s44
      %s47 = sadd.s32 1, %s36
      %s48 = scalar_select %p45, %s47, %s36
      %p49 = scmp.ge.s32.totalorder %s48, 1
      %s50 = scalar_select %p49, 0, %s48
      %s51 = sadd.s32 1, %s35
      %s52 = scalar_select %p49, %s51, %s35
      %p53 = scmp.ge.s32.totalorder %s52, 2
      %s54 = scalar_select %p53, 0, %s52
      %s55 = ssub.s32 %s35, %s54
      %s56 = ssub.s32 %s36, %s50
      %s57 = sor.u32 %s55, %s56
      %p58 = scmp.eq.s32.totalorder %s57, 0
      %s60 = sadd.s32 %s59, 1
      %s61 = scalar_select %p58, %s59, %s60
      %p64 = pneg %p58
      %p65 = scmp.eq.s32.totalorder %s28, 1
      %p66 = por %p64, %p65
      %p67 = scmp.ne.s32.totalorder %s59, %s62
      %p68 = scmp.eq.s32.totalorder %s28, 0
      %p69 = por %p67, %p68
      %p70 = scmp.ne.s32.totalorder %s59, %s62
      %p71 = scmp.eq.s32.totalorder %s33, 1
      %p72 = por %p70, %p71
      %p73 = scmp.ne.s32.totalorder %s62, %s63
      %p74 = scmp.eq.s32.totalorder %s33, 0
      %p75 = por %p73, %p74
      %p76 = scmp.ne.s32.totalorder %s62, %s63
      %p77 = scmp.eq.s32.totalorder %s34, 1
      %p78 = por %p76, %p77
      %p80 = scmp.ne.s32.totalorder %s63, %s79
      %p81 = scmp.eq.s32.totalorder %s34, 0
      %p82 = por %p80, %p81
      %s83 = ssub.s32 %s35, %s54
      %p84 = scmp.eq.s32.totalorder %s83, 0
      %s86 = sadd.s32 %s85, 1
      %s87 = scalar_select %p84, %s85, %s86
      %p90 = pneg %p84
      %p91 = scmp.eq.s32.totalorder %s28, 1
      %p92 = por %p90, %p91
      %p93 = scmp.ne.s32.totalorder %s85, %s88
      %p94 = scmp.eq.s32.totalorder %s28, 0
      %p95 = por %p93, %p94
      %p96 = scmp.ne.s32.totalorder %s85, %s88
      %p97 = scmp.eq.s32.totalorder %s33, 1
      %p98 = por %p96, %p97
      %p99 = scmp.ne.s32.totalorder %s88, %s89
      %p100 = scmp.eq.s32.totalorder %s33, 0
      %p101 = por %p99, %p100
      %p102 = scmp.ne.s32.totalorder %s88, %s89
      %p103 = scmp.eq.s32.totalorder %s34, 1
      %p104 = por %p102, %p103
      %p106 = scmp.ne.s32.totalorder %s89, %s105
      %p107 = scmp.eq.s32.totalorder %s34, 0
      %p108 = por %p106, %p107
      %s109 = ssub.s32 %s37, %s46
      %p110 = scmp.eq.s32.totalorder %s109, 0
      %s112 = sadd.s32 %s111, 1
      %s113 = scalar_select %p110, %s111, %s112
      %p116 = pneg %p110
      %p117 = scmp.eq.s32.totalorder %s28, 1
      %p118 = por %p116, %p117
      %p119 = scmp.ne.s32.totalorder %s111, %s114
      %p120 = scmp.eq.s32.totalorder %s28, 0
      %p121 = por %p119, %p120
      %p122 = scmp.ne.s32.totalorder %s111, %s114
      %p123 = scmp.eq.s32.totalorder %s33, 1
      %p124 = por %p122, %p123
      %p125 = scmp.ne.s32.totalorder %s114, %s115
      %p126 = scmp.eq.s32.totalorder %s33, 0
      %p127 = por %p125, %p126
      %p128 = scmp.ne.s32.totalorder %s114, %s115
      %p129 = scmp.eq.s32.totalorder %s34, 1
      %p130 = por %p128, %p129
      %p132 = scmp.ne.s32.totalorder %s115, %s131
      %p133 = scmp.eq.s32.totalorder %s34, 0
      %p134 = por %p132, %p133
      %s135 = ssub.s32 %s37, %s46
      %p136 = scmp.eq.s32.totalorder %s135, 0
      %s138 = sadd.s32 %s137, 1
      %s139 = scalar_select %p136, %s137, %s138
      %p142 = pneg %p136
      %p143 = scmp.eq.s32.totalorder %s28, 1
      %p144 = por %p142, %p143
      %p145 = scmp.ne.s32.totalorder %s137, %s140
      %p146 = scmp.eq.s32.totalorder %s28, 0
      %p147 = por %p145, %p146
      %p148 = scmp.ne.s32.totalorder %s137, %s140
      %p149 = scmp.eq.s32.totalorder %s33, 1
      %p150 = por %p148, %p149
      %p151 = scmp.ne.s32.totalorder %s140, %s141
      %p152 = scmp.eq.s32.totalorder %s33, 0
      %p153 = por %p151, %p152
      %p154 = scmp.ne.s32.totalorder %s140, %s141
      %p155 = scmp.eq.s32.totalorder %s34, 1
      %p156 = por %p154, %p155
      %p158 = scmp.ne.s32.totalorder %s141, %s157
      %p159 = scmp.eq.s32.totalorder %s34, 0
      %p160 = por %p158, %p159
      %s161 = ssub.s32 %s37, %s46
      %p162 = scmp.eq.s32.totalorder %s161, 0
      %s164 = sadd.s32 %s163, 1
      %s165 = scalar_select %p162, %s163, %s164
      %p168 = pneg %p162
      %p169 = scmp.eq.s32.totalorder %s28, 1
      %p170 = por %p168, %p169
      %p171 = scmp.ne.s32.totalorder %s163, %s166
      %p172 = scmp.eq.s32.totalorder %s28, 0
      %p173 = por %p171, %p172
      %p174 = scmp.ne.s32.totalorder %s163, %s166
      %p175 = scmp.eq.s32.totalorder %s33, 1
      %p176 = por %p174, %p175
      %p177 = scmp.ne.s32.totalorder %s166, %s167
      %p178 = scmp.eq.s32.totalorder %s33, 0
      %p179 = por %p177, %p178
      %p180 = scmp.ne.s32.totalorder %s166, %s167
      %p181 = scmp.eq.s32.totalorder %s34, 1
      %p182 = por %p180, %p181
      %p184 = scmp.ne.s32.totalorder %s167, %s183
      %p185 = scmp.eq.s32.totalorder %s34, 0
      %p186 = por %p184, %p185
      %s187 = ssub.s32 %s37, %s46
      %p188 = scmp.eq.s32.totalorder %s187, 0
      %s190 = sadd.s32 %s189, 1
      %s191 = scalar_select %p188, %s189, %s190
      %p194 = pneg %p188
      %p195 = scmp.eq.s32.totalorder %s28, 1
      %p196 = por %p194, %p195
      %p197 = scmp.ne.s32.totalorder %s189, %s192
      %p198 = scmp.eq.s32.totalorder %s28, 0
      %p199 = por %p197, %p198
      %p200 = scmp.ne.s32.totalorder %s189, %s192
      %p201 = scmp.eq.s32.totalorder %s33, 1
      %p202 = por %p200, %p201
      %p203 = scmp.ne.s32.totalorder %s192, %s193
      %p204 = scmp.eq.s32.totalorder %s33, 0
      %p205 = por %p203, %p204
      %p206 = scmp.ne.s32.totalorder %s192, %s193
      %p207 = scmp.eq.s32.totalorder %s34, 1
      %p208 = por %p206, %p207
      %p210 = scmp.ne.s32.totalorder %s193, %s209
      %p211 = scmp.eq.s32.totalorder %s34, 0
      %p212 = por %p210, %p211
      %s213 = ssub.s32 %s37, %s46
      %p214 = scmp.eq.s32.totalorder %s213, 0
      %s216 = sadd.s32 %s215, 1
      %s217 = scalar_select %p214, %s215, %s216
      %p220 = pneg %p214
      %p221 = scmp.eq.s32.totalorder %s28, 1
      %p222 = por %p220, %p221
      %p223 = scmp.ne.s32.totalorder %s215, %s218
      %p224 = scmp.eq.s32.totalorder %s28, 0
      %p225 = por %p223, %p224
      %p226 = scmp.ne.s32.totalorder %s215, %s218
      %p227 = scmp.eq.s32.totalorder %s33, 1
      %p228 = por %p226, %p227
      %p229 = scmp.ne.s32.totalorder %s218, %s219
      %p230 = scmp.eq.s32.totalorder %s33, 0
      %p231 = por %p229, %p230
      %p232 = scmp.ne.s32.totalorder %s218, %s219
      %p233 = scmp.eq.s32.totalorder %s34, 1
      %p234 = por %p232, %p233
      %p236 = scmp.ne.s32.totalorder %s219, %s235
      %p237 = scmp.eq.s32.totalorder %s34, 0
      %p238 = por %p236, %p237
      %s239 = ssub.s32 %s37, %s46
      %p240 = scmp.eq.s32.totalorder %s239, 0
      %s242 = sadd.s32 %s241, 1
      %s243 = scalar_select %p240, %s241, %s242
      %p246 = pneg %p240
      %p247 = scmp.eq.s32.totalorder %s28, 1
      %p248 = por %p246, %p247
      %p249 = scmp.ne.s32.totalorder %s241, %s244
      %p250 = scmp.eq.s32.totalorder %s28, 0
      %p251 = por %p249, %p250
      %p252 = scmp.ne.s32.totalorder %s241, %s244
      %p253 = scmp.eq.s32.totalorder %s33, 1
      %p254 = por %p252, %p253
      %p255 = scmp.ne.s32.totalorder %s244, %s245
      %p256 = scmp.eq.s32.totalorder %s33, 0
      %p257 = por %p255, %p256
      %p258 = scmp.ne.s32.totalorder %s244, %s245
      %p259 = scmp.eq.s32.totalorder %s34, 1
      %p260 = por %p258, %p259
      %p262 = scmp.ne.s32.totalorder %s245, %s261
      %p263 = scmp.eq.s32.totalorder %s34, 0
      %p264 = por %p262, %p263
      %s265 = ssub.s32 %s37, %s46
      %p266 = scmp.eq.s32.totalorder %s265, 0
      %s268 = sadd.s32 %s267, 1
      %s269 = scalar_select %p266, %s267, %s268
      %p272 = pneg %p266
      %p273 = scmp.eq.s32.totalorder %s28, 1
      %p274 = por %p272, %p273
      %p275 = scmp.ne.s32.totalorder %s267, %s270
      %p276 = scmp.eq.s32.totalorder %s28, 0
      %p277 = por %p275, %p276
      %p278 = scmp.ne.s32.totalorder %s267, %s270
      %p279 = scmp.eq.s32.totalorder %s33, 1
      %p280 = por %p278, %p279
      %p281 = scmp.ne.s32.totalorder %s270, %s271
      %p282 = scmp.eq.s32.totalorder %s33, 0
      %p283 = por %p281, %p282
      %p284 = scmp.ne.s32.totalorder %s270, %s271
      %p285 = scmp.eq.s32.totalorder %s34, 1
      %p286 = por %p284, %p285
      %p288 = scmp.ne.s32.totalorder %s271, %s287
      %p289 = scmp.eq.s32.totalorder %s34, 0
      %p290 = por %p288, %p289
      %s292 = sadd.s32 %s291, 1
      %p295 = scmp.eq.s32.totalorder %s28, 1
      %p296 = scmp.ne.s32.totalorder %s291, %s293
      %p297 = scmp.eq.s32.totalorder %s28, 0
      %p298 = por %p296, %p297
      %p299 = scmp.ne.s32.totalorder %s291, %s293
      %p300 = scmp.eq.s32.totalorder %s33, 1
      %p301 = por %p299, %p300
      %p302 = scmp.ne.s32.totalorder %s293, %s294
      %p303 = scmp.eq.s32.totalorder %s33, 0
      %p304 = por %p302, %p303
      %p305 = scmp.ne.s32.totalorder %s293, %s294
      %p306 = scmp.eq.s32.totalorder %s34, 1
      %p307 = por %p305, %p306
      %p309 = scmp.ne.s32.totalorder %s294, %s308
      %p310 = scmp.eq.s32.totalorder %s34, 0
      %p311 = por %p309, %p310
      %s313 = sadd.s32 %s312, 1
      %p316 = scmp.eq.s32.totalorder %s28, 1
      %p317 = scmp.ne.s32.totalorder %s312, %s314
      %p318 = scmp.eq.s32.totalorder %s28, 0
      %p319 = por %p317, %p318
      %p320 = scmp.ne.s32.totalorder %s312, %s314
      %p321 = scmp.eq.s32.totalorder %s33, 1
      %p322 = por %p320, %p321
      %p323 = scmp.ne.s32.totalorder %s314, %s315
      %p324 = scmp.eq.s32.totalorder %s33, 0
      %p325 = por %p323, %p324
      %p326 = scmp.ne.s32.totalorder %s314, %s315
      %p327 = scmp.eq.s32.totalorder %s34, 1
      %p328 = por %p326, %p327
      %p330 = scmp.ne.s32.totalorder %s315, %s329
      %p331 = scmp.eq.s32.totalorder %s34, 0
      %p332 = por %p330, %p331
      %s334 = sadd.s32 %s333, 1
      %p337 = scmp.eq.s32.totalorder %s28, 1
      %p338 = scmp.ne.s32.totalorder %s333, %s335
      %p339 = scmp.eq.s32.totalorder %s28, 0
      %p340 = por %p338, %p339
      %p341 = scmp.ne.s32.totalorder %s333, %s335
      %p342 = scmp.eq.s32.totalorder %s33, 1
      %p343 = por %p341, %p342
      %p344 = scmp.ne.s32.totalorder %s335, %s336
      %p345 = scmp.eq.s32.totalorder %s33, 0
      %p346 = por %p344, %p345
      %p347 = scmp.ne.s32.totalorder %s335, %s336
      %p348 = scmp.eq.s32.totalorder %s34, 1
      %p349 = por %p347, %p348
      %p351 = scmp.ne.s32.totalorder %s336, %s350
      %p352 = scmp.eq.s32.totalorder %s34, 0
      %p353 = por %p351, %p352
      %s355 = sadd.s32 %s354, 1
      %p358 = scmp.eq.s32.totalorder %s28, 1
      %p359 = scmp.ne.s32.totalorder %s354, %s356
      %p360 = scmp.eq.s32.totalorder %s28, 0
      %p361 = por %p359, %p360
      %p362 = scmp.ne.s32.totalorder %s354, %s356
      %p363 = scmp.eq.s32.totalorder %s33, 1
      %p364 = por %p362, %p363
      %p365 = scmp.ne.s32.totalorder %s356, %s357
      %p366 = scmp.eq.s32.totalorder %s33, 0
      %p367 = por %p365, %p366
      %p368 = scmp.ne.s32.totalorder %s356, %s357
      %p369 = scmp.eq.s32.totalorder %s34, 1
      %p370 = por %p368, %p369
      %p372 = scmp.ne.s32.totalorder %s357, %s371
      %p373 = scmp.eq.s32.totalorder %s34, 0
      %p374 = por %p372, %p373
      %s376 = sadd.s32 %s375, 1
      %p379 = scmp.eq.s32.totalorder %s28, 1
      %p380 = scmp.ne.s32.totalorder %s375, %s377
      %p381 = scmp.eq.s32.totalorder %s28, 0
      %p382 = por %p380, %p381
      %p383 = scmp.ne.s32.totalorder %s375, %s377
      %p384 = scmp.eq.s32.totalorder %s33, 1
      %p385 = por %p383, %p384
      %p386 = scmp.ne.s32.totalorder %s377, %s378
      %p387 = scmp.eq.s32.totalorder %s33, 0
      %p388 = por %p386, %p387
      %p389 = scmp.ne.s32.totalorder %s377, %s378
      %p390 = scmp.eq.s32.totalorder %s34, 1
      %p391 = por %p389, %p390
      %p393 = scmp.ne.s32.totalorder %s378, %s392
      %p394 = scmp.eq.s32.totalorder %s34, 0
      %p395 = por %p393, %p394
      %s397 = sadd.s32 %s396, 1
      %p400 = scmp.eq.s32.totalorder %s28, 1
      %p401 = scmp.ne.s32.totalorder %s396, %s398
      %p402 = scmp.eq.s32.totalorder %s28, 0
      %p403 = por %p401, %p402
      %p404 = scmp.ne.s32.totalorder %s396, %s398
      %p405 = scmp.eq.s32.totalorder %s33, 1
      %p406 = por %p404, %p405
      %p407 = scmp.ne.s32.totalorder %s398, %s399
      %p408 = scmp.eq.s32.totalorder %s33, 0
      %p409 = por %p407, %p408
      %p410 = scmp.ne.s32.totalorder %s398, %s399
      %p411 = scmp.eq.s32.totalorder %s34, 1
      %p412 = por %p410, %p411
      %p414 = scmp.ne.s32.totalorder %s399, %s413
      %p415 = scmp.eq.s32.totalorder %s34, 0
      %p416 = por %p414, %p415
      %s418 = sadd.s32 %s417, 1
      %p421 = scmp.eq.s32.totalorder %s28, 1
      %p422 = scmp.ne.s32.totalorder %s417, %s419
      %p423 = scmp.eq.s32.totalorder %s28, 0
      %p424 = por %p422, %p423
      %p425 = scmp.ne.s32.totalorder %s417, %s419
      %p426 = scmp.eq.s32.totalorder %s33, 1
      %p427 = por %p425, %p426
      %p428 = scmp.ne.s32.totalorder %s419, %s420
      %p429 = scmp.eq.s32.totalorder %s33, 0
      %p430 = por %p428, %p429
      %p431 = scmp.ne.s32.totalorder %s419, %s420
      %p432 = scmp.eq.s32.totalorder %s34, 1
      %p433 = por %p431, %p432
      %p435 = scmp.ne.s32.totalorder %s420, %s434
      %p436 = scmp.eq.s32.totalorder %s34, 0
      %p437 = por %p435, %p436
      %s438 = ssub.s32 %s35, %s54
      %s439 = ssub.s32 %s36, %s50
      %s440 = sor.u32 %s438, %s439
      %p441 = scmp.eq.s32.totalorder %s440, 0
      %s443 = sadd.s32 %s442, 1
      %s444 = scalar_select %p441, %s442, %s443
      %p447 = pneg %p441
      %p448 = scmp.eq.s32.totalorder %s28, 1
      %p449 = por %p447, %p448
      %p450 = scmp.ne.s32.totalorder %s442, %s445
      %p451 = scmp.eq.s32.totalorder %s28, 0
      %p452 = por %p450, %p451
      %p453 = scmp.ne.s32.totalorder %s442, %s445
      %p454 = scmp.eq.s32.totalorder %s33, 1
      %p455 = por %p453, %p454
      %p456 = scmp.ne.s32.totalorder %s445, %s446
      %p457 = scmp.eq.s32.totalorder %s33, 0
      %p458 = por %p456, %p457
      %p459 = scmp.ne.s32.totalorder %s445, %s446
      %p460 = scmp.eq.s32.totalorder %s34, 1
      %p461 = por %p459, %p460
      %p463 = scmp.ne.s32.totalorder %s446, %s462
      %p464 = scmp.eq.s32.totalorder %s34, 0
      %p465 = por %p463, %p464
      %p466 = scmp.le.s32.totalorder 1, %s28
      %p467 = scmp.lt.s32.totalorder %s28, 3
      %p468 = pnand %p466, %p467
      %p469 = pneg %p468
      // Predicated region
      $region9: #{tpu_custom_call.1} parent=5 // pred_check
        _
      $region10: #{tpu_custom_call.1} parent=5 // pred_check_branch
        %471 = sbr.rel (%p468) target = $region12
      $region11: #{tpu_custom_call.1} parent=5 // pred_region
        %s472 = ssub.s32 %s28, 1
        // Predicated region
        $region13: #{tpu_custom_call.1} parent=11 // pred_check
          %p473 = pneg %p127
        $region14: #{tpu_custom_call.1} parent=11 // pred_check_branch
          %475 = sbr.rel (%p473) target = $region16
        $region15: #{tpu_custom_call.1} parent=11 // pred_region
          %477 = vsyncadd [#allocation4], 0
          %s478 = smul.addr %s40, 4
          %s479 = smul.addr %s478, 4
          %s480 = scalar_lea.hbm %s2, %s479
          %s481 = sshll.u32 %s480, 4
          %s482 = int_to_ptr.hbm [resolvable:$true] %s481
          %s483 = sshll.u32 [#allocation3], 4
          %s484 = int_to_ptr.vmem [resolvable:$true] %s483
          %489 = dma.hbm_to_vmem [thread:$0]  %s482, 256, %s484, [#allocation4], 64, 64, 4
        $region16: #{tpu_custom_call.1} parent=11 // pred_fallthru
          _
        // Predicated region
        $region17: #{tpu_custom_call.1} parent=11 // pred_check
          %p490 = pneg %p153
        $region18: #{tpu_custom_call.1} parent=11 // pred_check_branch
          %492 = sbr.rel (%p490) target = $region20
        $region19: #{tpu_custom_call.1} parent=11 // pred_region
          %p493 = scmp.lt.s32.totalorder %s40, 0
          %s494 = scalar_select %p493, %s40, 0
          %s495 = scalar_lea.vmem %s3, %s494
        $region20: #{tpu_custom_call.1} parent=11 // pred_fallthru
          _
        // Predicated region
        $region21: #{tpu_custom_call.1} parent=11 // pred_check
          %p496 = pneg %p179
        $region22: #{tpu_custom_call.1} parent=11 // pred_check_branch
          %498 = sbr.rel (%p496) target = $region24
        $region23: #{tpu_custom_call.1} parent=11 // pred_region
          %500 = vsyncadd [#allocation7], 0
          %s501 = smul.addr %s40, 4
          %s502 = smul.addr %s501, 4
          %s503 = scalar_lea.hbm %s4, %s502
          %s504 = sshll.u32 %s503, 4
          %s505 = int_to_ptr.hbm [resolvable:$true] %s504
          %s506 = sshll.u32 [#allocation6], 4
          %s507 = int_to_ptr.vmem [resolvable:$true] %s506
          %512 = dma.hbm_to_vmem [thread:$0]  %s505, 256, %s507, [#allocation7], 64, 64, 4
        $region24: #{tpu_custom_call.1} parent=11 // pred_fallthru
          _
        // Predicated region
        $region25: #{tpu_custom_call.1} parent=11 // pred_check
          %p513 = pneg %p205
        $region26: #{tpu_custom_call.1} parent=11 // pred_check_branch
          %515 = sbr.rel (%p513) target = $region28
        $region27: #{tpu_custom_call.1} parent=11 // pred_region
          %p516 = scmp.lt.s32.totalorder %s40, 0
          %s517 = scalar_select %p516, %s40, 0
          %s518 = scalar_lea.vmem %s5, %s517
        $region28: #{tpu_custom_call.1} parent=11 // pred_fallthru
          _
        // Predicated region
        $region29: #{tpu_custom_call.1} parent=11 // pred_check
          %p519 = pneg %p231
        $region30: #{tpu_custom_call.1} parent=11 // pred_check_branch
          %521 = sbr.rel (%p519) target = $region32
        $region31: #{tpu_custom_call.1} parent=11 // pred_region
          %523 = vsyncadd [#allocation7], 0
          %s524 = smul.addr %s40, 4
          %s525 = smul.addr %s524, 4
          %s526 = scalar_lea.hbm %s6, %s525
          %s527 = sshll.u32 %s526, 4
          %s528 = int_to_ptr.hbm [resolvable:$true] %s527
          %s529 = sshll.u32 [#allocation8], 4
          %s530 = int_to_ptr.vmem [resolvable:$true] %s529
          %535 = dma.hbm_to_vmem [thread:$0]  %s528, 256, %s530, [#allocation7], 64, 64, 4
        $region32: #{tpu_custom_call.1} parent=11 // pred_fallthru
          _
        // Predicated region
        $region33: #{tpu_custom_call.1} parent=11 // pred_check
          %p536 = pneg %p257
        $region34: #{tpu_custom_call.1} parent=11 // pred_check_branch
          %538 = sbr.rel (%p536) target = $region36
        $region35: #{tpu_custom_call.1} parent=11 // pred_region
          %p539 = scmp.lt.s32.totalorder %s40, 0
          %s540 = scalar_select %p539, %s40, 0
          %s541 = scalar_lea.vmem %s7, %s540
        $region36: #{tpu_custom_call.1} parent=11 // pred_fallthru
          _
        // Predicated region
        $region37: #{tpu_custom_call.1} parent=11 // pred_check
          %p542 = pneg %p283
        $region38: #{tpu_custom_call.1} parent=11 // pred_check_branch
          %544 = sbr.rel (%p542) target = $region40
        $region39: #{tpu_custom_call.1} parent=11 // pred_region
          %546 = vsyncadd [#allocation10], 0
          %s547 = smul.addr %s40, 4
          %s548 = smul.addr %s547, 4
          %s549 = scalar_lea.hbm %s8, %s548
          %s550 = sshll.u32 %s549, 4
          %s551 = int_to_ptr.hbm [resolvable:$true] %s550
          %s552 = sshll.u32 [#allocation9], 4
          %s553 = int_to_ptr.vmem [resolvable:$true] %s552
          %558 = dma.hbm_to_vmem [thread:$0]  %s551, 256, %s553, [#allocation10], 64, 64, 4
        $region40: #{tpu_custom_call.1} parent=11 // pred_fallthru
          _
        // Predicated region
        $region41: #{tpu_custom_call.1} parent=11 // pred_check
          %p559 = pneg %p304
        $region42: #{tpu_custom_call.1} parent=11 // pred_check_branch
          %561 = sbr.rel (%p559) target = $region44
        $region43: #{tpu_custom_call.1} parent=11 // pred_region
          _
        $region44: #{tpu_custom_call.1} parent=11 // pred_fallthru
          _
        // Predicated region
        $region45: #{tpu_custom_call.1} parent=11 // pred_check
          %p562 = pneg %p325
        $region46: #{tpu_custom_call.1} parent=11 // pred_check_branch
          %564 = sbr.rel (%p562) target = $region48
        $region47: #{tpu_custom_call.1} parent=11 // pred_region
          _
        $region48: #{tpu_custom_call.1} parent=11 // pred_fallthru
          _
        // Predicated region
        $region49: #{tpu_custom_call.1} parent=11 // pred_check
          %p565 = pneg %p346
        $region50: #{tpu_custom_call.1} parent=11 // pred_check_branch
          %567 = sbr.rel (%p565) target = $region52
        $region51: #{tpu_custom_call.1} parent=11 // pred_region
          _
        $region52: #{tpu_custom_call.1} parent=11 // pred_fallthru
          _
        // Predicated region
        $region53: #{tpu_custom_call.1} parent=11 // pred_check
          %p568 = pneg %p367
        $region54: #{tpu_custom_call.1} parent=11 // pred_check_branch
          %570 = sbr.rel (%p568) target = $region56
        $region55: #{tpu_custom_call.1} parent=11 // pred_region
          %572 = vsyncadd [#allocation10], 0
          %s573 = sshll.u32 %s12, 4
          %s574 = int_to_ptr.hbm [resolvable:$true] %s573
          %s575 = sshll.u32 [#allocation11], 4
          %s576 = int_to_ptr.vmem [resolvable:$true] %s575
          %581 = dma.hbm_to_vmem [thread:$0]  %s574, 256, %s576, [#allocation10], 64, 64, 4
        $region56: #{tpu_custom_call.1} parent=11 // pred_fallthru
          _
        // Predicated region
        $region57: #{tpu_custom_call.1} parent=11 // pred_check
          %p582 = pneg %p388
        $region58: #{tpu_custom_call.1} parent=11 // pred_check_branch
          %584 = sbr.rel (%p582) target = $region60
        $region59: #{tpu_custom_call.1} parent=11 // pred_region
          _
        $region60: #{tpu_custom_call.1} parent=11 // pred_fallthru
          _
        // Predicated region
        $region61: #{tpu_custom_call.1} parent=11 // pred_check
          %p585 = pneg %p409
        $region62: #{tpu_custom_call.1} parent=11 // pred_check_branch
          %587 = sbr.rel (%p585) target = $region64
        $region63: #{tpu_custom_call.1} parent=11 // pred_region
          _
        $region64: #{tpu_custom_call.1} parent=11 // pred_fallthru
          _
        // Predicated region
        $region65: #{tpu_custom_call.1} parent=11 // pred_check
          %p588 = pneg %p430
        $region66: #{tpu_custom_call.1} parent=11 // pred_check_branch
          %590 = sbr.rel (%p588) target = $region68
        $region67: #{tpu_custom_call.1} parent=11 // pred_region
          _
        $region68: #{tpu_custom_call.1} parent=11 // pred_fallthru
          _
      $region12: #{tpu_custom_call.1} parent=5 // pred_fallthru
        _
      %p591 = scmp.lt.s32.totalorder %s28, 2
      // Predicated region
      $region69: #{tpu_custom_call.1} parent=5 // pred_check
        %p592 = pneg %p591
      $region70: #{tpu_custom_call.1} parent=5 // pred_check_branch
        %594 = sbr.rel (%p592) target = $region72
      $region71: #{tpu_custom_call.1} parent=5 // pred_region
        // Predicated region
        $region73: #{tpu_custom_call.1} parent=71 // pred_check
          %p595 = pneg %p69
        $region74: #{tpu_custom_call.1} parent=71 // pred_check_branch
          %597 = sbr.rel (%p595) target = $region76
        $region75: #{tpu_custom_call.1} parent=71 // pred_region
          %s598 = smul.u32 2, %s36
          %p599 = scmp.lt.s32.totalorder %s35, 1
          %s600 = scalar_select %p599, %s35, 1
          %p601 = scmp.lt.s32.totalorder %s598, 1
          %s602 = scalar_select %p601, %s598, 1
          %s603 = smul.addr %s600, 2
          %s604 = sadd.s32 %s602, %s603
          %s605 = smul.addr %s604, 8
          %s606 = scalar_lea.vmem %s0, %s605
          %s607 = smul.u32 2, %s36
        $region76: #{tpu_custom_call.1} parent=71 // pred_fallthru
          _
        // Predicated region
        $region77: #{tpu_custom_call.1} parent=71 // pred_check
          %p608 = pneg %p95
        $region78: #{tpu_custom_call.1} parent=71 // pred_check_branch
          %610 = sbr.rel (%p608) target = $region80
        $region79: #{tpu_custom_call.1} parent=71 // pred_region
          %p611 = scmp.lt.s32.totalorder %s35, 1
          %s612 = scalar_select %p611, %s35, 1
          %s613 = smul.addr %s612, 2
          %s614 = smul.addr %s613, 4
          %s615 = scalar_lea.vmem %s1, %s614
        $region80: #{tpu_custom_call.1} parent=71 // pred_fallthru
          _
      $region72: #{tpu_custom_call.1} parent=5 // pred_fallthru
        _
      %p616 = scmp.le.s32.totalorder 1, %s28
      %p617 = scmp.lt.s32.totalorder %s28, 3
      %p618 = pnand %p616, %p617
      %p619 = pneg %p618
      // Predicated region
      $region81: #{tpu_custom_call.1} parent=5 // pred_check
        _
      $region82: #{tpu_custom_call.1} parent=5 // pred_check_branch
        %621 = sbr.rel (%p618) target = $region84
      $region83: #{tpu_custom_call.1} parent=5 // pred_region
        %s622 = ssub.s32 %s28, 1
        // Predicated region
        $region85: #{tpu_custom_call.1} parent=83 // pred_check
          %p623 = pneg %p127
        $region86: #{tpu_custom_call.1} parent=83 // pred_check_branch
          %625 = sbr.rel (%p623) target = $region88
        $region87: #{tpu_custom_call.1} parent=83 // pred_region
          %627 = dma.done [#allocation4], 256
        $region88: #{tpu_custom_call.1} parent=83 // pred_fallthru
          _
        // Predicated region
        $region89: #{tpu_custom_call.1} parent=83 // pred_check
          %p628 = pneg %p179
        $region90: #{tpu_custom_call.1} parent=83 // pred_check_branch
          %630 = sbr.rel (%p628) target = $region92
        $region91: #{tpu_custom_call.1} parent=83 // pred_region
          %632 = dma.done [#allocation7], 256
        $region92: #{tpu_custom_call.1} parent=83 // pred_fallthru
          _
        // Predicated region
        $region93: #{tpu_custom_call.1} parent=83 // pred_check
          %p633 = pneg %p231
        $region94: #{tpu_custom_call.1} parent=83 // pred_check_branch
          %635 = sbr.rel (%p633) target = $region96
        $region95: #{tpu_custom_call.1} parent=83 // pred_region
          %637 = dma.done [#allocation7], 256
        $region96: #{tpu_custom_call.1} parent=83 // pred_fallthru
          _
        // Predicated region
        $region97: #{tpu_custom_call.1} parent=83 // pred_check
          %p638 = pneg %p283
        $region98: #{tpu_custom_call.1} parent=83 // pred_check_branch
          %640 = sbr.rel (%p638) target = $region100
        $region99: #{tpu_custom_call.1} parent=83 // pred_region
          %642 = dma.done [#allocation10], 256
        $region100: #{tpu_custom_call.1} parent=83 // pred_fallthru
          _
        // Predicated region
        $region101: #{tpu_custom_call.1} parent=83 // pred_check
          %p643 = pneg %p367
        $region102: #{tpu_custom_call.1} parent=83 // pred_check_branch
          %645 = sbr.rel (%p643) target = $region104
        $region103: #{tpu_custom_call.1} parent=83 // pred_region
          %647 = dma.done [#allocation10], 256
        $region104: #{tpu_custom_call.1} parent=83 // pred_fallthru
          _
        %s648 = smul.u32 2, %s39
        %p649 = scmp.lt.s32.totalorder %s38, 1
        %s650 = scalar_select %p649, %s38, 1
        %p651 = scmp.lt.s32.totalorder %s648, 1
        %s652 = scalar_select %p651, %s648, 1
        %s653 = smul.addr %s650, 2
        %s654 = sadd.s32 %s652, %s653
        %s655 = smul.addr %s654, 8
        %s656 = scalar_lea.vmem %s0, %s655
        %p657 = pneg %p75
        %p658 = pneg %p72
        %p659 = scmp.lt.s32.totalorder %s38, 1
        %s660 = scalar_select %p659, %s38, 1
        %s661 = smul.addr %s660, 2
        %s662 = smul.addr %s661, 4
        %s663 = scalar_lea.vmem %s1, %s662
        %p664 = pneg %p101
        %p665 = pneg %p98
        %p666 = pneg %p127
        %p667 = pneg %p124
        %p668 = scmp.lt.s32.totalorder %s40, 0
        %s669 = scalar_select %p668, %s40, 0
        %s670 = scalar_lea.vmem %s3, %s669
        %p671 = pneg %p153
        %p672 = pneg %p150
        %p673 = pneg %p179
        %p674 = pneg %p176
        %p675 = scmp.lt.s32.totalorder %s40, 0
        %s676 = scalar_select %p675, %s40, 0
        %s677 = scalar_lea.vmem %s5, %s676
        %p678 = pneg %p205
        %p679 = pneg %p202
        %p680 = pneg %p231
        %p681 = pneg %p228
        %p682 = scmp.lt.s32.totalorder %s40, 0
        %s683 = scalar_select %p682, %s40, 0
        %s684 = scalar_lea.vmem %s7, %s683
        %p685 = pneg %p257
        %p686 = pneg %p254
        %p687 = pneg %p283
        %p688 = pneg %p280
        %p689 = pneg %p304
        %p690 = pneg %p301
        %p691 = pneg %p325
        %p692 = pneg %p322
        %p693 = pneg %p346
        %p694 = pneg %p343
        %p695 = pneg %p367
        %p696 = pneg %p364
        %p697 = pneg %p388
        %p698 = pneg %p385
        %p699 = pneg %p409
        %p700 = pneg %p406
        %p701 = pneg %p430
        %p702 = pneg %p427
        %p703 = pneg %p458
        %p704 = pneg %p455
        %s705 = sand.u32 %s445, 1
        %s706 = scalar_lea.sflag [#allocation5], %s705
        %s707 = sand.u32 %s445, 1
        %s708 = smul.addr %s707, 16
        %s709 = scalar_lea.vmem [#allocation12], %s708
        %s710 = smul.u32 2, %s39
        %p711 = scmp.lt.s32.totalorder %s38, 1
        %s712 = scalar_select %p711, %s38, 1
        %p713 = scmp.lt.s32.totalorder %s710, 1
        %s714 = scalar_select %p713, %s710, 1
        %s715 = smul.addr %s712, 2
        %s716 = sadd.s32 %s714, %s715
        %s717 = smul.addr %s716, 8
        %s718 = scalar_lea.vmem %s0, %s717
        %s719 = smul.u32 2, %s39
        %p720 = scmp.lt.s32.totalorder %s38, 1
        %s721 = scalar_select %p720, %s38, 1
        %s722 = smul.addr %s721, 2
        %s723 = smul.addr %s722, 4
        %s724 = scalar_lea.vmem %s1, %s723
        %p725 = scmp.lt.s32.totalorder %s40, 0
        %s726 = scalar_select %p725, %s40, 0
        %s727 = scalar_lea.vmem %s3, %s726
        %p728 = scmp.lt.s32.totalorder %s40, 0
        %s729 = scalar_select %p728, %s40, 0
        %s730 = scalar_lea.vmem %s5, %s729
        %p731 = scmp.lt.s32.totalorder %s40, 0
        %s732 = scalar_select %p731, %s40, 0
        %s733 = scalar_lea.vmem %s7, %s732
        %s734 = smul.u32 2, %s39
        %p736 = scmp.eq.s32.totalorder %s40, 0
        // Predicated region
        $region105: #{tpu_custom_call.1} parent=83 // pred_check
          %p737 = pneg %p736
        $region106: #{tpu_custom_call.1} parent=83 // pred_check_branch
          %739 = sbr.rel (%p737) target = $region108
        $region107: #{tpu_custom_call.1} parent=83 // pred_region
          %vm740 = vcmask 261120
          %741 = vst.msk [vmem:[#allocation2] sm:$0xff] %vm740, 0.0
          %742 = vst.msk [vmem:[#allocation2 + $0x8] sm:$0xff] %vm740, 0.0
        $region108: #{tpu_custom_call.1} parent=83 // pred_fallthru
          _
        %v743 = vld [vmem:[%s724] sm:$0xf]
        %v744 = vld [vmem:[%s724 + $0x4] sm:$0xf]
        %v745 = vld [vmem:[#allocation3] sm:$0xf]
        %v746 = vld [vmem:[#allocation3 + $0x4] sm:$0xf]
        %v747 = vld [vmem:[#allocation3 + $0x8] sm:$0xf]
        %v748 = vld [vmem:[#allocation3 + $0xc] sm:$0xf]
        %v749 = vld [vmem:[%s727] sm:$0x1]
        %v751 = vperm.slane %v749, 0
        %v755 = vunpack.c.l.b16 %v743
        %v756 = vunpack.c.l.b16 %v744
        %v757 = vpack.c.b16 %v756, %v755
        %v762 = vunpack.c.l.b16 %v745
        %v763 = vunpack.c.l.b16 %v746
        %v764 = vunpack.c.l.b16 %v747
        %v765 = vunpack.c.l.b16 %v748
        %v766 = vpack.c.b16 %v763, %v762
        %v767 = vpack.c.b16 %v765, %v764
        %vm770 = vcmask 261120
        %v772 = vsel %vm770, %v757, 0
        %774 = vmatpush.bf16.msra.mxu0 0
        %775 = vmatpush.bf16.msra.mxu0 0
        %776 = vmatpush.bf16.msra.mxu0 0
        %777 = vmatpush.bf16.msra.mxu0 0
        %778 = vmatpush.bf16.msra.mxu0 0
        %779 = vmatpush.bf16.msra.mxu0 0
        %780 = vmatpush.bf16.msra.mxu0 %v767
        %781 = vmatpush.bf16.msra.mxu0 %v766
        %782 = vmatmul.bf16.gmra.mxu0 %v772
        %v783 = vpop.f32.mrf.mxu0
        %v784 = vadd.f32 %v751, %v783
        %v785 = vpop.f32.mrf.mxu0
        %v786 = vadd.f32 %v751, %v785
        %787 = vdwg.mxu0
        %v788 = vmul.f32 %v784, 0.35355338
        %v789 = vmul.f32 %v786, 0.35355338
        %v790 = vld [vmem:[#allocation6] sm:$0xf]
        %v791 = vld [vmem:[#allocation6 + $0x4] sm:$0xf]
        %v792 = vld [vmem:[#allocation6 + $0x8] sm:$0xf]
        %v793 = vld [vmem:[#allocation6 + $0xc] sm:$0xf]
        %v794 = vld [vmem:[%s730] sm:$0x1]
        %v796 = vperm.slane %v794, 0
        %v802 = vunpack.c.l.b16 %v790
        %v803 = vunpack.c.l.b16 %v791
        %v804 = vunpack.c.l.b16 %v792
        %v805 = vunpack.c.l.b16 %v793
        %v806 = vpack.c.b16 %v803, %v802
        %v807 = vpack.c.b16 %v805, %v804
        %810 = vmatpush.bf16.msra.mxu0 0
        %811 = vmatpush.bf16.msra.mxu0 0
        %812 = vmatpush.bf16.msra.mxu0 0
        %813 = vmatpush.bf16.msra.mxu0 0
        %814 = vmatpush.bf16.msra.mxu0 0
        %815 = vmatpush.bf16.msra.mxu0 0
        %816 = vmatpush.bf16.msra.mxu0 %v807
        %817 = vmatpush.bf16.msra.mxu0 %v806
        %818 = vmatmul.bf16.gmra.mxu0 %v772
        %v819 = vpop.f32.mrf.mxu0
        %v820 = vadd.f32 %v796, %v819
        %v821 = vpop.f32.mrf.mxu0
        %v822 = vadd.f32 %v796, %v821
        %823 = vdwg.mxu0
        %v824 = vld [vmem:[#allocation8] sm:$0xf]
        %v825 = vld [vmem:[#allocation8 + $0x4] sm:$0xf]
        %v826 = vld [vmem:[#allocation8 + $0x8] sm:$0xf]
        %v827 = vld [vmem:[#allocation8 + $0xc] sm:$0xf]
        %v828 = vld [vmem:[%s733] sm:$0x1]
        %v830 = vperm.slane %v828, 0
        %v836 = vunpack.c.l.b16 %v824
        %v837 = vunpack.c.l.b16 %v825
        %v838 = vunpack.c.l.b16 %v826
        %v839 = vunpack.c.l.b16 %v827
        %v840 = vpack.c.b16 %v837, %v836
        %v841 = vpack.c.b16 %v839, %v838
        %844 = vmatpush.bf16.msra.mxu0 0
        %845 = vmatpush.bf16.msra.mxu0 0
        %846 = vmatpush.bf16.msra.mxu0 0
        %847 = vmatpush.bf16.msra.mxu0 0
        %848 = vmatpush.bf16.msra.mxu0 0
        %849 = vmatpush.bf16.msra.mxu0 0
        %850 = vmatpush.bf16.msra.mxu0 %v841
        %851 = vmatpush.bf16.msra.mxu0 %v840
        %852 = vmatmul.bf16.gmra.mxu0 %v772
        %v853 = vpop.f32.mrf.mxu0
        %v854 = vadd.f32 %v830, %v853
        %v855 = vpop.f32.mrf.mxu0
        %v856 = vadd.f32 %v830, %v855
        %857 = vdwg.mxu0
        %v858 = vpack.c.bf16 %v788, %v788
        %v859 = vpack.c.bf16 %v789, %v789
        %v860 = vpack.c.bf16 %v820, %v820
        %v861 = vpack.c.bf16 %v822, %v822
        %v862 = vpack.c.bf16 %v854, %v854
        %v863 = vpack.c.bf16 %v856, %v856
        %v866 = vunpack.c.l.b16 %v858
        %v867 = vunpack.c.l.b16 %v859
        %v868 = vpack.c.b16 %v867, %v866
        %v871 = vunpack.c.l.b16 %v860
        %v872 = vunpack.c.l.b16 %v861
        %v873 = vpack.c.b16 %v872, %v871
        %vm874 = vcmask 64512
        %v876 = vsel %vm874, %v868, 0
        %v879 = vsel %vm874, %v873, 0
        %881 = vmatpush.bf16.xpose.msra.mxu0 0
        %882 = vmatpush.bf16.xpose.msra.mxu0 0
        %883 = vmatpush.bf16.xpose.msra.mxu0 0
        %884 = vmatpush.bf16.xpose.msra.mxu0 0
        %885 = vmatpush.bf16.xpose.msra.mxu0 0
        %886 = vmatpush.bf16.xpose.msra.mxu0 0
        %887 = vmatpush.bf16.xpose.msra.mxu0 0
        %888 = vmatpush.bf16.xpose.msra.mxu0 %v879
        %889 = vmatmul.bf16.gmra.mxu0 %v876
        %v890 = vpop.f32.mrf.mxu0
        %v891 = vadd.f32 0.0, %v890
        %v892 = vpop.f32.mrf.mxu0
        %v893 = vadd.f32 0.0, %v892
        %894 = vdwg.mxu0
        %vm895 = vcmask 130048
        %v896 = vsel %vm895, %v891, -inf
        %897 = vmax.xlane.f32.xlu0 %v896
        %v898 = vpop.xlane.xlu0 %897
        %v899 = vsel %vm895, %v893, -inf
        %900 = vmax.xlane.f32.xlu0 %v899
        %v901 = vpop.xlane.xlu0 %900
        %v902 = vsub.f32 %v891, %v898
        %v903 = vsub.f32 %v893, %v901
        %v904 = vmul.f32 %v902, 1.442695
        %v905 = vpow.pop %v904
        %v906 = vmul.f32 %v903, 1.442695
        %v907 = vpow.pop %v906
        %v908 = vsel %vm895, %v905, 0.0
        %909 = vadd.xlane.f32.xlu0 %v908
        %v910 = vpop.xlane.xlu0 %909
        %v911 = vsel %vm895, %v907, 0.0
        %912 = vadd.xlane.f32.xlu0 %v911
        %v913 = vpop.xlane.xlu0 %912
        %v914 = vpack.c.bf16 %v907, %v905
        %v917 = vunpack.c.l.b16 %v862
        %v918 = vunpack.c.l.b16 %v863
        %v919 = vpack.c.b16 %v918, %v917
        %v922 = vsel %vm895, %v914, 0
        %924 = vmatpush.bf16.msra.mxu0 0
        %925 = vmatpush.bf16.msra.mxu0 0
        %926 = vmatpush.bf16.msra.mxu0 0
        %927 = vmatpush.bf16.msra.mxu0 0
        %928 = vmatpush.bf16.msra.mxu0 0
        %929 = vmatpush.bf16.msra.mxu0 0
        %930 = vmatpush.bf16.msra.mxu0 0
        %931 = vmatpush.bf16.msra.mxu0 %v919
        %932 = vmatmul.bf16.gmra.mxu0 %v922
        %v933 = vpop.f32.mrf.mxu0
        %v934 = vadd.f32 0.0, %v933
        %v935 = vpop.f32.mrf.mxu0
        %v936 = vadd.f32 0.0, %v935
        %937 = vdwg.mxu0
        %v938 = vrcp.pop %v910
        %v939 = vrcp.pop %v913
        %v940 = vmul.f32 %v934, %v938
        %v941 = vmul.f32 %v936, %v939
        %v942 = vpack.c.bf16 %v940, %v940
        %v943 = vpack.c.bf16 %v941, %v941
        %944 = vrot.lane.b32.xlu0 %v868, 120
        %v945 = vpop.permute.xlu0 %944
        %946 = vrot.lane.b32.xlu0 %v873, 120
        %v947 = vpop.permute.xlu0 %946
        %v949 = vsel %vm874, %v945, 0
        %v952 = vsel %vm874, %v947, 0
        %954 = vmatpush.bf16.xpose.msra.mxu0 0
        %955 = vmatpush.bf16.xpose.msra.mxu0 0
        %956 = vmatpush.bf16.xpose.msra.mxu0 0
        %957 = vmatpush.bf16.xpose.msra.mxu0 0
        %958 = vmatpush.bf16.xpose.msra.mxu0 0
        %959 = vmatpush.bf16.xpose.msra.mxu0 0
        %960 = vmatpush.bf16.xpose.msra.mxu0 0
        %961 = vmatpush.bf16.xpose.msra.mxu0 %v952
        %962 = vmatmul.bf16.gmra.mxu0 %v949
        %v963 = vpop.f32.mrf.mxu0
        %v964 = vadd.f32 0.0, %v963
        %v965 = vpop.f32.mrf.mxu0
        %v966 = vadd.f32 0.0, %v965
        %967 = vdwg.mxu0
        %v968 = vsel %vm895, %v964, -inf
        %969 = vmax.xlane.f32.xlu0 %v968
        %v970 = vpop.xlane.xlu0 %969
        %v971 = vsel %vm895, %v966, -inf
        %972 = vmax.xlane.f32.xlu0 %v971
        %v973 = vpop.xlane.xlu0 %972
        %v974 = vsub.f32 %v964, %v970
        %v975 = vsub.f32 %v966, %v973
        %v976 = vmul.f32 %v974, 1.442695
        %v977 = vpow.pop %v976
        %v978 = vmul.f32 %v975, 1.442695
        %v979 = vpow.pop %v978
        %v980 = vsel %vm895, %v977, 0.0
        %981 = vadd.xlane.f32.xlu0 %v980
        %v982 = vpop.xlane.xlu0 %981
        %v983 = vsel %vm895, %v979, 0.0
        %984 = vadd.xlane.f32.xlu0 %v983
        %v985 = vpop.xlane.xlu0 %984
        %v986 = vpack.c.bf16 %v979, %v977
        %987 = vrot.lane.b32.xlu0 %v919, 120
        %v988 = vpop.permute.xlu0 %987
        %v991 = vsel %vm895, %v986, 0
        %993 = vmatpush.bf16.msra.mxu0 0
        %994 = vmatpush.bf16.msra.mxu0 0
        %995 = vmatpush.bf16.msra.mxu0 0
        %996 = vmatpush.bf16.msra.mxu0 0
        %997 = vmatpush.bf16.msra.mxu0 0
        %998 = vmatpush.bf16.msra.mxu0 0
        %999 = vmatpush.bf16.msra.mxu0 0
        %1000 = vmatpush.bf16.msra.mxu0 %v988
        %1001 = vmatmul.bf16.gmra.mxu0 %v991
        %v1002 = vpop.f32.mrf.mxu0
        %v1003 = vadd.f32 0.0, %v1002
        %v1004 = vpop.f32.mrf.mxu0
        %v1005 = vadd.f32 0.0, %v1004
        %1006 = vdwg.mxu0
        %v1007 = vrcp.pop %v982
        %v1008 = vrcp.pop %v985
        %v1009 = vmul.f32 %v1003, %v1007
        %v1010 = vmul.f32 %v1005, %v1008
        %v1011 = vpack.c.bf16 %v1009, %v1009
        %v1012 = vpack.c.bf16 %v1010, %v1010
        %1013 = vrot.lane.b32.xlu0 %v868, 112
        %v1014 = vpop.permute.xlu0 %1013
        %1015 = vrot.lane.b32.xlu0 %v873, 112
        %v1016 = vpop.permute.xlu0 %1015
        %v1018 = vsel %vm874, %v1014, 0
        %v1021 = vsel %vm874, %v1016, 0
        %1023 = vmatpush.bf16.xpose.msra.mxu0 0
        %1024 = vmatpush.bf16.xpose.msra.mxu0 0
        %1025 = vmatpush.bf16.xpose.msra.mxu0 0
        %1026 = vmatpush.bf16.xpose.msra.mxu0 0
        %1027 = vmatpush.bf16.xpose.msra.mxu0 0
        %1028 = vmatpush.bf16.xpose.msra.mxu0 0
        %1029 = vmatpush.bf16.xpose.msra.mxu0 0
        %1030 = vmatpush.bf16.xpose.msra.mxu0 %v1021
        %1031 = vmatmul.bf16.gmra.mxu0 %v1018
        %v1032 = vpop.f32.mrf.mxu0
        %v1033 = vadd.f32 0.0, %v1032
        %v1034 = vpop.f32.mrf.mxu0
        %v1035 = vadd.f32 0.0, %v1034
        %1036 = vdwg.mxu0
        %v1037 = vsel %vm895, %v1033, -inf
        %1038 = vmax.xlane.f32.xlu0 %v1037
        %v1039 = vpop.xlane.xlu0 %1038
        %v1040 = vsel %vm895, %v1035, -inf
        %1041 = vmax.xlane.f32.xlu0 %v1040
        %v1042 = vpop.xlane.xlu0 %1041
        %v1043 = vsub.f32 %v1033, %v1039
        %v1044 = vsub.f32 %v1035, %v1042
        %v1045 = vmul.f32 %v1043, 1.442695
        %v1046 = vpow.pop %v1045
        %v1047 = vmul.f32 %v1044, 1.442695
        %v1048 = vpow.pop %v1047
        %v1049 = vsel %vm895, %v1046, 0.0
        %1050 = vadd.xlane.f32.xlu0 %v1049
        %v1051 = vpop.xlane.xlu0 %1050
        %v1052 = vsel %vm895, %v1048, 0.0
        %1053 = vadd.xlane.f32.xlu0 %v1052
        %v1054 = vpop.xlane.xlu0 %1053
        %v1055 = vpack.c.bf16 %v1048, %v1046
        %1056 = vrot.lane.b32.xlu0 %v919, 112
        %v1057 = vpop.permute.xlu0 %1056
        %v1060 = vsel %vm895, %v1055, 0
        %1062 = vmatpush.bf16.msra.mxu0 0
        %1063 = vmatpush.bf16.msra.mxu0 0
        %1064 = vmatpush.bf16.msra.mxu0 0
        %1065 = vmatpush.bf16.msra.mxu0 0
        %1066 = vmatpush.bf16.msra.mxu0 0
        %1067 = vmatpush.bf16.msra.mxu0 0
        %1068 = vmatpush.bf16.msra.mxu0 0
        %1069 = vmatpush.bf16.msra.mxu0 %v1057
        %1070 = vmatmul.bf16.gmra.mxu0 %v1060
        %v1071 = vpop.f32.mrf.mxu0
        %v1072 = vadd.f32 0.0, %v1071
        %v1073 = vpop.f32.mrf.mxu0
        %v1074 = vadd.f32 0.0, %v1073
        %1075 = vdwg.mxu0
        %v1076 = vrcp.pop %v1051
        %v1077 = vrcp.pop %v1054
        %v1078 = vmul.f32 %v1072, %v1076
        %v1079 = vmul.f32 %v1074, %v1077
        %v1080 = vpack.c.bf16 %v1078, %v1078
        %v1081 = vpack.c.bf16 %v1079, %v1079
        %1082 = vrot.lane.b32.xlu0 %v868, 104
        %v1083 = vpop.permute.xlu0 %1082
        %1084 = vrot.lane.b32.xlu0 %v873, 104
        %v1085 = vpop.permute.xlu0 %1084
        %v1087 = vsel %vm874, %v1083, 0
        %v1090 = vsel %vm874, %v1085, 0
        %1092 = vmatpush.bf16.xpose.msra.mxu0 0
        %1093 = vmatpush.bf16.xpose.msra.mxu0 0
        %1094 = vmatpush.bf16.xpose.msra.mxu0 0
        %1095 = vmatpush.bf16.xpose.msra.mxu0 0
        %1096 = vmatpush.bf16.xpose.msra.mxu0 0
        %1097 = vmatpush.bf16.xpose.msra.mxu0 0
        %1098 = vmatpush.bf16.xpose.msra.mxu0 0
        %1099 = vmatpush.bf16.xpose.msra.mxu0 %v1090
        %1100 = vmatmul.bf16.gmra.mxu0 %v1087
        %v1101 = vpop.f32.mrf.mxu0
        %v1102 = vadd.f32 0.0, %v1101
        %v1103 = vpop.f32.mrf.mxu0
        %v1104 = vadd.f32 0.0, %v1103
        %1105 = vdwg.mxu0
        %v1106 = vsel %vm895, %v1102, -inf
        %1107 = vmax.xlane.f32.xlu0 %v1106
        %v1108 = vpop.xlane.xlu0 %1107
        %v1109 = vsel %vm895, %v1104, -inf
        %1110 = vmax.xlane.f32.xlu0 %v1109
        %v1111 = vpop.xlane.xlu0 %1110
        %v1112 = vsub.f32 %v1102, %v1108
        %v1113 = vsub.f32 %v1104, %v1111
        %v1114 = vmul.f32 %v1112, 1.442695
        %v1115 = vpow.pop %v1114
        %v1116 = vmul.f32 %v1113, 1.442695
        %v1117 = vpow.pop %v1116
        %v1118 = vsel %vm895, %v1115, 0.0
        %1119 = vadd.xlane.f32.xlu0 %v1118
        %v1120 = vpop.xlane.xlu0 %1119
        %v1121 = vsel %vm895, %v1117, 0.0
        %1122 = vadd.xlane.f32.xlu0 %v1121
        %v1123 = vpop.xlane.xlu0 %1122
        %v1124 = vpack.c.bf16 %v1117, %v1115
        %1125 = vrot.lane.b32.xlu0 %v919, 104
        %v1126 = vpop.permute.xlu0 %1125
        %v1129 = vsel %vm895, %v1124, 0
        %1131 = vmatpush.bf16.msra.mxu0 0
        %1132 = vmatpush.bf16.msra.mxu0 0
        %1133 = vmatpush.bf16.msra.mxu0 0
        %1134 = vmatpush.bf16.msra.mxu0 0
        %1135 = vmatpush.bf16.msra.mxu0 0
        %1136 = vmatpush.bf16.msra.mxu0 0
        %1137 = vmatpush.bf16.msra.mxu0 0
        %1138 = vmatpush.bf16.msra.mxu0 %v1126
        %1139 = vmatmul.bf16.gmra.mxu0 %v1129
        %v1140 = vpop.f32.mrf.mxu0
        %v1141 = vadd.f32 0.0, %v1140
        %v1142 = vpop.f32.mrf.mxu0
        %v1143 = vadd.f32 0.0, %v1142
        %1144 = vdwg.mxu0
        %v1145 = vrcp.pop %v1120
        %v1146 = vrcp.pop %v1123
        %v1147 = vmul.f32 %v1141, %v1145
        %v1148 = vmul.f32 %v1143, %v1146
        %v1149 = vpack.c.bf16 %v1147, %v1147
        %v1150 = vpack.c.bf16 %v1148, %v1148
        %v1153 = vunpack.c.l.b16 %v942
        %v1154 = vunpack.c.l.b16 %v943
        %v1155 = vpack.c.b16 %v1154, %v1153
        %v1158 = vunpack.c.l.b16 %v1011
        %v1159 = vunpack.c.l.b16 %v1012
        %v1160 = vpack.c.b16 %v1159, %v1158
        %1161 = vrot.lane.b32.xlu0 %v1160, 8
        %v1162 = vpop.permute.xlu0 %1161
        %v1165 = vunpack.c.l.b16 %v1080
        %v1166 = vunpack.c.l.b16 %v1081
        %v1167 = vpack.c.b16 %v1166, %v1165
        %1168 = vrot.lane.b32.xlu0 %v1167, 16
        %v1169 = vpop.permute.xlu0 %1168
        %v1172 = vunpack.c.l.b16 %v1149
        %v1173 = vunpack.c.l.b16 %v1150
        %v1174 = vpack.c.b16 %v1173, %v1172
        %1175 = vrot.lane.b32.xlu0 %v1174, 24
        %v1176 = vpop.permute.xlu0 %1175
        %v1179 = vsel %vm874, %v1155, %v1162
        %v1181 = vsel %vm895, %v1179, %v1169
        %vm1182 = vcmask 195584
        %v1184 = vsel %vm1182, %v1181, %v1176
        %v1185 = vld [vmem:[#allocation2] sm:$0xff]
        %v1186 = vld [vmem:[#allocation2 + $0x8] sm:$0xff]
        %v1187 = vld [vmem:[#allocation9] sm:$0xf]
        %v1188 = vld [vmem:[#allocation9 + $0x4] sm:$0xf]
        %v1189 = vld [vmem:[#allocation9 + $0x8] sm:$0xf]
        %v1190 = vld [vmem:[#allocation9 + $0xc] sm:$0xf]
        %v1195 = vunpack.c.l.b16 %v1187
        %v1196 = vunpack.c.l.b16 %v1188
        %v1197 = vunpack.c.l.b16 %v1189
        %v1198 = vunpack.c.l.b16 %v1190
        %v1199 = vpack.c.b16 %v1196, %v1195
        %v1200 = vpack.c.b16 %v1198, %v1197
        %v1203 = vsel %vm770, %v1184, 0
        %1205 = vmatpush.bf16.msra.mxu0 0
        %1206 = vmatpush.bf16.msra.mxu0 0
        %1207 = vmatpush.bf16.msra.mxu0 0
        %1208 = vmatpush.bf16.msra.mxu0 0
        %1209 = vmatpush.bf16.msra.mxu0 0
        %1210 = vmatpush.bf16.msra.mxu0 0
        %1211 = vmatpush.bf16.msra.mxu0 %v1200
        %1212 = vmatpush.bf16.msra.mxu0 %v1199
        %1213 = vmatmul.bf16.gmra.mxu0 %v1203
        %v1214 = vpop.f32.mrf.mxu0
        %v1215 = vadd.f32 0.0, %v1214
        %v1216 = vpop.f32.mrf.mxu0
        %v1217 = vadd.f32 0.0, %v1216
        %1218 = vdwg.mxu0
        %v1219 = vadd.f32 %v1185, %v1215
        %v1220 = vadd.f32 %v1186, %v1217
        %1221 = vst.msk [vmem:[#allocation2] sm:$0xff] %vm770, %v1219
        %1222 = vst.msk [vmem:[#allocation2 + $0x8] sm:$0xff] %vm770, %v1220
        // Predicated region
        $region109: #{tpu_custom_call.1} parent=83 // pred_check
          %p1223 = pneg %p736
        $region110: #{tpu_custom_call.1} parent=83 // pred_check_branch
          %1225 = sbr.rel (%p1223) target = $region112
        $region111: #{tpu_custom_call.1} parent=83 // pred_region
          %v1226 = vld [vmem:[%s718] sm:$0xff]
          %v1227 = vld [vmem:[%s718 + $0x8] sm:$0xff]
          %v1228 = vld [vmem:[#allocation2] sm:$0xff]
          %v1229 = vld [vmem:[#allocation2 + $0x8] sm:$0xff]
          %v1230 = vadd.f32 %v1226, %v1228
          %v1231 = vadd.f32 %v1227, %v1229
          %v1232 = vld [vmem:[%s9] sm:$0x1]
          %v1234 = vperm.slane %v1232, 0
          %v1236 = vadd.f32 %v1230, %v1234
          %v1237 = vadd.f32 %v1231, %v1234
          %v1238 = vld [vmem:[%s10] sm:$0x1]
          %v1239 = vld [vmem:[%s11] sm:$0x1]
          %v1240 = vsel %vm770, %v1236, 0.0
          %1241 = vadd.xlane.f32.xlu0 %v1240
          %v1242 = vpop.xlane.xlu0 %1241
          %v1243 = vsel %vm770, %v1237, 0.0
          %1244 = vadd.xlane.f32.xlu0 %v1243
          %v1245 = vpop.xlane.xlu0 %1244
          %v1246 = vrcp.pop 32.0
          %v1247 = vmul.f32 32.0, %v1246
          %v1248 = vsub.f32 1.0, %v1247
          %v1249 = vmul.f32 %v1246, %v1248
          %v1250 = vadd.f32 %v1246, %v1249
          %vm1251 = vweird.f32 %v1246
          %v1252 = vsel %vm1251, %v1246, %v1250
          %v1253 = vmul.f32 %v1242, %v1252
          %v1254 = vmul.f32 %v1245, %v1252
          %v1255 = vsub.f32 %v1236, %v1253
          %v1256 = vsub.f32 %v1237, %v1254
          %v1257 = vmul.f32 %v1255, %v1255
          %v1258 = vmul.f32 %v1256, %v1256
          %v1259 = vsel %vm770, %v1257, 0.0
          %1260 = vadd.xlane.f32.xlu0 %v1259
          %v1261 = vpop.xlane.xlu0 %1260
          %v1262 = vsel %vm770, %v1258, 0.0
          %1263 = vadd.xlane.f32.xlu0 %v1262
          %v1264 = vpop.xlane.xlu0 %1263
          %v1265 = vmul.f32 %v1261, %v1252
          %v1266 = vmul.f32 %v1264, %v1252
          %v1267 = vadd.f32 %v1265, 1e-06
          %v1268 = vadd.f32 %v1266, 1e-06
          %v1269 = vrsqrt.pop %v1267
          %v1270 = vmul.f32 %v1269, %v1267
          %v1271 = vmul.f32 %v1270, %v1269
          %v1272 = vmul.f32 0.5, %v1271
          %v1273 = vsub.f32 1.5, %v1272
          %v1274 = vmul.f32 %v1269, %v1273
          %vm1275 = vweird.f32 %v1267
          %vm1276 = vweird.f32 %v1269
          %vm1277 = vmor %vm1275, %vm1276
          %v1278 = vsel %vm1277, %v1269, %v1274
          %v1279 = vrsqrt.pop %v1268
          %v1280 = vmul.f32 %v1279, %v1268
          %v1281 = vmul.f32 %v1280, %v1279
          %v1282 = vmul.f32 0.5, %v1281
          %v1283 = vsub.f32 1.5, %v1282
          %v1284 = vmul.f32 %v1279, %v1283
          %vm1285 = vweird.f32 %v1268
          %vm1286 = vweird.f32 %v1279
          %vm1287 = vmor %vm1285, %vm1286
          %v1288 = vsel %vm1287, %v1279, %v1284
          %v1289 = vmul.f32 %v1255, %v1278
          %v1290 = vmul.f32 %v1256, %v1288
          %v1292 = vperm.slane %v1238, 0
          %v1294 = vmul.f32 %v1289, %v1292
          %v1295 = vmul.f32 %v1290, %v1292
          %v1297 = vperm.slane %v1239, 0
          %v1299 = vadd.f32 %v1294, %v1297
          %v1300 = vadd.f32 %v1295, %v1297
          %v1301 = vpack.c.bf16 %v1300, %v1299
          %v1302 = vld [vmem:[#allocation11] sm:$0xf]
          %v1303 = vld [vmem:[#allocation11 + $0x4] sm:$0xf]
          %v1304 = vld [vmem:[#allocation11 + $0x8] sm:$0xf]
          %v1305 = vld [vmem:[#allocation11 + $0xc] sm:$0xf]
          %v1306 = vld [vmem:[%s13] sm:$0x1]
          %v1308 = vperm.slane %v1306, 0
          %v1314 = vunpack.c.l.b16 %v1302
          %v1315 = vunpack.c.l.b16 %v1303
          %v1316 = vunpack.c.l.b16 %v1304
          %v1317 = vunpack.c.l.b16 %v1305
          %v1318 = vpack.c.b16 %v1315, %v1314
          %v1319 = vpack.c.b16 %v1317, %v1316
          %v1323 = vsel %vm770, %v1301, 0
          %1325 = vmatpush.bf16.msra.mxu0 0
          %1326 = vmatpush.bf16.msra.mxu0 0
          %1327 = vmatpush.bf16.msra.mxu0 0
          %1328 = vmatpush.bf16.msra.mxu0 0
          %1329 = vmatpush.bf16.msra.mxu0 0
          %1330 = vmatpush.bf16.msra.mxu0 0
          %1331 = vmatpush.bf16.msra.mxu0 %v1319
          %1332 = vmatpush.bf16.msra.mxu0 %v1318
          %1333 = vmatmul.bf16.gmra.mxu0 %v1323
          %v1334 = vpop.f32.mrf.mxu0
          %v1335 = vadd.f32 %v1308, %v1334
          %v1336 = vpop.f32.mrf.mxu0
          %v1337 = vadd.f32 %v1308, %v1336
          %1338 = vdwg.mxu0
          %v1339 = vmul.f32 %v1335, 0.5
          %v1340 = vmul.f32 %v1337, 0.5
          %v1341 = vmul.f32 %v1335, 0.044715
          %v1342 = vmul.f32 %v1337, 0.044715
          %v1343 = vmul.f32 %v1341, %v1335
          %v1344 = vmul.f32 %v1342, %v1337
          %v1345 = vmul.f32 %v1343, %v1335
          %v1346 = vmul.f32 %v1344, %v1337
          %v1347 = vadd.f32 %v1335, %v1345
          %v1348 = vadd.f32 %v1337, %v1346
          %v1349 = vmul.f32 %v1347, 0.7978846
          %v1350 = vmul.f32 %v1348, 0.7978846
          %v1351 = vtanh.pop %v1349
          %v1352 = vtanh.pop %v1350
          %v1353 = vadd.f32 %v1351, 1.0
          %v1354 = vadd.f32 %v1352, 1.0
          %v1355 = vmul.f32 %v1339, %v1353
          %v1356 = vmul.f32 %v1340, %v1354
          %v1357 = vpack.c.bf16 %v1356, %v1355
          %v1358 = vld [vmem:[%s14] sm:$0xf]
          %v1359 = vld [vmem:[%s14 + $0x4] sm:$0xf]
          %v1360 = vld [vmem:[%s14 + $0x8] sm:$0xf]
          %v1361 = vld [vmem:[%s14 + $0xc] sm:$0xf]
          %v1362 = vld [vmem:[%s14 + $0x10] sm:$0xf]
          %v1363 = vld [vmem:[%s14 + $0x14] sm:$0xf]
          %v1364 = vld [vmem:[%s14 + $0x18] sm:$0xf]
          %v1365 = vld [vmem:[%s14 + $0x1c] sm:$0xf]
          %v1374 = vunpack.c.l.b16 %v1358
          %v1375 = vunpack.c.l.b16 %v1359
          %v1376 = vunpack.c.l.b16 %v1360
          %v1377 = vunpack.c.l.b16 %v1361
          %v1378 = vunpack.c.l.b16 %v1362
          %v1379 = vunpack.c.l.b16 %v1363
          %v1380 = vunpack.c.l.b16 %v1364
          %v1381 = vunpack.c.l.b16 %v1365
          %v1382 = vpack.c.b16 %v1375, %v1374
          %v1383 = vpack.c.b16 %v1377, %v1376
          %v1384 = vpack.c.b16 %v1379, %v1378
          %v1385 = vpack.c.b16 %v1381, %v1380
          %vm1390 = vcmask 523264
          %v1392 = vsel %vm1390, %v1357, 0
          %1394 = vmatpush.bf16.msra.mxu0 0
          %1395 = vmatpush.bf16.msra.mxu0 0
          %1396 = vmatpush.bf16.msra.mxu0 0
          %1397 = vmatpush.bf16.msra.mxu0 0
          %1398 = vmatpush.bf16.msra.mxu0 %v1385
          %1399 = vmatpush.bf16.msra.mxu0 %v1384
          %1400 = vmatpush.bf16.msra.mxu0 %v1383
          %1401 = vmatpush.bf16.msra.mxu0 %v1382
          %1402 = vmatmul.bf16.gmra.mxu0 %v1392
          %v1403 = vpop.f32.mrf.mxu0
          %v1404 = vadd.f32 0.0, %v1403
          %v1405 = vpop.f32.mrf.mxu0
          %v1406 = vadd.f32 0.0, %v1405
          %1407 = vdwg.mxu0
          %v1408 = vadd.f32 %v1236, %v1404
          %v1409 = vadd.f32 %v1237, %v1406
          %v1410 = vld [vmem:[%s15] sm:$0x1]
          %v1412 = vperm.slane %v1410, 0
          %v1414 = vadd.f32 %v1408, %v1412
          %v1415 = vadd.f32 %v1409, %v1412
          %1416 = vst.msk [vmem:[%s709] sm:$0xff] %vm770, %v1414
          %1417 = vst.msk [vmem:[%s709 + $0x8] sm:$0xff] %vm770, %v1415
        $region112: #{tpu_custom_call.1} parent=83 // pred_fallthru
          _
        %s1418 = sand.u32 %s445, 1
        %s1419 = scalar_lea.sflag [#allocation5], %s1418
        %s1420 = sand.u32 %s445, 1
        %s1421 = smul.addr %s1420, 16
        %s1422 = scalar_lea.vmem [#allocation12], %s1421
        // Predicated region
        $region113: #{tpu_custom_call.1} parent=83 // pred_check
          %p1423 = pneg %p455
        $region114: #{tpu_custom_call.1} parent=83 // pred_check_branch
          %1425 = sbr.rel (%p1423) target = $region116
        $region115: #{tpu_custom_call.1} parent=83 // pred_region
          %s1426 = smul.u32 2, %s39
          %1428 = vsyncadd %s1419, 0
          %s1429 = smul.addr %s38, 2
          %s1430 = sadd.s32 %s1426, %s1429
          %s1431 = smul.addr %s1430, 8
          %s1432 = scalar_lea.hbm %s16, %s1431
          %s1433 = sshll.u32 %s1422, 4
          %s1434 = int_to_ptr.vmem [resolvable:$true] %s1433
          %s1435 = sshll.u32 %s1432, 4
          %s1436 = int_to_ptr.hbm [resolvable:$true] %s1435
          %1441 = dma.vmem_to_hbm [thread:$0]  %s1434, 256, %s1436, %s1419, 128, 128, 8
        $region116: #{tpu_custom_call.1} parent=83 // pred_fallthru
          _
      $region84: #{tpu_custom_call.1} parent=5 // pred_fallthru
        _
      %p1442 = scmp.le.s32.totalorder 2, %s28
      // Predicated region
      $region117: #{tpu_custom_call.1} parent=5 // pred_check
        %p1443 = pneg %p1442
      $region118: #{tpu_custom_call.1} parent=5 // pred_check_branch
        %1445 = sbr.rel (%p1443) target = $region120
      $region119: #{tpu_custom_call.1} parent=5 // pred_region
        %s1446 = ssub.s32 %s28, 2
        // Predicated region
        $region121: #{tpu_custom_call.1} parent=119 // pred_check
          %p1447 = pneg %p461
        $region122: #{tpu_custom_call.1} parent=119 // pred_check_branch
          %1449 = sbr.rel (%p1447) target = $region124
        $region123: #{tpu_custom_call.1} parent=119 // pred_region
          %s1450 = sand.u32 %s446, 1
          %s1451 = scalar_lea.sflag [#allocation5], %s1450
          %s1452 = sand.u32 %s446, 1
          %s1453 = smul.addr %s1452, 16
          %s1454 = scalar_lea.vmem [#allocation12], %s1453
          %1456 = dma.done %s1451, 256
        $region124: #{tpu_custom_call.1} parent=119 // pred_fallthru
          _
      $region120: #{tpu_custom_call.1} parent=5 // pred_fallthru
        _
    $region6: #{tpu_custom_call.1} parent=1 // loop_footer
      %s32 = sadd.s32 1, %s28
    $region7: #{tpu_custom_call.1} parent=1 // loop_footer_branch
      %27 = sbr.rel target = $region3
    $region8: #{tpu_custom_call.1} parent=1 // loop_exit
      _
    %1457 = vsyncpa [#allocation4], 1
    %s1458 = scalar_lea.sflag [#allocation4], 1
    %1459 = vsyncpa %s1458, 1
    %1460 = vsyncpa [#allocation7], 1
    %1461 = vsyncpa [#allocation10], 1
    %1462 = vsyncpa [#allocation5], 1
    %s1463 = scalar_lea.sflag [#allocation5], 1
    %1464 = vsyncpa %s1463, 1

// kernel: tpu_custom_call.1
$region0: #{tpu_custom_call.1}
  #allocation0 [shape = 'u32[]', space=smem, size = 0x4, offset = 0x4, fixed_abs, tag = 'smem constant byte address 0x4 - core index']
  #allocation1 [shape = 'u32[72,128]{1,0:T(1,128)}', space=vmem, size = 0x9000, scoped, tag = 'internal scratch']
  #allocation2 [shape = 'f32[16,32]{1,0:T(8,128)}', space=vmem, size = 0x2000, scoped, tag = 'scratch operand']
  %s0 = inlined_call_operand.vmem [shape: f32[2,16,32], index: 0, kind: input, shape index: {}]
  %s1 = inlined_call_operand.vmem [shape: bf16[2,16,32], index: 1, kind: input, shape index: {}]
  %s2 = inlined_call_operand.hbm [shape: bf16[1,32,32], index: 2, kind: input, shape index: {}]
  %s3 = inlined_call_operand.vmem [shape: f32[1,1,32], index: 3, kind: input, shape index: {}]
  %s4 = inlined_call_operand.hbm [shape: bf16[1,32,32], index: 4, kind: input, shape index: {}]
  %s5 = inlined_call_operand.vmem [shape: f32[1,1,32], index: 5, kind: input, shape index: {}]
  %s6 = inlined_call_operand.hbm [shape: bf16[1,32,32], index: 6, kind: input, shape index: {}]
  %s7 = inlined_call_operand.vmem [shape: f32[1,1,32], index: 7, kind: input, shape index: {}]
  %s8 = inlined_call_operand.hbm [shape: bf16[1,32,32], index: 8, kind: input, shape index: {}]
  %s9 = inlined_call_operand.vmem [shape: f32[1,32], index: 9, kind: input, shape index: {}]
  %s10 = inlined_call_operand.vmem [shape: f32[1,32], index: 10, kind: input, shape index: {}]
  %s11 = inlined_call_operand.vmem [shape: f32[1,32], index: 11, kind: input, shape index: {}]
  %s12 = inlined_call_operand.hbm [shape: bf16[32,64], index: 12, kind: input, shape index: {}]
  %s13 = inlined_call_operand.vmem [shape: f32[1,64], index: 13, kind: input, shape index: {}]
  %s14 = inlined_call_operand.vmem [shape: bf16[64,32], index: 14, kind: input, shape index: {}]
  %s15 = inlined_call_operand.vmem [shape: f32[1,32], index: 15, kind: input, shape index: {}]
  %s16 = inlined_call_operand.hbm [shape: f32[2,16,32], index: 16, kind: output, shape index: {}]
  %s17 = sld [smem:[#allocation0]]
  $region125: #{tpu_custom_call.1} parent=0
    _
  %s19 = ssub.s32 1, %s17
  %s20 = scalar_select 0, %s19, %s17
  $region1: #{tpu_custom_call.1} parent=0
    #allocation3 [shape = 'u8[8192]{0}', space=vmem, size = 0x2000, scoped, tag = 'input window, operand 2, single buffered']
    #allocation4 [shape = 's32[2]{0}', space=sflag, size = 0x8, scoped, tag = 'scoped memory for tpu_custom_call.1']
    #allocation5 [shape = 's32[2]{0}', space=sflag, size = 0x8, scoped, tag = 'scoped memory for tpu_custom_call.1']
    #allocation6 [shape = 'u8[8192]{0}', space=vmem, size = 0x2000, scoped, tag = 'input window, operand 4, single buffered']
    #allocation7 [shape = 's32[1]{0}', space=sflag, size = 0x4, scoped, tag = 'scoped memory for tpu_custom_call.1']
    #allocation8 [shape = 'u8[8192]{0}', space=vmem, size = 0x2000, scoped, tag = 'input window, operand 6, single buffered']
    #allocation9 [shape = 'u8[8192]{0}', space=vmem, size = 0x2000, scoped, tag = 'input window, operand 8, single buffered']
    #allocation10 [shape = 's32[1]{0}', space=sflag, size = 0x4, scoped, tag = 'scoped memory for tpu_custom_call.1']
    #allocation11 [shape = 'u8[8192]{0}', space=vmem, size = 0x2000, scoped, tag = 'input window, operand 12, single buffered']
    #allocation12 [shape = 'u8[16384]{0}', space=vmem, size = 0x4000, scoped, tag = 'output window, operand 0']
    %21 = vsyncpa [#allocation4], 0
    %22 = vsyncpa [#allocation7], 0
    %23 = vsyncpa [#allocation10], 0
    %24 = vsyncpa [#allocation5], 0
    %s25 = scalar_lea.sflag [#allocation5], 1
    %26 = vsyncpa %s25, 0
    loop: start=0, step=1, limit=4
    $region2: #{tpu_custom_call.1} parent=1 // loop_pre_header
      _
    $region3: #{tpu_custom_call.1} parent=1 // loop_header
      %s28 = sphi 0, %s32
      %p29 = scmp.ge.s32.totalorder %s28, 4
      %s35 = sphi 0, %s54
      %s36 = sphi 0, %s50
      %s37 = sphi 0, %s46
      %s38 = sphi 0, %s35
      %s39 = sphi 0, %s36
      %s40 = sphi 0, %s37
      %s41 = sphi 0, %s38
      %s42 = sphi 0, %s39
      %s43 = sphi 0, %s40
      %s59 = sphi 0, %s61
      %s62 = sphi 0, %s59
      %s63 = sphi 0, %s62
      %s79 = sphi 0, %s63
      %s85 = sphi 0, %s87
      %s88 = sphi 0, %s85
      %s89 = sphi 0, %s88
      %s105 = sphi 0, %s89
      %s111 = sphi 0, %s113
      %s114 = sphi 0, %s111
      %s115 = sphi 0, %s114
      %s131 = sphi 0, %s115
      %s137 = sphi 0, %s139
      %s140 = sphi 0, %s137
      %s141 = sphi 0, %s140
      %s157 = sphi 0, %s141
      %s163 = sphi 0, %s165
      %s166 = sphi 0, %s163
      %s167 = sphi 0, %s166
      %s183 = sphi 0, %s167
      %s189 = sphi 0, %s191
      %s192 = sphi 0, %s189
      %s193 = sphi 0, %s192
      %s209 = sphi 0, %s193
      %s215 = sphi 0, %s217
      %s218 = sphi 0, %s215
      %s219 = sphi 0, %s218
      %s235 = sphi 0, %s219
      %s241 = sphi 0, %s243
      %s244 = sphi 0, %s241
      %s245 = sphi 0, %s244
      %s261 = sphi 0, %s245
      %s267 = sphi 0, %s269
      %s270 = sphi 0, %s267
      %s271 = sphi 0, %s270
      %s287 = sphi 0, %s271
      %s291 = sphi 0, %s291
      %s293 = sphi 0, %s291
      %s294 = sphi 0, %s293
      %s308 = sphi 0, %s294
      %s312 = sphi 0, %s312
      %s314 = sphi 0, %s312
      %s315 = sphi 0, %s314
      %s329 = sphi 0, %s315
      %s333 = sphi 0, %s333
      %s335 = sphi 0, %s333
      %s336 = sphi 0, %s335
      %s350 = sphi 0, %s336
      %s354 = sphi 0, %s354
      %s356 = sphi 0, %s354
      %s357 = sphi 0, %s356
      %s371 = sphi 0, %s357
      %s375 = sphi 0, %s375
      %s377 = sphi 0, %s375
      %s378 = sphi 0, %s377
      %s392 = sphi 0, %s378
      %s396 = sphi 0, %s396
      %s398 = sphi 0, %s396
      %s399 = sphi 0, %s398
      %s413 = sphi 0, %s399
      %s417 = sphi 0, %s417
      %s419 = sphi 0, %s417
      %s420 = sphi 0, %s419
      %s434 = sphi 0, %s420
      %s442 = sphi 0, %s444
      %s445 = sphi 0, %s442
      %s446 = sphi 0, %s445
      %s462 = sphi 0, %s446
    $region4: #{tpu_custom_call.1} parent=1 // loop_header_branch
      %31 = sbr.rel (%p29) target = $region8
    $region5: #{tpu_custom_call.1} parent=1 // loop_body
      %s33 = ssub.s32 %s28, 1
      %s34 = ssub.s32 %s28, 2
      %s44 = sadd.s32 1, %s37
      %p45 = scmp.ge.s32.totalorder %s44, 1
      %s46 = scalar_select %p45, 0, %s44
      %s47 = sadd.s32 1, %s36
      %s48 = scalar_select %p45, %s47, %s36
      %p49 = scmp.ge.s32.totalorder %s48, 1
      %s50 = scalar_select %p49, 0, %s48
      %s51 = sadd.s32 1, %s35
      %s52 = scalar_select %p49, %s51, %s35
      %p53 = scmp.ge.s32.totalorder %s52, 2
      %s54 = scalar_select %p53, 0, %s52
      %s55 = ssub.s32 %s35, %s54
      %s56 = ssub.s32 %s36, %s50
      %s57 = sor.u32 %s55, %s56
      %p58 = scmp.eq.s32.totalorder %s57, 0
      %s60 = sadd.s32 %s59, 1
      %s61 = scalar_select %p58, %s59, %s60
      %p64 = pneg %p58
      %p65 = scmp.eq.s32.totalorder %s28, 1
      %p66 = por %p64, %p65
      %p67 = scmp.ne.s32.totalorder %s59, %s62
      %p68 = scmp.eq.s32.totalorder %s28, 0
      %p69 = por %p67, %p68
      %p70 = scmp.ne.s32.totalorder %s59, %s62
      %p71 = scmp.eq.s32.totalorder %s33, 1
      %p72 = por %p70, %p71
      %p73 = scmp.ne.s32.totalorder %s62, %s63
      %p74 = scmp.eq.s32.totalorder %s33, 0
      %p75 = por %p73, %p74
      %p76 = scmp.ne.s32.totalorder %s62, %s63
      %p77 = scmp.eq.s32.totalorder %s34, 1
      %p78 = por %p76, %p77
      %p80 = scmp.ne.s32.totalorder %s63, %s79
      %p81 = scmp.eq.s32.totalorder %s34, 0
      %p82 = por %p80, %p81
      %s83 = ssub.s32 %s35, %s54
      %p84 = scmp.eq.s32.totalorder %s83, 0
      %s86 = sadd.s32 %s85, 1
      %s87 = scalar_select %p84, %s85, %s86
      %p90 = pneg %p84
      %p91 = scmp.eq.s32.totalorder %s28, 1
      %p92 = por %p90, %p91
      %p93 = scmp.ne.s32.totalorder %s85, %s88
      %p94 = scmp.eq.s32.totalorder %s28, 0
      %p95 = por %p93, %p94
      %p96 = scmp.ne.s32.totalorder %s85, %s88
      %p97 = scmp.eq.s32.totalorder %s33, 1
      %p98 = por %p96, %p97
      %p99 = scmp.ne.s32.totalorder %s88, %s89
      %p100 = scmp.eq.s32.totalorder %s33, 0
      %p101 = por %p99, %p100
      %p102 = scmp.ne.s32.totalorder %s88, %s89
      %p103 = scmp.eq.s32.totalorder %s34, 1
      %p104 = por %p102, %p103
      %p106 = scmp.ne.s32.totalorder %s89, %s105
      %p107 = scmp.eq.s32.totalorder %s34, 0
      %p108 = por %p106, %p107
      %s109 = ssub.s32 %s37, %s46
      %p110 = scmp.eq.s32.totalorder %s109, 0
      %s112 = sadd.s32 %s111, 1
      %s113 = scalar_select %p110, %s111, %s112
      %p116 = pneg %p110
      %p117 = scmp.eq.s32.totalorder %s28, 1
      %p118 = por %p116, %p117
      %p119 = scmp.ne.s32.totalorder %s111, %s114
      %p120 = scmp.eq.s32.totalorder %s28, 0
      %p121 = por %p119, %p120
      %p122 = scmp.ne.s32.totalorder %s111, %s114
      %p123 = scmp.eq.s32.totalorder %s33, 1
      %p124 = por %p122, %p123
      %p125 = scmp.ne.s32.totalorder %s114, %s115
      %p126 = scmp.eq.s32.totalorder %s33, 0
      %p127 = por %p125, %p126
      %p128 = scmp.ne.s32.totalorder %s114, %s115
      %p129 = scmp.eq.s32.totalorder %s34, 1
      %p130 = por %p128, %p129
      %p132 = scmp.ne.s32.totalorder %s115, %s131
      %p133 = scmp.eq.s32.totalorder %s34, 0
      %p134 = por %p132, %p133
      %s135 = ssub.s32 %s37, %s46
      %p136 = scmp.eq.s32.totalorder %s135, 0
      %s138 = sadd.s32 %s137, 1
      %s139 = scalar_select %p136, %s137, %s138
      %p142 = pneg %p136
      %p143 = scmp.eq.s32.totalorder %s28, 1
      %p144 = por %p142, %p143
      %p145 = scmp.ne.s32.totalorder %s137, %s140
      %p146 = scmp.eq.s32.totalorder %s28, 0
      %p147 = por %p145, %p146
      %p148 = scmp.ne.s32.totalorder %s137, %s140
      %p149 = scmp.eq.s32.totalorder %s33, 1
      %p150 = por %p148, %p149
      %p151 = scmp.ne.s32.totalorder %s140, %s141
      %p152 = scmp.eq.s32.totalorder %s33, 0
      %p153 = por %p151, %p152
      %p154 = scmp.ne.s32.totalorder %s140, %s141
      %p155 = scmp.eq.s32.totalorder %s34, 1
      %p156 = por %p154, %p155
      %p158 = scmp.ne.s32.totalorder %s141, %s157
      %p159 = scmp.eq.s32.totalorder %s34, 0
      %p160 = por %p158, %p159
      %s161 = ssub.s32 %s37, %s46
      %p162 = scmp.eq.s32.totalorder %s161, 0
      %s164 = sadd.s32 %s163, 1
      %s165 = scalar_select %p162, %s163, %s164
      %p168 = pneg %p162
      %p169 = scmp.eq.s32.totalorder %s28, 1
      %p170 = por %p168, %p169
      %p171 = scmp.ne.s32.totalorder %s163, %s166
      %p172 = scmp.eq.s32.totalorder %s28, 0
      %p173 = por %p171, %p172
      %p174 = scmp.ne.s32.totalorder %s163, %s166
      %p175 = scmp.eq.s32.totalorder %s33, 1
      %p176 = por %p174, %p175
      %p177 = scmp.ne.s32.totalorder %s166, %s167
      %p178 = scmp.eq.s32.totalorder %s33, 0
      %p179 = por %p177, %p178
      %p180 = scmp.ne.s32.totalorder %s166, %s167
      %p181 = scmp.eq.s32.totalorder %s34, 1
      %p182 = por %p180, %p181
      %p184 = scmp.ne.s32.totalorder %s167, %s183
      %p185 = scmp.eq.s32.totalorder %s34, 0
      %p186 = por %p184, %p185
      %s187 = ssub.s32 %s37, %s46
      %p188 = scmp.eq.s32.totalorder %s187, 0
      %s190 = sadd.s32 %s189, 1
      %s191 = scalar_select %p188, %s189, %s190
      %p194 = pneg %p188
      %p195 = scmp.eq.s32.totalorder %s28, 1
      %p196 = por %p194, %p195
      %p197 = scmp.ne.s32.totalorder %s189, %s192
      %p198 = scmp.eq.s32.totalorder %s28, 0
      %p199 = por %p197, %p198
      %p200 = scmp.ne.s32.totalorder %s189, %s192
      %p201 = scmp.eq.s32.totalorder %s33, 1
      %p202 = por %p200, %p201
      %p203 = scmp.ne.s32.totalorder %s192, %s193
      %p204 = scmp.eq.s32.totalorder %s33, 0
      %p205 = por %p203, %p204
      %p206 = scmp.ne.s32.totalorder %s192, %s193
      %p207 = scmp.eq.s32.totalorder %s34, 1
      %p208 = por %p206, %p207
      %p210 = scmp.ne.s32.totalorder %s193, %s209
      %p211 = scmp.eq.s32.totalorder %s34, 0
      %p212 = por %p210, %p211
      %s213 = ssub.s32 %s37, %s46
      %p214 = scmp.eq.s32.totalorder %s213, 0
      %s216 = sadd.s32 %s215, 1
      %s217 = scalar_select %p214, %s215, %s216
      %p220 = pneg %p214
      %p221 = scmp.eq.s32.totalorder %s28, 1
      %p222 = por %p220, %p221
      %p223 = scmp.ne.s32.totalorder %s215, %s218
      %p224 = scmp.eq.s32.totalorder %s28, 0
      %p225 = por %p223, %p224
      %p226 = scmp.ne.s32.totalorder %s215, %s218
      %p227 = scmp.eq.s32.totalorder %s33, 1
      %p228 = por %p226, %p227
      %p229 = scmp.ne.s32.totalorder %s218, %s219
      %p230 = scmp.eq.s32.totalorder %s33, 0
      %p231 = por %p229, %p230
      %p232 = scmp.ne.s32.totalorder %s218, %s219
      %p233 = scmp.eq.s32.totalorder %s34, 1
      %p234 = por %p232, %p233
      %p236 = scmp.ne.s32.totalorder %s219, %s235
      %p237 = scmp.eq.s32.totalorder %s34, 0
      %p238 = por %p236, %p237
      %s239 = ssub.s32 %s37, %s46
      %p240 = scmp.eq.s32.totalorder %s239, 0
      %s242 = sadd.s32 %s241, 1
      %s243 = scalar_select %p240, %s241, %s242
      %p246 = pneg %p240
      %p247 = scmp.eq.s32.totalorder %s28, 1
      %p248 = por %p246, %p247
      %p249 = scmp.ne.s32.totalorder %s241, %s244
      %p250 = scmp.eq.s32.totalorder %s28, 0
      %p251 = por %p249, %p250
      %p252 = scmp.ne.s32.totalorder %s241, %s244
      %p253 = scmp.eq.s32.totalorder %s33, 1
      %p254 = por %p252, %p253
      %p255 = scmp.ne.s32.totalorder %s244, %s245
      %p256 = scmp.eq.s32.totalorder %s33, 0
      %p257 = por %p255, %p256
      %p258 = scmp.ne.s32.totalorder %s244, %s245
      %p259 = scmp.eq.s32.totalorder %s34, 1
      %p260 = por %p258, %p259
      %p262 = scmp.ne.s32.totalorder %s245, %s261
      %p263 = scmp.eq.s32.totalorder %s34, 0
      %p264 = por %p262, %p263
      %s265 = ssub.s32 %s37, %s46
      %p266 = scmp.eq.s32.totalorder %s265, 0
      %s268 = sadd.s32 %s267, 1
      %s269 = scalar_select %p266, %s267, %s268
      %p272 = pneg %p266
      %p273 = scmp.eq.s32.totalorder %s28, 1
      %p274 = por %p272, %p273
      %p275 = scmp.ne.s32.totalorder %s267, %s270
      %p276 = scmp.eq.s32.totalorder %s28, 0
      %p277 = por %p275, %p276
      %p278 = scmp.ne.s32.totalorder %s267, %s270
      %p279 = scmp.eq.s32.totalorder %s33, 1
      %p280 = por %p278, %p279
      %p281 = scmp.ne.s32.totalorder %s270, %s271
      %p282 = scmp.eq.s32.totalorder %s33, 0
      %p283 = por %p281, %p282
      %p284 = scmp.ne.s32.totalorder %s270, %s271
      %p285 = scmp.eq.s32.totalorder %s34, 1
      %p286 = por %p284, %p285
      %p288 = scmp.ne.s32.totalorder %s271, %s287
      %p289 = scmp.eq.s32.totalorder %s34, 0
      %p290 = por %p288, %p289
      %s292 = sadd.s32 %s291, 1
      %p295 = scmp.eq.s32.totalorder %s28, 1
      %p296 = scmp.ne.s32.totalorder %s291, %s293
      %p297 = scmp.eq.s32.totalorder %s28, 0
      %p298 = por %p296, %p297
      %p299 = scmp.ne.s32.totalorder %s291, %s293
      %p300 = scmp.eq.s32.totalorder %s33, 1
      %p301 = por %p299, %p300
      %p302 = scmp.ne.s32.totalorder %s293, %s294
      %p303 = scmp.eq.s32.totalorder %s33, 0
      %p304 = por %p302, %p303
      %p305 = scmp.ne.s32.totalorder %s293, %s294
      %p306 = scmp.eq.s32.totalorder %s34, 1
      %p307 = por %p305, %p306
      %p309 = scmp.ne.s32.totalorder %s294, %s308
      %p310 = scmp.eq.s32.totalorder %s34, 0
      %p311 = por %p309, %p310
      %s313 = sadd.s32 %s312, 1
      %p316 = scmp.eq.s32.totalorder %s28, 1
      %p317 = scmp.ne.s32.totalorder %s312, %s314
      %p318 = scmp.eq.s32.totalorder %s28, 0
      %p319 = por %p317, %p318
      %p320 = scmp.ne.s32.totalorder %s312, %s314
      %p321 = scmp.eq.s32.totalorder %s33, 1
      %p322 = por %p320, %p321
      %p323 = scmp.ne.s32.totalorder %s314, %s315
      %p324 = scmp.eq.s32.totalorder %s33, 0
      %p325 = por %p323, %p324
      %p326 = scmp.ne.s32.totalorder %s314, %s315
      %p327 = scmp.eq.s32.totalorder %s34, 1
      %p328 = por %p326, %p327
      %p330 = scmp.ne.s32.totalorder %s315, %s329
      %p331 = scmp.eq.s32.totalorder %s34, 0
      %p332 = por %p330, %p331
      %s334 = sadd.s32 %s333, 1
      %p337 = scmp.eq.s32.totalorder %s28, 1
      %p338 = scmp.ne.s32.totalorder %s333, %s335
      %p339 = scmp.eq.s32.totalorder %s28, 0
      %p340 = por %p338, %p339
      %p341 = scmp.ne.s32.totalorder %s333, %s335
      %p342 = scmp.eq.s32.totalorder %s33, 1
      %p343 = por %p341, %p342
      %p344 = scmp.ne.s32.totalorder %s335, %s336
      %p345 = scmp.eq.s32.totalorder %s33, 0
      %p346 = por %p344, %p345
      %p347 = scmp.ne.s32.totalorder %s335, %s336
      %p348 = scmp.eq.s32.totalorder %s34, 1
      %p349 = por %p347, %p348
      %p351 = scmp.ne.s32.totalorder %s336, %s350
      %p352 = scmp.eq.s32.totalorder %s34, 0
      %p353 = por %p351, %p352
      %s355 = sadd.s32 %s354, 1
      %p358 = scmp.eq.s32.totalorder %s28, 1
      %p359 = scmp.ne.s32.totalorder %s354, %s356
      %p360 = scmp.eq.s32.totalorder %s28, 0
      %p361 = por %p359, %p360
      %p362 = scmp.ne.s32.totalorder %s354, %s356
      %p363 = scmp.eq.s32.totalorder %s33, 1
      %p364 = por %p362, %p363
      %p365 = scmp.ne.s32.totalorder %s356, %s357
      %p366 = scmp.eq.s32.totalorder %s33, 0
      %p367 = por %p365, %p366
      %p368 = scmp.ne.s32.totalorder %s356, %s357
      %p369 = scmp.eq.s32.totalorder %s34, 1
      %p370 = por %p368, %p369
      %p372 = scmp.ne.s32.totalorder %s357, %s371
      %p373 = scmp.eq.s32.totalorder %s34, 0
      %p374 = por %p372, %p373
      %s376 = sadd.s32 %s375, 1
      %p379 = scmp.eq.s32.totalorder %s28, 1
      %p380 = scmp.ne.s32.totalorder %s375, %s377
      %p381 = scmp.eq.s32.totalorder %s28, 0
      %p382 = por %p380, %p381
      %p383 = scmp.ne.s32.totalorder %s375, %s377
      %p384 = scmp.eq.s32.totalorder %s33, 1
      %p385 = por %p383, %p384
      %p386 = scmp.ne.s32.totalorder %s377, %s378
      %p387 = scmp.eq.s32.totalorder %s33, 0
      %p388 = por %p386, %p387
      %p389 = scmp.ne.s32.totalorder %s377, %s378
      %p390 = scmp.eq.s32.totalorder %s34, 1
      %p391 = por %p389, %p390
      %p393 = scmp.ne.s32.totalorder %s378, %s392
      %p394 = scmp.eq.s32.totalorder %s34, 0
      %p395 = por %p393, %p394
      %s397 = sadd.s32 %s396, 1
      %p400 = scmp.eq.s32.totalorder %s28, 1
      %p401 = scmp.ne.s32.totalorder %s396, %s398
      %p402 = scmp.eq.s32.totalorder %s28, 0
      %p403 = por %p401, %p402
      %p404 = scmp.ne.s32.totalorder %s396, %s398
      %p405 = scmp.eq.s32.totalorder %s33, 1
      %p406 = por %p404, %p405
      %p407 = scmp.ne.s32.totalorder %s398, %s399
      %p408 = scmp.eq.s32.totalorder %s33, 0
      %p409 = por %p407, %p408
      %p410 = scmp.ne.s32.totalorder %s398, %s399
      %p411 = scmp.eq.s32.totalorder %s34, 1
      %p412 = por %p410, %p411
      %p414 = scmp.ne.s32.totalorder %s399, %s413
      %p415 = scmp.eq.s32.totalorder %s34, 0
      %p416 = por %p414, %p415
      %s418 = sadd.s32 %s417, 1
      %p421 = scmp.eq.s32.totalorder %s28, 1
      %p422 = scmp.ne.s32.totalorder %s417, %s419
      %p423 = scmp.eq.s32.totalorder %s28, 0
      %p424 = por %p422, %p423
      %p425 = scmp.ne.s32.totalorder %s417, %s419
      %p426 = scmp.eq.s32.totalorder %s33, 1
      %p427 = por %p425, %p426
      %p428 = scmp.ne.s32.totalorder %s419, %s420
      %p429 = scmp.eq.s32.totalorder %s33, 0
      %p430 = por %p428, %p429
      %p431 = scmp.ne.s32.totalorder %s419, %s420
      %p432 = scmp.eq.s32.totalorder %s34, 1
      %p433 = por %p431, %p432
      %p435 = scmp.ne.s32.totalorder %s420, %s434
      %p436 = scmp.eq.s32.totalorder %s34, 0
      %p437 = por %p435, %p436
      %s438 = ssub.s32 %s35, %s54
      %s439 = ssub.s32 %s36, %s50
      %s440 = sor.u32 %s438, %s439
      %p441 = scmp.eq.s32.totalorder %s440, 0
      %s443 = sadd.s32 %s442, 1
      %s444 = scalar_select %p441, %s442, %s443
      %p447 = pneg %p441
      %p448 = scmp.eq.s32.totalorder %s28, 1
      %p449 = por %p447, %p448
      %p450 = scmp.ne.s32.totalorder %s442, %s445
      %p451 = scmp.eq.s32.totalorder %s28, 0
      %p452 = por %p450, %p451
      %p453 = scmp.ne.s32.totalorder %s442, %s445
      %p454 = scmp.eq.s32.totalorder %s33, 1
      %p455 = por %p453, %p454
      %p456 = scmp.ne.s32.totalorder %s445, %s446
      %p457 = scmp.eq.s32.totalorder %s33, 0
      %p458 = por %p456, %p457
      %p459 = scmp.ne.s32.totalorder %s445, %s446
      %p460 = scmp.eq.s32.totalorder %s34, 1
      %p461 = por %p459, %p460
      %p463 = scmp.ne.s32.totalorder %s446, %s462
      %p464 = scmp.eq.s32.totalorder %s34, 0
      %p465 = por %p463, %p464
      %p466 = scmp.le.s32.totalorder 1, %s28
      %p467 = scmp.lt.s32.totalorder %s28, 3
      %p468 = pnand %p466, %p467
      %p469 = pneg %p468
      // Predicated region
      $region9: #{tpu_custom_call.1} parent=5 // pred_check
        _
      $region10: #{tpu_custom_call.1} parent=5 // pred_check_branch
        %471 = sbr.rel (%p468) target = $region12
      $region11: #{tpu_custom_call.1} parent=5 // pred_region
        %s472 = ssub.s32 %s28, 1
        // Predicated region
        $region13: #{tpu_custom_call.1} parent=11 // pred_check
          %p473 = pneg %p127
        $region14: #{tpu_custom_call.1} parent=11 // pred_check_branch
          %475 = sbr.rel (%p473) target = $region16
        $region15: #{tpu_custom_call.1} parent=11 // pred_region
          %477 = vsyncadd [#allocation4], 0
          %s478 = smul.addr %s40, 4
          %s479 = smul.addr %s478, 4
          %s480 = scalar_lea.hbm %s2, %s479
          %s481 = sshll.u32 %s480, 4
          %s482 = int_to_ptr.hbm [resolvable:$true] %s481
          %s483 = sshll.u32 [#allocation3], 4
          %s484 = int_to_ptr.vmem [resolvable:$true] %s483
          %489 = dma.hbm_to_vmem [thread:$0]  %s482, 256, %s484, [#allocation4], 64, 64, 4
        $region16: #{tpu_custom_call.1} parent=11 // pred_fallthru
          _
        // Predicated region
        $region17: #{tpu_custom_call.1} parent=11 // pred_check
          %p490 = pneg %p153
        $region18: #{tpu_custom_call.1} parent=11 // pred_check_branch
          %492 = sbr.rel (%p490) target = $region20
        $region19: #{tpu_custom_call.1} parent=11 // pred_region
          %p493 = scmp.lt.s32.totalorder %s40, 0
          %s494 = scalar_select %p493, %s40, 0
          %s495 = scalar_lea.vmem %s3, %s494
        $region20: #{tpu_custom_call.1} parent=11 // pred_fallthru
          _
        // Predicated region
        $region21: #{tpu_custom_call.1} parent=11 // pred_check
          %p496 = pneg %p179
        $region22: #{tpu_custom_call.1} parent=11 // pred_check_branch
          %498 = sbr.rel (%p496) target = $region24
        $region23: #{tpu_custom_call.1} parent=11 // pred_region
          %500 = vsyncadd [#allocation7], 0
          %s501 = smul.addr %s40, 4
          %s502 = smul.addr %s501, 4
          %s503 = scalar_lea.hbm %s4, %s502
          %s504 = sshll.u32 %s503, 4
          %s505 = int_to_ptr.hbm [resolvable:$true] %s504
          %s506 = sshll.u32 [#allocation6], 4
          %s507 = int_to_ptr.vmem [resolvable:$true] %s506
          %512 = dma.hbm_to_vmem [thread:$0]  %s505, 256, %s507, [#allocation7], 64, 64, 4
        $region24: #{tpu_custom_call.1} parent=11 // pred_fallthru
          _
        // Predicated region
        $region25: #{tpu_custom_call.1} parent=11 // pred_check
          %p513 = pneg %p205
        $region26: #{tpu_custom_call.1} parent=11 // pred_check_branch
          %515 = sbr.rel (%p513) target = $region28
        $region27: #{tpu_custom_call.1} parent=11 // pred_region
          %p516 = scmp.lt.s32.totalorder %s40, 0
          %s517 = scalar_select %p516, %s40, 0
          %s518 = scalar_lea.vmem %s5, %s517
        $region28: #{tpu_custom_call.1} parent=11 // pred_fallthru
          _
        // Predicated region
        $region29: #{tpu_custom_call.1} parent=11 // pred_check
          %p519 = pneg %p231
        $region30: #{tpu_custom_call.1} parent=11 // pred_check_branch
          %521 = sbr.rel (%p519) target = $region32
        $region31: #{tpu_custom_call.1} parent=11 // pred_region
          %523 = vsyncadd [#allocation7], 0
          %s524 = smul.addr %s40, 4
          %s525 = smul.addr %s524, 4
          %s526 = scalar_lea.hbm %s6, %s525
          %s527 = sshll.u32 %s526, 4
          %s528 = int_to_ptr.hbm [resolvable:$true] %s527
          %s529 = sshll.u32 [#allocation8], 4
          %s530 = int_to_ptr.vmem [resolvable:$true] %s529
          %535 = dma.hbm_to_vmem [thread:$0]  %s528, 256, %s530, [#allocation7], 64, 64, 4
        $region32: #{tpu_custom_call.1} parent=11 // pred_fallthru
          _
        // Predicated region
        $region33: #{tpu_custom_call.1} parent=11 // pred_check
          %p536 = pneg %p257
        $region34: #{tpu_custom_call.1} parent=11 // pred_check_branch
          %538 = sbr.rel (%p536) target = $region36
        $region35: #{tpu_custom_call.1} parent=11 // pred_region
          %p539 = scmp.lt.s32.totalorder %s40, 0
          %s540 = scalar_select %p539, %s40, 0
          %s541 = scalar_lea.vmem %s7, %s540
        $region36: #{tpu_custom_call.1} parent=11 // pred_fallthru
          _
        // Predicated region
        $region37: #{tpu_custom_call.1} parent=11 // pred_check
          %p542 = pneg %p283
        $region38: #{tpu_custom_call.1} parent=11 // pred_check_branch
          %544 = sbr.rel (%p542) target = $region40
        $region39: #{tpu_custom_call.1} parent=11 // pred_region
          %546 = vsyncadd [#allocation10], 0
          %s547 = smul.addr %s40, 4
          %s548 = smul.addr %s547, 4
          %s549 = scalar_lea.hbm %s8, %s548
          %s550 = sshll.u32 %s549, 4
          %s551 = int_to_ptr.hbm [resolvable:$true] %s550
          %s552 = sshll.u32 [#allocation9], 4
          %s553 = int_to_ptr.vmem [resolvable:$true] %s552
          %558 = dma.hbm_to_vmem [thread:$0]  %s551, 256, %s553, [#allocation10], 64, 64, 4
        $region40: #{tpu_custom_call.1} parent=11 // pred_fallthru
          _
        // Predicated region
        $region41: #{tpu_custom_call.1} parent=11 // pred_check
          %p559 = pneg %p304
        $region42: #{tpu_custom_call.1} parent=11 // pred_check_branch
          %561 = sbr.rel (%p559) target = $region44
        $region43: #{tpu_custom_call.1} parent=11 // pred_region
          _
        $region44: #{tpu_custom_call.1} parent=11 // pred_fallthru
          _
        // Predicated region
        $region45: #{tpu_custom_call.1} parent=11 // pred_check
          %p562 = pneg %p325
        $region46: #{tpu_custom_call.1} parent=11 // pred_check_branch
          %564 = sbr.rel (%p562) target = $region48
        $region47: #{tpu_custom_call.1} parent=11 // pred_region
          _
        $region48: #{tpu_custom_call.1} parent=11 // pred_fallthru
          _
        // Predicated region
        $region49: #{tpu_custom_call.1} parent=11 // pred_check
          %p565 = pneg %p346
        $region50: #{tpu_custom_call.1} parent=11 // pred_check_branch
          %567 = sbr.rel (%p565) target = $region52
        $region51: #{tpu_custom_call.1} parent=11 // pred_region
          _
        $region52: #{tpu_custom_call.1} parent=11 // pred_fallthru
          _
        // Predicated region
        $region53: #{tpu_custom_call.1} parent=11 // pred_check
          %p568 = pneg %p367
        $region54: #{tpu_custom_call.1} parent=11 // pred_check_branch
          %570 = sbr.rel (%p568) target = $region56
        $region55: #{tpu_custom_call.1} parent=11 // pred_region
          %572 = vsyncadd [#allocation10], 0
          %s573 = sshll.u32 %s12, 4
          %s574 = int_to_ptr.hbm [resolvable:$true] %s573
          %s575 = sshll.u32 [#allocation11], 4
          %s576 = int_to_ptr.vmem [resolvable:$true] %s575
          %581 = dma.hbm_to_vmem [thread:$0]  %s574, 256, %s576, [#allocation10], 64, 64, 4
        $region56: #{tpu_custom_call.1} parent=11 // pred_fallthru
          _
        // Predicated region
        $region57: #{tpu_custom_call.1} parent=11 // pred_check
          %p582 = pneg %p388
        $region58: #{tpu_custom_call.1} parent=11 // pred_check_branch
          %584 = sbr.rel (%p582) target = $region60
        $region59: #{tpu_custom_call.1} parent=11 // pred_region
          _
        $region60: #{tpu_custom_call.1} parent=11 // pred_fallthru
          _
        // Predicated region
        $region61: #{tpu_custom_call.1} parent=11 // pred_check
          %p585 = pneg %p409
        $region62: #{tpu_custom_call.1} parent=11 // pred_check_branch
          %587 = sbr.rel (%p585) target = $region64
        $region63: #{tpu_custom_call.1} parent=11 // pred_region
          _
        $region64: #{tpu_custom_call.1} parent=11 // pred_fallthru
          _
        // Predicated region
        $region65: #{tpu_custom_call.1} parent=11 // pred_check
          %p588 = pneg %p430
        $region66: #{tpu_custom_call.1} parent=11 // pred_check_branch
          %590 = sbr.rel (%p588) target = $region68
        $region67: #{tpu_custom_call.1} parent=11 // pred_region
          _
        $region68: #{tpu_custom_call.1} parent=11 // pred_fallthru
          _
      $region12: #{tpu_custom_call.1} parent=5 // pred_fallthru
        _
      %p591 = scmp.lt.s32.totalorder %s28, 2
      // Predicated region
      $region69: #{tpu_custom_call.1} parent=5 // pred_check
        %p592 = pneg %p591
      $region70: #{tpu_custom_call.1} parent=5 // pred_check_branch
        %594 = sbr.rel (%p592) target = $region72
      $region71: #{tpu_custom_call.1} parent=5 // pred_region
        // Predicated region
        $region73: #{tpu_custom_call.1} parent=71 // pred_check
          %p595 = pneg %p69
        $region74: #{tpu_custom_call.1} parent=71 // pred_check_branch
          %597 = sbr.rel (%p595) target = $region76
        $region75: #{tpu_custom_call.1} parent=71 // pred_region
          %s598 = smul.u32 2, %s36
          %p599 = scmp.lt.s32.totalorder %s35, 1
          %s600 = scalar_select %p599, %s35, 1
          %p601 = scmp.lt.s32.totalorder %s598, 1
          %s602 = scalar_select %p601, %s598, 1
          %s603 = smul.addr %s600, 2
          %s604 = sadd.s32 %s602, %s603
          %s605 = smul.addr %s604, 8
          %s606 = scalar_lea.vmem %s0, %s605
          %s607 = smul.u32 2, %s36
        $region76: #{tpu_custom_call.1} parent=71 // pred_fallthru
          _
        // Predicated region
        $region77: #{tpu_custom_call.1} parent=71 // pred_check
          %p608 = pneg %p95
        $region78: #{tpu_custom_call.1} parent=71 // pred_check_branch
          %610 = sbr.rel (%p608) target = $region80
        $region79: #{tpu_custom_call.1} parent=71 // pred_region
          %p611 = scmp.lt.s32.totalorder %s35, 1
          %s612 = scalar_select %p611, %s35, 1
          %s613 = smul.addr %s612, 2
          %s614 = smul.addr %s613, 4
          %s615 = scalar_lea.vmem %s1, %s614
        $region80: #{tpu_custom_call.1} parent=71 // pred_fallthru
          _
      $region72: #{tpu_custom_call.1} parent=5 // pred_fallthru
        _
      %p616 = scmp.le.s32.totalorder 1, %s28
      %p617 = scmp.lt.s32.totalorder %s28, 3
      %p618 = pnand %p616, %p617
      %p619 = pneg %p618
      // Predicated region
      $region81: #{tpu_custom_call.1} parent=5 // pred_check
        _
      $region82: #{tpu_custom_call.1} parent=5 // pred_check_branch
        %621 = sbr.rel (%p618) target = $region84
      $region83: #{tpu_custom_call.1} parent=5 // pred_region
        %s622 = ssub.s32 %s28, 1
        // Predicated region
        $region85: #{tpu_custom_call.1} parent=83 // pred_check
          %p623 = pneg %p127
        $region86: #{tpu_custom_call.1} parent=83 // pred_check_branch
          %625 = sbr.rel (%p623) target = $region88
        $region87: #{tpu_custom_call.1} parent=83 // pred_region
          %627 = dma.done [#allocation4], 256
        $region88: #{tpu_custom_call.1} parent=83 // pred_fallthru
          _
        // Predicated region
        $region89: #{tpu_custom_call.1} parent=83 // pred_check
          %p628 = pneg %p179
        $region90: #{tpu_custom_call.1} parent=83 // pred_check_branch
          %630 = sbr.rel (%p628) target = $region92
        $region91: #{tpu_custom_call.1} parent=83 // pred_region
          %632 = dma.done [#allocation7], 256
        $region92: #{tpu_custom_call.1} parent=83 // pred_fallthru
          _
        // Predicated region
        $region93: #{tpu_custom_call.1} parent=83 // pred_check
          %p633 = pneg %p231
        $region94: #{tpu_custom_call.1} parent=83 // pred_check_branch
          %635 = sbr.rel (%p633) target = $region96
        $region95: #{tpu_custom_call.1} parent=83 // pred_region
          %637 = dma.done [#allocation7], 256
        $region96: #{tpu_custom_call.1} parent=83 // pred_fallthru
          _
        // Predicated region
        $region97: #{tpu_custom_call.1} parent=83 // pred_check
          %p638 = pneg %p283
        $region98: #{tpu_custom_call.1} parent=83 // pred_check_branch
          %640 = sbr.rel (%p638) target = $region100
        $region99: #{tpu_custom_call.1} parent=83 // pred_region
          %642 = dma.done [#allocation10], 256
        $region100: #{tpu_custom_call.1} parent=83 // pred_fallthru
          _
        // Predicated region
        $region101: #{tpu_custom_call.1} parent=83 // pred_check
          %p643 = pneg %p367
        $region102: #{tpu_custom_call.1} parent=83 // pred_check_branch
          %645 = sbr.rel (%p643) target = $region104
        $region103: #{tpu_custom_call.1} parent=83 // pred_region
          %647 = dma.done [#allocation10], 256
        $region104: #{tpu_custom_call.1} parent=83 // pred_fallthru
          _
        %s648 = smul.u32 2, %s39
        %p649 = scmp.lt.s32.totalorder %s38, 1
        %s650 = scalar_select %p649, %s38, 1
        %p651 = scmp.lt.s32.totalorder %s648, 1
        %s652 = scalar_select %p651, %s648, 1
        %s653 = smul.addr %s650, 2
        %s654 = sadd.s32 %s652, %s653
        %s655 = smul.addr %s654, 8
        %s656 = scalar_lea.vmem %s0, %s655
        %p657 = pneg %p75
        %p658 = pneg %p72
        %p659 = scmp.lt.s32.totalorder %s38, 1
        %s660 = scalar_select %p659, %s38, 1
        %s661 = smul.addr %s660, 2
        %s662 = smul.addr %s661, 4
        %s663 = scalar_lea.vmem %s1, %s662
        %p664 = pneg %p101
        %p665 = pneg %p98
        %p666 = pneg %p127
        %p667 = pneg %p124
        %p668 = scmp.lt.s32.totalorder %s40, 0
        %s669 = scalar_select %p668, %s40, 0
        %s670 = scalar_lea.vmem %s3, %s669
        %p671 = pneg %p153
        %p672 = pneg %p150
        %p673 = pneg %p179
        %p674 = pneg %p176
        %p675 = scmp.lt.s32.totalorder %s40, 0
        %s676 = scalar_select %p675, %s40, 0
        %s677 = scalar_lea.vmem %s5, %s676
        %p678 = pneg %p205
        %p679 = pneg %p202
        %p680 = pneg %p231
        %p681 = pneg %p228
        %p682 = scmp.lt.s32.totalorder %s40, 0
        %s683 = scalar_select %p682, %s40, 0
        %s684 = scalar_lea.vmem %s7, %s683
        %p685 = pneg %p257
        %p686 = pneg %p254
        %p687 = pneg %p283
        %p688 = pneg %p280
        %p689 = pneg %p304
        %p690 = pneg %p301
        %p691 = pneg %p325
        %p692 = pneg %p322
        %p693 = pneg %p346
        %p694 = pneg %p343
        %p695 = pneg %p367
        %p696 = pneg %p364
        %p697 = pneg %p388
        %p698 = pneg %p385
        %p699 = pneg %p409
        %p700 = pneg %p406
        %p701 = pneg %p430
        %p702 = pneg %p427
        %p703 = pneg %p458
        %p704 = pneg %p455
        %s705 = sand.u32 %s445, 1
        %s706 = scalar_lea.sflag [#allocation5], %s705
        %s707 = sand.u32 %s445, 1
        %s708 = smul.addr %s707, 16
        %s709 = scalar_lea.vmem [#allocation12], %s708
        %s710 = smul.u32 2, %s39
        %p711 = scmp.lt.s32.totalorder %s38, 1
        %s712 = scalar_select %p711, %s38, 1
        %p713 = scmp.lt.s32.totalorder %s710, 1
        %s714 = scalar_select %p713, %s710, 1
        %s715 = smul.addr %s712, 2
        %s716 = sadd.s32 %s714, %s715
        %s717 = smul.addr %s716, 8
        %s718 = scalar_lea.vmem %s0, %s717
        %s719 = smul.u32 2, %s39
        %p720 = scmp.lt.s32.totalorder %s38, 1
        %s721 = scalar_select %p720, %s38, 1
        %s722 = smul.addr %s721, 2
        %s723 = smul.addr %s722, 4
        %s724 = scalar_lea.vmem %s1, %s723
        %p725 = scmp.lt.s32.totalorder %s40, 0
        %s726 = scalar_select %p725, %s40, 0
        %s727 = scalar_lea.vmem %s3, %s726
        %p728 = scmp.lt.s32.totalorder %s40, 0
        %s729 = scalar_select %p728, %s40, 0
        %s730 = scalar_lea.vmem %s5, %s729
        %p731 = scmp.lt.s32.totalorder %s40, 0
        %s732 = scalar_select %p731, %s40, 0
        %s733 = scalar_lea.vmem %s7, %s732
        %s734 = smul.u32 2, %s39
        %p736 = scmp.eq.s32.totalorder %s40, 0
        // Predicated region
        $region105: #{tpu_custom_call.1} parent=83 // pred_check
          %p737 = pneg %p736
        $region106: #{tpu_custom_call.1} parent=83 // pred_check_branch
          %739 = sbr.rel (%p737) target = $region108
        $region107: #{tpu_custom_call.1} parent=83 // pred_region
          %vm740 = vcmask 261120
          %741 = vst.msk [vmem:[#allocation2] sm:$0xff] %vm740, 0.0
          %742 = vst.msk [vmem:[#allocation2 + $0x8] sm:$0xff] %vm740, 0.0
        $region108: #{tpu_custom_call.1} parent=83 // pred_fallthru
          _
        %v743 = vld [vmem:[%s724] sm:$0xf]
        %v744 = vld [vmem:[%s724 + $0x4] sm:$0xf]
        %v745 = vld [vmem:[#allocation3] sm:$0xf]
        %v746 = vld [vmem:[#allocation3 + $0x4] sm:$0xf]
        %v747 = vld [vmem:[#allocation3 + $0x8] sm:$0xf]
        %v748 = vld [vmem:[#allocation3 + $0xc] sm:$0xf]
        %v749 = vld [vmem:[%s727] sm:$0x1]
        %v751 = vperm.slane %v749, 0
        %v755 = vunpack.c.l.b16 %v743
        %v756 = vunpack.c.l.b16 %v744
        %v757 = vpack.c.b16 %v756, %v755
        %v762 = vunpack.c.l.b16 %v745
        %v763 = vunpack.c.l.b16 %v746
        %v764 = vunpack.c.l.b16 %v747
        %v765 = vunpack.c.l.b16 %v748
        %v766 = vpack.c.b16 %v763, %v762
        %v767 = vpack.c.b16 %v765, %v764
        %vm770 = vcmask 261120
        %v772 = vsel %vm770, %v757, 0
        %774 = vmatpush.bf16.msra.mxu0 0
        %775 = vmatpush.bf16.msra.mxu0 0
        %776 = vmatpush.bf16.msra.mxu0 0
        %777 = vmatpush.bf16.msra.mxu0 0
        %778 = vmatpush.bf16.msra.mxu0 0
        %779 = vmatpush.bf16.msra.mxu0 0
        %780 = vmatpush.bf16.msra.mxu0 %v767
        %781 = vmatpush.bf16.msra.mxu0 %v766
        %782 = vmatmul.bf16.gmra.mxu0 %v772
        %v783 = vpop.f32.mrf.mxu0
        %v784 = vadd.f32 %v751, %v783
        %v785 = vpop.f32.mrf.mxu0
        %v786 = vadd.f32 %v751, %v785
        %787 = vdwg.mxu0
        %v788 = vmul.f32 %v784, 0.35355338
        %v789 = vmul.f32 %v786, 0.35355338
        %v790 = vld [vmem:[#allocation6] sm:$0xf]
        %v791 = vld [vmem:[#allocation6 + $0x4] sm:$0xf]
        %v792 = vld [vmem:[#allocation6 + $0x8] sm:$0xf]
        %v793 = vld [vmem:[#allocation6 + $0xc] sm:$0xf]
        %v794 = vld [vmem:[%s730] sm:$0x1]
        %v796 = vperm.slane %v794, 0
        %v802 = vunpack.c.l.b16 %v790
        %v803 = vunpack.c.l.b16 %v791
        %v804 = vunpack.c.l.b16 %v792
        %v805 = vunpack.c.l.b16 %v793
        %v806 = vpack.c.b16 %v803, %v802
        %v807 = vpack.c.b16 %v805, %v804
        %810 = vmatpush.bf16.msra.mxu0 0
        %811 = vmatpush.bf16.msra.mxu0 0
        %812 = vmatpush.bf16.msra.mxu0 0
        %813 = vmatpush.bf16.msra.mxu0 0
        %814 = vmatpush.bf16.msra.mxu0 0
        %815 = vmatpush.bf16.msra.mxu0 0
        %816 = vmatpush.bf16.msra.mxu0 %v807
        %817 = vmatpush.bf16.msra.mxu0 %v806
        %818 = vmatmul.bf16.gmra.mxu0 %v772
        %v819 = vpop.f32.mrf.mxu0
        %v820 = vadd.f32 %v796, %v819
        %v821 = vpop.f32.mrf.mxu0
        %v822 = vadd.f32 %v796, %v821
        %823 = vdwg.mxu0
        %v824 = vld [vmem:[#allocation8] sm:$0xf]
        %v825 = vld [vmem:[#allocation8 + $0x4] sm:$0xf]
        %v826 = vld [vmem:[#allocation8 + $0x8] sm:$0xf]
        %v827 = vld [vmem:[#allocation8 + $0xc] sm:$0xf]
        %v828 = vld [vmem:[%s733] sm:$0x1]
        %v830 = vperm.slane %v828, 0
        %v836 = vunpack.c.l.b16 %v824
        %v837 = vunpack.c.l.b16 %v825
        %v838 = vunpack.c.l.b16 %v826
        %v839 = vunpack.c.l.b16 %v827
        %v840 = vpack.c.b16 %v837, %v836
        %v841 = vpack.c.b16 %v839, %v838
        %844 = vmatpush.bf16.msra.mxu0 0
        %845 = vmatpush.bf16.msra.mxu0 0
        %846 = vmatpush.bf16.msra.mxu0 0
        %847 = vmatpush.bf16.msra.mxu0 0
        %848 = vmatpush.bf16.msra.mxu0 0
        %849 = vmatpush.bf16.msra.mxu0 0
        %850 = vmatpush.bf16.msra.mxu0 %v841
        %851 = vmatpush.bf16.msra.mxu0 %v840
        %852 = vmatmul.bf16.gmra.mxu0 %v772
        %v853 = vpop.f32.mrf.mxu0
        %v854 = vadd.f32 %v830, %v853
        %v855 = vpop.f32.mrf.mxu0
        %v856 = vadd.f32 %v830, %v855
        %857 = vdwg.mxu0
        %v858 = vpack.c.bf16 %v788, %v788
        %v859 = vpack.c.bf16 %v789, %v789
        %v860 = vpack.c.bf16 %v820, %v820
        %v861 = vpack.c.bf16 %v822, %v822
        %v862 = vpack.c.bf16 %v854, %v854
        %v863 = vpack.c.bf16 %v856, %v856
        %v866 = vunpack.c.l.b16 %v858
        %v867 = vunpack.c.l.b16 %v859
        %v868 = vpack.c.b16 %v867, %v866
        %v871 = vunpack.c.l.b16 %v860
        %v872 = vunpack.c.l.b16 %v861
        %v873 = vpack.c.b16 %v872, %v871
        %vm874 = vcmask 64512
        %v876 = vsel %vm874, %v868, 0
        %v879 = vsel %vm874, %v873, 0
        %881 = vmatpush.bf16.xpose.msra.mxu0 0
        %882 = vmatpush.bf16.xpose.msra.mxu0 0
        %883 = vmatpush.bf16.xpose.msra.mxu0 0
        %884 = vmatpush.bf16.xpose.msra.mxu0 0
        %885 = vmatpush.bf16.xpose.msra.mxu0 0
        %886 = vmatpush.bf16.xpose.msra.mxu0 0
        %887 = vmatpush.bf16.xpose.msra.mxu0 0
        %888 = vmatpush.bf16.xpose.msra.mxu0 %v879
        %889 = vmatmul.bf16.gmra.mxu0 %v876
        %v890 = vpop.f32.mrf.mxu0
        %v891 = vadd.f32 0.0, %v890
        %v892 = vpop.f32.mrf.mxu0
        %v893 = vadd.f32 0.0, %v892
        %894 = vdwg.mxu0
        %vm895 = vcmask 130048
        %v896 = vsel %vm895, %v891, -inf
        %897 = vmax.xlane.f32.xlu0 %v896
        %v898 = vpop.xlane.xlu0 %897
        %v899 = vsel %vm895, %v893, -inf
        %900 = vmax.xlane.f32.xlu0 %v899
        %v901 = vpop.xlane.xlu0 %900
        %v902 = vsub.f32 %v891, %v898
        %v903 = vsub.f32 %v893, %v901
        %v904 = vmul.f32 %v902, 1.442695
        %v905 = vpow.pop %v904
        %v906 = vmul.f32 %v903, 1.442695
        %v907 = vpow.pop %v906
        %v908 = vsel %vm895, %v905, 0.0
        %909 = vadd.xlane.f32.xlu0 %v908
        %v910 = vpop.xlane.xlu0 %909
        %v911 = vsel %vm895, %v907, 0.0
        %912 = vadd.xlane.f32.xlu0 %v911
        %v913 = vpop.xlane.xlu0 %912
        %v914 = vpack.c.bf16 %v907, %v905
        %v917 = vunpack.c.l.b16 %v862
        %v918 = vunpack.c.l.b16 %v863
        %v919 = vpack.c.b16 %v918, %v917
        %v922 = vsel %vm895, %v914, 0
        %924 = vmatpush.bf16.msra.mxu0 0
        %925 = vmatpush.bf16.msra.mxu0 0
        %926 = vmatpush.bf16.msra.mxu0 0
        %927 = vmatpush.bf16.msra.mxu0 0
        %928 = vmatpush.bf16.msra.mxu0 0
        %929 = vmatpush.bf16.msra.mxu0 0
        %930 = vmatpush.bf16.msra.mxu0 0
        %931 = vmatpush.bf16.msra.mxu0 %v919
        %932 = vmatmul.bf16.gmra.mxu0 %v922
        %v933 = vpop.f32.mrf.mxu0
        %v934 = vadd.f32 0.0, %v933
        %v935 = vpop.f32.mrf.mxu0
        %v936 = vadd.f32 0.0, %v935
        %937 = vdwg.mxu0
        %v938 = vrcp.pop %v910
        %v939 = vrcp.pop %v913
        %v940 = vmul.f32 %v934, %v938
        %v941 = vmul.f32 %v936, %v939
        %v942 = vpack.c.bf16 %v940, %v940
        %v943 = vpack.c.bf16 %v941, %v941
        %944 = vrot.lane.b32.xlu0 %v868, 120
        %v945 = vpop.permute.xlu0 %944
        %946 = vrot.lane.b32.xlu0 %v873, 120
        %v947 = vpop.permute.xlu0 %946
        %v949 = vsel %vm874, %v945, 0
        %v952 = vsel %vm874, %v947, 0
        %954 = vmatpush.bf16.xpose.msra.mxu0 0
        %955 = vmatpush.bf16.xpose.msra.mxu0 0
        %956 = vmatpush.bf16.xpose.msra.mxu0 0
        %957 = vmatpush.bf16.xpose.msra.mxu0 0
        %958 = vmatpush.bf16.xpose.msra.mxu0 0
        %959 = vmatpush.bf16.xpose.msra.mxu0 0
        %960 = vmatpush.bf16.xpose.msra.mxu0 0
        %961 = vmatpush.bf16.xpose.msra.mxu0 %v952
        %962 = vmatmul.bf16.gmra.mxu0 %v949
        %v963 = vpop.f32.mrf.mxu0
        %v964 = vadd.f32 0.0, %v963
        %v965 = vpop.f32.mrf.mxu0
        %v966 = vadd.f32 0.0, %v965
        %967 = vdwg.mxu0
        %v968 = vsel %vm895, %v964, -inf
        %969 = vmax.xlane.f32.xlu0 %v968
        %v970 = vpop.xlane.xlu0 %969
        %v971 = vsel %vm895, %v966, -inf
        %972 = vmax.xlane.f32.xlu0 %v971
        %v973 = vpop.xlane.xlu0 %972
        %v974 = vsub.f32 %v964, %v970
        %v975 = vsub.f32 %v966, %v973
        %v976 = vmul.f32 %v974, 1.442695
        %v977 = vpow.pop %v976
        %v978 = vmul.f32 %v975, 1.442695
        %v979 = vpow.pop %v978
        %v980 = vsel %vm895, %v977, 0.0
        %981 = vadd.xlane.f32.xlu0 %v980
        %v982 = vpop.xlane.xlu0 %981
        %v983 = vsel %vm895, %v979, 0.0
        %984 = vadd.xlane.f32.xlu0 %v983
        %v985 = vpop.xlane.xlu0 %984
        %v986 = vpack.c.bf16 %v979, %v977
        %987 = vrot.lane.b32.xlu0 %v919, 120
        %v988 = vpop.permute.xlu0 %987
        %v991 = vsel %vm895, %v986, 0
        %993 = vmatpush.bf16.msra.mxu0 0
        %994 = vmatpush.bf16.msra.mxu0 0
        %995 = vmatpush.bf16.msra.mxu0 0
        %996 = vmatpush.bf16.msra.mxu0 0
        %997 = vmatpush.bf16.msra.mxu0 0
        %998 = vmatpush.bf16.msra.mxu0 0
        %999 = vmatpush.bf16.msra.mxu0 0
        %1000 = vmatpush.bf16.msra.mxu0 %v988
        %1001 = vmatmul.bf16.gmra.mxu0 %v991
        %v1002 = vpop.f32.mrf.mxu0
        %v1003 = vadd.f32 0.0, %v1002
        %v1004 = vpop.f32.mrf.mxu0
        %v1005 = vadd.f32 0.0, %v1004
        %1006 = vdwg.mxu0
        %v1007 = vrcp.pop %v982
        %v1008 = vrcp.pop %v985
        %v1009 = vmul.f32 %v1003, %v1007
        %v1010 = vmul.f32 %v1005, %v1008
        %v1011 = vpack.c.bf16 %v1009, %v1009
        %v1012 = vpack.c.bf16 %v1010, %v1010
        %1013 = vrot.lane.b32.xlu0 %v868, 112
        %v1014 = vpop.permute.xlu0 %1013
        %1015 = vrot.lane.b32.xlu0 %v873, 112
        %v1016 = vpop.permute.xlu0 %1015
        %v1018 = vsel %vm874, %v1014, 0
        %v1021 = vsel %vm874, %v1016, 0
        %1023 = vmatpush.bf16.xpose.msra.mxu0 0
        %1024 = vmatpush.bf16.xpose.msra.mxu0 0
        %1025 = vmatpush.bf16.xpose.msra.mxu0 0
        %1026 = vmatpush.bf16.xpose.msra.mxu0 0
        %1027 = vmatpush.bf16.xpose.msra.mxu0 0
        %1028 = vmatpush.bf16.xpose.msra.mxu0 0
        %1029 = vmatpush.bf16.xpose.msra.mxu0 0
        %1030 = vmatpush.bf16.xpose.msra.mxu0 %v1021
        %1031 = vmatmul.bf16.gmra.mxu0 %v1018
        %v1032 = vpop.f32.mrf.mxu0
        %v1033 = vadd.f32 0.0, %v1032
        %v1034 = vpop.f32.mrf.mxu0
        %v1035 = vadd.f32 0.0, %v1034
        %1036 = vdwg.mxu0
        %v1037 = vsel %vm895, %v1033, -inf
        %1038 = vmax.xlane.f32.xlu0 %v1037
        %v1039 = vpop.xlane.xlu0 %1038
        %v1040 = vsel %vm895, %v1035, -inf
        %1041 = vmax.xlane.f32.xlu0 %v1040
        %v1042 = vpop.xlane.xlu0 %1041
        %v1043 = vsub.f32 %v1033, %v1039
        %v1044 = vsub.f32 %v1035, %v1042
        %v1045 = vmul.f32 %v1043, 1.442695
        %v1046 = vpow.pop %v1045
        %v1047 = vmul.f32 %v1044, 1.442695
        %v1048 = vpow.pop %v1047
        %v1049 = vsel %vm895, %v1046, 0.0
        %1050 = vadd.xlane.f32.xlu0 %v1049
        %v1051 = vpop.xlane.xlu0 %1050
        %v1052 = vsel %vm895, %v1048, 0.0
        %1053 = vadd.xlane.f32.xlu0 %v1052
        %v1054 = vpop.xlane.xlu0 %1053
        %v1055 = vpack.c.bf16 %v1048, %v1046
        %1056 = vrot.lane.b32.xlu0 %v919, 112
        %v1057 = vpop.permute.xlu0 %1056
        %v1060 = vsel %vm895, %v1055, 0
        %1062 = vmatpush.bf16.msra.mxu0 0
        %1063 = vmatpush.bf16.msra.mxu0 0
        %1064 = vmatpush.bf16.msra.mxu0 0
        %1065 = vmatpush.bf16.msra.mxu0 0
        %1066 = vmatpush.bf16.msra.mxu0 0
        %1067 = vmatpush.bf16.msra.mxu0 0
        %1068 = vmatpush.bf16.msra.mxu0 0
        %1069 = vmatpush.bf16.msra.mxu0 %v1057
        %1070 = vmatmul.bf16.gmra.mxu0 %v1060
        %v1071 = vpop.f32.mrf.mxu0
        %v1072 = vadd.f32 0.0, %v1071
        %v1073 = vpop.f32.mrf.mxu0
        %v1074 = vadd.f32 0.0, %v1073
        %1075 = vdwg.mxu0
        %v1076 = vrcp.pop %v1051
        %v1077 = vrcp.pop %v1054
        %v1078 = vmul.f32 %v1072, %v1076
        %v1079 = vmul.f32 %v1074, %v1077
        %v1080 = vpack.c.bf16 %v1078, %v1078
        %v1081 = vpack.c.bf16 %v1079, %v1079
        %1082 = vrot.lane.b32.xlu0 %v868, 104
        %v1083 = vpop.permute.xlu0 %1082
        %1084 = vrot.lane.b32.xlu0 %v873, 104
        %v1085 = vpop.permute.xlu0 %1084
        %v1087 = vsel %vm874, %v1083, 0
        %v1090 = vsel %vm874, %v1085, 0
        %1092 = vmatpush.bf16.xpose.msra.mxu0 0
        %1093 = vmatpush.bf16.xpose.msra.mxu0 0
        %1094 = vmatpush.bf16.xpose.msra.mxu0 0
        %1095 = vmatpush.bf16.xpose.msra.mxu0 0
        %1096 = vmatpush.bf16.xpose.msra.mxu0 0
        %1097 = vmatpush.bf16.xpose.msra.mxu0 0
        %1098 = vmatpush.bf16.xpose.msra.mxu0 0
        %1099 = vmatpush.bf16.xpose.msra.mxu0 %v1090
        %1100 = vmatmul.bf16.gmra.mxu0 %v1087
        %v1101 = vpop.f32.mrf.mxu0
        %v1102 = vadd.f32 0.0, %v1101
        %v1103 = vpop.f32.mrf.mxu0
        %v1104 = vadd.f32 0.0, %v1103
        %1105 = vdwg.mxu0
        %v1106 = vsel %vm895, %v1102, -inf
        %1107 = vmax.xlane.f32.xlu0 %v1106
        %v1108 = vpop.xlane.xlu0 %1107
        %v1109 = vsel %vm895, %v1104, -inf
        %1110 = vmax.xlane.f32.xlu0 %v1109
        %v1111 = vpop.xlane.xlu0 %1110
        %v1112 = vsub.f32 %v1102, %v1108
        %v1113 = vsub.f32 %v1104, %v1111
        %v1114 = vmul.f32 %v1112, 1.442695
        %v1115 = vpow.pop %v1114
        %v1116 = vmul.f32 %v1113, 1.442695
        %v1117 = vpow.pop %v1116
        %v1118 = vsel %vm895, %v1115, 0.0
        %1119 = vadd.xlane.f32.xlu0 %v1118
        %v1120 = vpop.xlane.xlu0 %1119
        %v1121 = vsel %vm895, %v1117, 0.0
        %1122 = vadd.xlane.f32.xlu0 %v1121
        %v1123 = vpop.xlane.xlu0 %1122
        %v1124 = vpack.c.bf16 %v1117, %v1115
        %1125 = vrot.lane.b32.xlu0 %v919, 104
        %v1126 = vpop.permute.xlu0 %1125
        %v1129 = vsel %vm895, %v1124, 0
        %1131 = vmatpush.bf16.msra.mxu0 0
        %1132 = vmatpush.bf16.msra.mxu0 0
        %1133 = vmatpush.bf16.msra.mxu0 0
        %1134 = vmatpush.bf16.msra.mxu0 0
        %1135 = vmatpush.bf16.msra.mxu0 0
        %1136 = vmatpush.bf16.msra.mxu0 0
        %1137 = vmatpush.bf16.msra.mxu0 0
        %1138 = vmatpush.bf16.msra.mxu0 %v1126
        %1139 = vmatmul.bf16.gmra.mxu0 %v1129
        %v1140 = vpop.f32.mrf.mxu0
        %v1141 = vadd.f32 0.0, %v1140
        %v1142 = vpop.f32.mrf.mxu0
        %v1143 = vadd.f32 0.0, %v1142
        %1144 = vdwg.mxu0
        %v1145 = vrcp.pop %v1120
        %v1146 = vrcp.pop %v1123
        %v1147 = vmul.f32 %v1141, %v1145
        %v1148 = vmul.f32 %v1143, %v1146
        %v1149 = vpack.c.bf16 %v1147, %v1147
        %v1150 = vpack.c.bf16 %v1148, %v1148
        %v1153 = vunpack.c.l.b16 %v942
        %v1154 = vunpack.c.l.b16 %v943
        %v1155 = vpack.c.b16 %v1154, %v1153
        %v1158 = vunpack.c.l.b16 %v1011
        %v1159 = vunpack.c.l.b16 %v1012
        %v1160 = vpack.c.b16 %v1159, %v1158
        %1161 = vrot.lane.b32.xlu0 %v1160, 8
        %v1162 = vpop.permute.xlu0 %1161
        %v1165 = vunpack.c.l.b16 %v1080
        %v1166 = vunpack.c.l.b16 %v1081
        %v1167 = vpack.c.b16 %v1166, %v1165
        %1168 = vrot.lane.b32.xlu0 %v1167, 16
        %v1169 = vpop.permute.xlu0 %1168
        %v1172 = vunpack.c.l.b16 %v1149
        %v1173 = vunpack.c.l.b16 %v1150
        %v1174 = vpack.c.b16 %v1173, %v1172
        %1175 = vrot.lane.b32.xlu0 %v1174, 24
        %v1176 = vpop.permute.xlu0 %1175
        %v1179 = vsel %vm874, %v1155, %v1162
        %v1181 = vsel %vm895, %v1179, %v1169
        %vm1182 = vcmask 195584
        %v1184 = vsel %vm1182, %v1181, %v1176
        %v1185 = vld [vmem:[#allocation2] sm:$0xff]
        %v1186 = vld [vmem:[#allocation2 + $0x8] sm:$0xff]
        %v1187 = vld [vmem:[#allocation9] sm:$0xf]
        %v1188 = vld [vmem:[#allocation9 + $0x4] sm:$0xf]
        %v1189 = vld [vmem:[#allocation9 + $0x8] sm:$0xf]
        %v1190 = vld [vmem:[#allocation9 + $0xc] sm:$0xf]
        %v1195 = vunpack.c.l.b16 %v1187
        %v1196 = vunpack.c.l.b16 %v1188
        %v1197 = vunpack.c.l.b16 %v1189
        %v1198 = vunpack.c.l.b16 %v1190
        %v1199 = vpack.c.b16 %v1196, %v1195
        %v1200 = vpack.c.b16 %v1198, %v1197
        %v1203 = vsel %vm770, %v1184, 0
        %1205 = vmatpush.bf16.msra.mxu0 0
        %1206 = vmatpush.bf16.msra.mxu0 0
        %1207 = vmatpush.bf16.msra.mxu0 0
        %1208 = vmatpush.bf16.msra.mxu0 0
        %1209 = vmatpush.bf16.msra.mxu0 0
        %1210 = vmatpush.bf16.msra.mxu0 0
        %1211 = vmatpush.bf16.msra.mxu0 %v1200
        %1212 = vmatpush.bf16.msra.mxu0 %v1199
        %1213 = vmatmul.bf16.gmra.mxu0 %v1203
        %v1214 = vpop.f32.mrf.mxu0
        %v1215 = vadd.f32 0.0, %v1214
        %v1216 = vpop.f32.mrf.mxu0
        %v1217 = vadd.f32 0.0, %v1216
        %1218 = vdwg.mxu0
        %v1219 = vadd.f32 %v1185, %v1215
        %v1220 = vadd.f32 %v1186, %v1217
        %1221 = vst.msk [vmem:[#allocation2] sm:$0xff] %vm770, %v1219
        %1222 = vst.msk [vmem:[#allocation2 + $0x8] sm:$0xff] %vm770, %v1220
        // Predicated region
        $region109: #{tpu_custom_call.1} parent=83 // pred_check
          %p1223 = pneg %p736
        $region110: #{tpu_custom_call.1} parent=83 // pred_check_branch
          %1225 = sbr.rel (%p1223) target = $region112
        $region111: #{tpu_custom_call.1} parent=83 // pred_region
          %v1226 = vld [vmem:[%s718] sm:$0xff]
          %v1227 = vld [vmem:[%s718 + $0x8] sm:$0xff]
          %v1228 = vld [vmem:[#allocation2] sm:$0xff]
          %v1229 = vld [vmem:[#allocation2 + $0x8] sm:$0xff]
          %v1230 = vadd.f32 %v1226, %v1228
          %v1231 = vadd.f32 %v1227, %v1229
          %v1232 = vld [vmem:[%s9] sm:$0x1]
          %v1234 = vperm.slane %v1232, 0
          %v1236 = vadd.f32 %v1230, %v1234
          %v1237 = vadd.f32 %v1231, %v1234
          %v1238 = vld [vmem:[%s10] sm:$0x1]
          %v1239 = vld [vmem:[%s11] sm:$0x1]
          %v1240 = vsel %vm770, %v1236, 0.0
          %1241 = vadd.xlane.f32.xlu0 %v1240
          %v1242 = vpop.xlane.xlu0 %1241
          %v1243 = vsel %vm770, %v1237, 0.0
          %1244 = vadd.xlane.f32.xlu0 %v1243
          %v1245 = vpop.xlane.xlu0 %1244
          %v1246 = vrcp.pop 32.0
          %v1247 = vmul.f32 32.0, %v1246
          %v1248 = vsub.f32 1.0, %v1247
          %v1249 = vmul.f32 %v1246, %v1248
          %v1250 = vadd.f32 %v1246, %v1249
          %vm1251 = vweird.f32 %v1246
          %v1252 = vsel %vm1251, %v1246, %v1250
          %v1253 = vmul.f32 %v1242, %v1252
          %v1254 = vmul.f32 %v1245, %v1252
          %v1255 = vsub.f32 %v1236, %v1253
          %v1256 = vsub.f32 %v1237, %v1254
          %v1257 = vmul.f32 %v1255, %v1255
          %v1258 = vmul.f32 %v1256, %v1256
          %v1259 = vsel %vm770, %v1257, 0.0
          %1260 = vadd.xlane.f32.xlu0 %v1259
          %v1261 = vpop.xlane.xlu0 %1260
          %v1262 = vsel %vm770, %v1258, 0.0
          %1263 = vadd.xlane.f32.xlu0 %v1262
          %v1264 = vpop.xlane.xlu0 %1263
          %v1265 = vmul.f32 %v1261, %v1252
          %v1266 = vmul.f32 %v1264, %v1252
          %v1267 = vadd.f32 %v1265, 1e-06
          %v1268 = vadd.f32 %v1266, 1e-06
          %v1269 = vrsqrt.pop %v1267
          %v1270 = vmul.f32 %v1269, %v1267
          %v1271 = vmul.f32 %v1270, %v1269
          %v1272 = vmul.f32 0.5, %v1271
          %v1273 = vsub.f32 1.5, %v1272
          %v1274 = vmul.f32 %v1269, %v1273
          %vm1275 = vweird.f32 %v1267
          %vm1276 = vweird.f32 %v1269
          %vm1277 = vmor %vm1275, %vm1276
          %v1278 = vsel %vm1277, %v1269, %v1274
          %v1279 = vrsqrt.pop %v1268
          %v1280 = vmul.f32 %v1279, %v1268
          %v1281 = vmul.f32 %v1280, %v1279
          %v1282 = vmul.f32 0.5, %v1281
          %v1283 = vsub.f32 1.5, %v1282
          %v1284 = vmul.f32 %v1279, %v1283
          %vm1285 = vweird.f32 %v1268
          %vm1286 = vweird.f32 %v1279
          %vm1287 = vmor %vm1285, %vm1286
          %v1288 = vsel %vm1287, %v1279, %v1284
          %v1289 = vmul.f32 %v1255, %v1278
          %v1290 = vmul.f32 %v1256, %v1288
          %v1292 = vperm.slane %v1238, 0
          %v1294 = vmul.f32 %v1289, %v1292
          %v1295 = vmul.f32 %v1290, %v1292
          %v1297 = vperm.slane %v1239, 0
          %v1299 = vadd.f32 %v1294, %v1297
          %v1300 = vadd.f32 %v1295, %v1297
          %v1301 = vpack.c.bf16 %v1300, %v1299
          %v1302 = vld [vmem:[#allocation11] sm:$0xf]
          %v1303 = vld [vmem:[#allocation11 + $0x4] sm:$0xf]
          %v1304 = vld [vmem:[#allocation11 + $0x8] sm:$0xf]
          %v1305 = vld [vmem:[#allocation11 + $0xc] sm:$0xf]
          %v1306 = vld [vmem:[%s13] sm:$0x1]
          %v1308 = vperm.slane %v1306, 0
          %v1314 = vunpack.c.l.b16 %v1302
          %v1315 = vunpack.c.l.b16 %v1303
          %v1316 = vunpack.c.l.b16 %v1304
          %v1317 = vunpack.c.l.b16 %v1305
          %v1318 = vpack.c.b16 %v1315, %v1314
          %v1319 = vpack.c.b16 %v1317, %v1316
          %v1323 = vsel %vm770, %v1301, 0
          %1325 = vmatpush.bf16.msra.mxu0 0
          %1326 = vmatpush.bf16.msra.mxu0 0
          %1327 = vmatpush.bf16.msra.mxu0 0
          %1328 = vmatpush.bf16.msra.mxu0 0
          %1329 = vmatpush.bf16.msra.mxu0 0
          %1330 = vmatpush.bf16.msra.mxu0 0
          %1331 = vmatpush.bf16.msra.mxu0 %v1319
          %1332 = vmatpush.bf16.msra.mxu0 %v1318
          %1333 = vmatmul.bf16.gmra.mxu0 %v1323
          %v1334 = vpop.f32.mrf.mxu0
          %v1335 = vadd.f32 %v1308, %v1334
          %v1336 = vpop.f32.mrf.mxu0
          %v1337 = vadd.f32 %v1308, %v1336
          %1338 = vdwg.mxu0
          %v1339 = vmul.f32 %v1335, 0.5
          %v1340 = vmul.f32 %v1337, 0.5
          %v1341 = vmul.f32 %v1335, 0.044715
          %v1342 = vmul.f32 %v1337, 0.044715
          %v1343 = vmul.f32 %v1341, %v1335
          %v1344 = vmul.f32 %v1342, %v1337
          %v1345 = vmul.f32 %v1343, %v1335
          %v1346 = vmul.f32 %v1344, %v1337
          %v1347 = vadd.f32 %v1335, %v1345
          %v1348 = vadd.f32 %v1337, %v1346
          %v1349 = vmul.f32 %v1347, 0.7978846
          %v1350 = vmul.f32 %v1348, 0.7978846
          %v1351 = vtanh.pop %v1349
          %v1352 = vtanh.pop %v1350
          %v1353 = vadd.f32 %v1351, 1.0
          %v1354 = vadd.f32 %v1352, 1.0
          %v1355 = vmul.f32 %v1339, %v1353
          %v1356 = vmul.f32 %v1340, %v1354
          %v1357 = vpack.c.bf16 %v1356, %v1355
          %v1358 = vld [vmem:[%s14] sm:$0xf]
          %v1359 = vld [vmem:[%s14 + $0x4] sm:$0xf]
          %v1360 = vld [vmem:[%s14 + $0x8] sm:$0xf]
          %v1361 = vld [vmem:[%s14 + $0xc] sm:$0xf]
          %v1362 = vld [vmem:[%s14 + $0x10] sm:$0xf]
          %v1363 = vld [vmem:[%s14 + $0x14] sm:$0xf]
          %v1364 = vld [vmem:[%s14 + $0x18] sm:$0xf]
          %v1365 = vld [vmem:[%s14 + $0x1c] sm:$0xf]
          %v1374 = vunpack.c.l.b16 %v1358
          %v1375 = vunpack.c.l.b16 %v1359
          %v1376 = vunpack.c.l.b16 %v1360
          %v1377 = vunpack.c.l.b16 %v1361
          %v1378 = vunpack.c.l.b16 %v1362
          %v1379 = vunpack.c.l.b16 %v1363
          %v1380 = vunpack.c.l.b16 %v1364
          %v1381 = vunpack.c.l.b16 %v1365
          %v1382 = vpack.c.b16 %v1375, %v1374
          %v1383 = vpack.c.b16 %v1377, %v1376
          %v1384 = vpack.c.b16 %v1379, %v1378
          %v1385 = vpack.c.b16 %v1381, %v1380
          %vm1390 = vcmask 523264
          %v1392 = vsel %vm1390, %v1357, 0
          %1394 = vmatpush.bf16.msra.mxu0 0
          %1395 = vmatpush.bf16.msra.mxu0 0
          %1396 = vmatpush.bf16.msra.mxu0 0
          %1397 = vmatpush.bf16.msra.mxu0 0
          %1398 = vmatpush.bf16.msra.mxu0 %v1385
          %1399 = vmatpush.bf16.msra.mxu0 %v1384
          %1400 = vmatpush.bf16.msra.mxu0 %v1383
          %1401 = vmatpush.bf16.msra.mxu0 %v1382
          %1402 = vmatmul.bf16.gmra.mxu0 %v1392
          %v1403 = vpop.f32.mrf.mxu0
          %v1404 = vadd.f32 0.0, %v1403
          %v1405 = vpop.f32.mrf.mxu0
          %v1406 = vadd.f32 0.0, %v1405
          %1407 = vdwg.mxu0
          %v1408 = vadd.f32 %v1236, %v1404
          %v1409 = vadd.f32 %v1237, %v1406
          %v1410 = vld [vmem:[%s15] sm:$0x1]
          %v1412 = vperm.slane %v1410, 0
          %v1414 = vadd.f32 %v1408, %v1412
          %v1415 = vadd.f32 %v1409, %v1412
          %1416 = vst.msk [vmem:[%s709] sm:$0xff] %vm770, %v1414
          %1417 = vst.msk [vmem:[%s709 + $0x8] sm:$0xff] %vm770, %v1415
        $region112: #{tpu_custom_call.1} parent=83 // pred_fallthru
          _
        %s1418 = sand.u32 %s445, 1
        %s1419 = scalar_lea.sflag [#allocation5], %s1418
        %s1420 = sand.u32 %s445, 1
        %s1421 = smul.addr %s1420, 16
        %s1422 = scalar_lea.vmem [#allocation12], %s1421
        // Predicated region
        $region113: #{tpu_custom_call.1} parent=83 // pred_check
          %p1423 = pneg %p455
        $region114: #{tpu_custom_call.1} parent=83 // pred_check_branch
          %1425 = sbr.rel (%p1423) target = $region116
        $region115: #{tpu_custom_call.1} parent=83 // pred_region
          %s1426 = smul.u32 2, %s39
          %1428 = vsyncadd %s1419, 0
          %s1429 = smul.addr %s38, 2
          %s1430 = sadd.s32 %s1426, %s1429
          %s1431 = smul.addr %s1430, 8
          %s1432 = scalar_lea.hbm %s16, %s1431
          %s1433 = sshll.u32 %s1422, 4
          %s1434 = int_to_ptr.vmem [resolvable:$true] %s1433
          %s1435 = sshll.u32 %s1432, 4
          %s1436 = int_to_ptr.hbm [resolvable:$true] %s1435
          %1441 = dma.vmem_to_hbm [thread:$0]  %s1434, 256, %s1436, %s1419, 128, 128, 8
        $region116: #{tpu_custom_call.1} parent=83 // pred_fallthru
          _
      $region84: #{tpu_custom_call.1} parent=5 // pred_fallthru
        _
      %p1442 = scmp.le.s32.totalorder 2, %s28
      // Predicated region
      $region117: #{tpu_custom_call.1} parent=5 // pred_check
        %p1443 = pneg %p1442
      $region118: #{tpu_custom_call.1} parent=5 // pred_check_branch
        %1445 = sbr.rel (%p1443) target = $region120
      $region119: #{tpu_custom_call.1} parent=5 // pred_region
        %s1446 = ssub.s32 %s28, 2
        // Predicated region
        $region121: #{tpu_custom_call.1} parent=119 // pred_check
          %p1447 = pneg %p461
        $region122: #{tpu_custom_call.1} parent=119 // pred_check_branch
          %1449 = sbr.rel (%p1447) target = $region124
        $region123: #{tpu_custom_call.1} parent=119 // pred_region
          %s1450 = sand.u32 %s446, 1
          %s1451 = scalar_lea.sflag [#allocation5], %s1450
          %s1452 = sand.u32 %s446, 1
          %s1453 = smul.addr %s1452, 16
          %s1454 = scalar_lea.vmem [#allocation12], %s1453
          %1456 = dma.done %s1451, 256
        $region124: #{tpu_custom_call.1} parent=119 // pred_fallthru
          _
      $region120: #{tpu_custom_call.1} parent=5 // pred_fallthru
        _
    $region6: #{tpu_custom_call.1} parent=1 // loop_footer
      %s32 = sadd.s32 1, %s28
    $region7: #{tpu_custom_call.1} parent=1 // loop_footer_branch
      %27 = sbr.rel target = $region3
    $region8: #{tpu_custom_call.1} parent=1 // loop_exit
      _
    %1457 = vsyncpa [#allocation4], 1
    %s1458 = scalar_lea.sflag [#allocation4], 1
    %1459 = vsyncpa %s1458, 1
    %1460 = vsyncpa [#allocation7], 1
    %1461 = vsyncpa [#allocation10], 1
    %1462 = vsyncpa [#allocation5], 1
    %s1463 = scalar_lea.sflag [#allocation5], 1
    %1464 = vsyncpa %s1463, 1

</llo_original>
